<compile_context>
chip_gen: v7x
topology: tpu7x:2x2x1
jax: 0.10.0
libtpu: 0.0.40
codegen_flags: <defaults>
</compile_context>

<pallas_src>
import functools

import jax
import jax.numpy as jnp
import numpy as np
from jax.experimental import pallas as pl
from jax.experimental.pallas import tpu as pltpu

# ----------------------------- model config ---------------------------------
B = 2          # batch (number of sequences)
S = 8          # padded token length
D = 32         # d_model
H = 4          # num attention heads
DH = D // H    # per-head dim
F = 64         # d_ff
VOCAB = 128
NUM_LAYERS = 2
NUM_BUCKETS = 32
MAX_DISTANCE = 128
EPS = 1e-6

# TODO(synk): SentencePiece tokenization / '<AA2fold>' prefixing and the pretrained
# ProstT5 checkpoint have no Pallas equivalent; token ids and the attention mask are
# produced directly, weights are random but deterministic.


# ----------------------------- Pallas kernel ---------------------------------
def t5_encoder_kernel(h_ref, mask_ref, pb_ref,
                      ln1_ref, wq_ref, wk_ref, wv_ref, wo_ref,
                      ln2_ref, wi_ref, wof_ref, lnf_ref, out_ref):
    """Entire T5 encoder stack + final RMSNorm + mean pool in a single grid step."""
    x = h_ref[...].reshape(B * S, D)       # activations kept 2-D (BS, D) for matmuls
    mask = mask_ref[...]                   # (B, 1, S) additive mask (0 / -1e9)
    pb = pb_ref[...]                       # (H, S, S) relative-position bias

    def rms(h, w):                         # T5 RMSNorm (no mean subtraction)
        return h * jax.lax.rsqrt(jnp.mean(h * h, axis=-1, keepdims=True) + EPS) * w

    for l in range(NUM_LAYERS):            # static unroll over layers (NUM_LAYERS=2)
        # --- self-attention sublayer -----------------------------------------
        xn = rms(x, ln1_ref[l])            # (BS, D); ln weight (1, D) broadcasts
        # fused head projections: one D-wide matmul each for q / k / v
        q_all = jnp.dot(xn, wq_ref[l], preferred_element_type=jnp.float32)  # (BS, D)
        k_all = jnp.dot(xn, wk_ref[l], preferred_element_type=jnp.float32)
        v_all = jnp.dot(xn, wv_ref[l], preferred_element_type=jnp.float32)
        q3 = q_all.reshape(B, S, D)
        k3 = k_all.reshape(B, S, D)
        v3 = v_all.reshape(B, S, D)
        wo_l = wo_ref[l]                   # (D, D) fused output projection

        attn = jnp.zeros((B * S, D), jnp.float32)
        for hh in range(H):                # static unroll over heads
            lo = hh * DH
            q = q3[:, :, lo:lo + DH]       # (B, S, DH)
            k = k3[:, :, lo:lo + DH]
            v = v3[:, :, lo:lo + DH]
            # T5 attention: no 1/sqrt(dk) scaling; add rel-pos bias + padding mask.
            s = jnp.einsum('bqe,bke->bqk', q, k,
                           preferred_element_type=jnp.float32)              # (B, S, S)
            s = s + pb[hh] + mask
            m = jnp.max(s, axis=-1, keepdims=True)
            p = jnp.exp(s - m)
            p = p * pl.reciprocal(jnp.sum(p, axis=-1, keepdims=True), approx=True)
            ctx = jnp.einsum('bqk,bke->bqe', p, v,
                             preferred_element_type=jnp.float32)            # (B, S, DH)
            # per-head output projection: sublane-aligned (DH, D) slice of fused wo
            attn = attn + jnp.dot(ctx.reshape(B * S, DH), wo_l[lo:lo + DH, :],
                                  preferred_element_type=jnp.float32)
        x = x + attn

        # --- feed-forward sublayer --------------------------------------------
        xn2 = rms(x, ln2_ref[l])
        ff = jnp.maximum(jnp.dot(xn2, wi_ref[l],
                                 preferred_element_type=jnp.float32), 0.0)  # (BS, F)
        x = x + jnp.dot(ff, wof_ref[l], preferred_element_type=jnp.float32)

    # --- final RMSNorm + unmasked mean pool over the sequence dim --------------
    xf = rms(x, lnf_ref[...]).reshape(B, S, D)
    out_ref[...] = jnp.mean(xf, axis=1)     # (B, D)  == outputs.mean(dim=1)


# ----------------------------- wrapper ----------------------------------------
def t5_encoder_forward(hidden, mask_bias, pos_bias, params):
    def full(shape):
        return pl.BlockSpec(shape, lambda i, _s=shape: (0,) * len(_s))

    L = NUM_LAYERS
    return pl.pallas_call(
        t5_encoder_kernel,
        out_shape=jax.ShapeDtypeStruct((B, D), jnp.float32),
        grid=(1,),
        in_specs=[
            full((B, S, D)),      # hidden
            full((B, 1, S)),      # additive padding mask
            full((H, S, S)),      # relative-position bias
            full((L, 1, D)),      # ln1
            full((L, D, D)),      # wq  (fused over heads)
            full((L, D, D)),      # wk
            full((L, D, D)),      # wv
            full((L, D, D)),      # wo
            full((L, 1, D)),      # ln2
            full((L, D, F)),      # wi
            full((L, F, D)),      # wo_ff
            full((1, D)),         # ln_final
        ],
        out_specs=pl.BlockSpec((B, D), lambda i: (0, 0)),
        compiler_params=pltpu.CompilerParams(dimension_semantics=("arbitrary",)),
    )(hidden, mask_bias, pos_bias,
      params["ln1"], params["wq"], params["wk"], params["wv"], params["wo"],
      params["ln2"], params["wi"], params["wo_ff"], params["ln_final"])


# ----------------------------- glue (plain JAX) --------------------------------
def _relative_position_bucket(rel_pos):
    """T5 bidirectional relative-position bucketing."""
    nb = NUM_BUCKETS // 2
    ret = (rel_pos > 0).astype(jnp.int32) * nb
    n = jnp.abs(rel_pos)
    max_exact = nb // 2
    is_small = n < max_exact
    n_f = jnp.maximum(n, 1).astype(jnp.float32)
    val_if_large = max_exact + (
        jnp.log(n_f / max_exact) / np.log(MAX_DISTANCE / max_exact)
        * (nb - max_exact)).astype(jnp.int32)
    val_if_large = jnp.minimum(val_if_large, nb - 1)
    return ret + jnp.where(is_small, n, val_if_large)


def make_position_bias(rel_bias_table):
    qpos = jnp.arange(S)[:, None]
    kpos = jnp.arange(S)[None, :]
    buckets = _relative_position_bucket(kpos - qpos)          # (S, S)
    bias = rel_bias_table[buckets]                            # (S, S, H)
    return jnp.transpose(bias, (2, 0, 1)).astype(jnp.float32) # (H, S, S)


def init_params(key):
    def nrm(k, shape, scale=0.05):
        return jax.random.normal(k, shape, dtype=jnp.float32) * scale

    keys = jax.random.split(key, 11)
    L = NUM_LAYERS
    return {
        "embed": nrm(keys[0], (VOCAB, D), 1.0),
        "rel_bias": nrm(keys[1], (NUM_BUCKETS, H), 0.1),
        "ln1": 1.0 + nrm(keys[2], (L, 1, D), 0.1),
        "wq": nrm(keys[3], (L, D, D)),        # fused (D, H*DH) per layer
        "wk": nrm(keys[4], (L, D, D)),
        "wv": nrm(keys[5], (L, D, D)),
        "wo": nrm(keys[6], (L, D, D)),        # fused (H*DH, D) per layer
        "ln2": 1.0 + nrm(keys[7], (L, 1, D), 0.1),
        "wi": nrm(keys[8], (L, D, F)),
        "wo_ff": nrm(keys[9], (L, F, D)),
        "ln_final": 1.0 + nrm(keys[10], (1, D), 0.1),
    }


@jax.jit
def t5_prost_target_encoder(input_ids, attention_mask, params):
    hidden = jnp.take(params["embed"], input_ids, axis=0).astype(jnp.float32)   # (B,S,D)
    mask_bias = ((1.0 - attention_mask) * -1e9).reshape(B, 1, S).astype(jnp.float32)
    pos_bias = make_position_bias(params["rel_bias"])                           # (H,S,S)
    return t5_encoder_forward(hidden, mask_bias, pos_bias, params)              # (B, D)


# pure-JAX reference for sanity checking
def reference(input_ids, attention_mask, params):
    x = jnp.take(params["embed"], input_ids, axis=0)
    mask_bias = ((1.0 - attention_mask) * -1e9)[:, None, None, :]   # (B,1,1,S)
    pos_bias = make_position_bias(params["rel_bias"])[None]         # (1,H,S,S)

    def rms(h, w):
        return h * jax.lax.rsqrt(jnp.mean(h * h, -1, keepdims=True) + EPS) * w

    for l in range(NUM_LAYERS):
        xn = rms(x, params["ln1"][l])
        q = (xn @ params["wq"][l]).reshape(B, S, H, DH).transpose(0, 2, 1, 3)
        k = (xn @ params["wk"][l]).reshape(B, S, H, DH).transpose(0, 2, 1, 3)
        v = (xn @ params["wv"][l]).reshape(B, S, H, DH).transpose(0, 2, 1, 3)
        s = jnp.einsum("bhqe,bhke->bhqk", q, k) + pos_bias + mask_bias
        a = jax.nn.softmax(s, axis=-1)
        ctx = jnp.einsum("bhqk,bhke->bhqe", a, v).transpose(0, 2, 1, 3).reshape(B, S, D)
        x = x + ctx @ params["wo"][l]
        xn2 = rms(x, params["ln2"][l])
        x = x + jnp.maximum(xn2 @ params["wi"][l], 0.0) @ params["wo_ff"][l]
    return jnp.mean(rms(x, params["ln_final"]), axis=1)


if __name__ == "__main__":
    key = jax.random.PRNGKey(0)
    k_param, k_ids = jax.random.split(key)
    params = init_params(k_param)

    # "tokenized" protein sequences: ids + padding mask (lengths 8 and 5)
    input_ids = jax.random.randint(k_ids, (B, S), 0, VOCAB, dtype=jnp.int32)
    lengths = jnp.array([S, S - 3], dtype=jnp.int32)
    attention_mask = (jnp.arange(S)[None, :] < lengths[:, None]).astype(jnp.float32)

    out = jax.block_until_ready(t5_prost_target_encoder(input_ids, attention_mask, params))

    ref = reference(input_ids, attention_mask, params)
    np.testing.assert_allclose(np.asarray(out), np.asarray(ref), rtol=2e-3, atol=2e-4)

    assert out.shape == (B, D) and out.dtype == jnp.float32
    print("KERNEL_OK")
</pallas_src>

<mosaic_0001>
module attributes {stable_mosaic.version = 11 : i64} {
  func.func @t5_encoder_kernel(%arg0: i32, %arg1: memref<2x8x32xf32, #tpu.memory_space<vmem>>, %arg2: memref<2x1x8xf32, #tpu.memory_space<vmem>>, %arg3: memref<4x8x8xf32, #tpu.memory_space<vmem>>, %arg4: memref<2x1x32xf32, #tpu.memory_space<vmem>>, %arg5: memref<2x32x32xf32, #tpu.memory_space<vmem>>, %arg6: memref<2x32x32xf32, #tpu.memory_space<vmem>>, %arg7: memref<2x32x32xf32, #tpu.memory_space<vmem>>, %arg8: memref<2x32x32xf32, #tpu.memory_space<vmem>>, %arg9: memref<2x1x32xf32, #tpu.memory_space<vmem>>, %arg10: memref<2x32x64xf32, #tpu.memory_space<vmem>>, %arg11: memref<2x64x32xf32, #tpu.memory_space<vmem>>, %arg12: memref<1x32xf32, #tpu.memory_space<vmem>>, %arg13: memref<2x32xf32, #tpu.memory_space<vmem>>) attributes {dimension_semantics = [#tpu.dimension_semantics<arbitrary>], iteration_bounds = array<i64: 1>, scalar_prefetch = 0 : i64, scratch_operands = 0 : i64, tpu.core_type = #tpu.core_type<tc>, window_params = [{pipeline_mode = #tpu.pipeline_mode<synchronous>, transform_indices = @transform_0, window_bounds = array<i64: 2, 8, 32>}, {pipeline_mode = #tpu.pipeline_mode<synchronous>, transform_indices = @transform_1, window_bounds = array<i64: 2, 1, 8>}, {pipeline_mode = #tpu.pipeline_mode<synchronous>, transform_indices = @transform_2, window_bounds = array<i64: 4, 8, 8>}, {pipeline_mode = #tpu.pipeline_mode<synchronous>, transform_indices = @transform_3, window_bounds = array<i64: 2, 1, 32>}, {pipeline_mode = #tpu.pipeline_mode<synchronous>, transform_indices = @transform_4, window_bounds = array<i64: 2, 32, 32>}, {pipeline_mode = #tpu.pipeline_mode<synchronous>, transform_indices = @transform_5, window_bounds = array<i64: 2, 32, 32>}, {pipeline_mode = #tpu.pipeline_mode<synchronous>, transform_indices = @transform_6, window_bounds = array<i64: 2, 32, 32>}, {pipeline_mode = #tpu.pipeline_mode<synchronous>, transform_indices = @transform_7, window_bounds = array<i64: 2, 32, 32>}, {pipeline_mode = #tpu.pipeline_mode<synchronous>, transform_indices = @transform_8, window_bounds = array<i64: 2, 1, 32>}, {pipeline_mode = #tpu.pipeline_mode<synchronous>, transform_indices = @transform_9, window_bounds = array<i64: 2, 32, 64>}, {pipeline_mode = #tpu.pipeline_mode<synchronous>, transform_indices = @transform_10, window_bounds = array<i64: 2, 64, 32>}, {pipeline_mode = #tpu.pipeline_mode<synchronous>, transform_indices = @transform_11, window_bounds = array<i64: 1, 32>}, {pipeline_mode = #tpu.pipeline_mode<synchronous>, transform_indices = @transform_12, window_bounds = array<i64: 2, 32>}]} {
    %c0 = arith.constant 0 : index
    %c0_0 = arith.constant 0 : index
    %c0_1 = arith.constant 0 : index
    %0 = vector.load %arg1[%c0, %c0_0, %c0_1] : memref<2x8x32xf32, #tpu.memory_space<vmem>>, vector<2x8x32xf32>
    %1 = vector.shape_cast %0 : vector<2x8x32xf32> to vector<16x32xf32>
    %c0_2 = arith.constant 0 : index
    %c0_3 = arith.constant 0 : index
    %c0_4 = arith.constant 0 : index
    %2 = vector.load %arg2[%c0_2, %c0_3, %c0_4] : memref<2x1x8xf32, #tpu.memory_space<vmem>>, vector<2x1x8xf32>
    %c0_5 = arith.constant 0 : index
    %c0_6 = arith.constant 0 : index
    %c0_7 = arith.constant 0 : index
    %3 = vector.load %arg3[%c0_5, %c0_6, %c0_7] : memref<4x8x8xf32, #tpu.memory_space<vmem>>, vector<4x8x8xf32>
    %c0_8 = arith.constant 0 : index
    %c0_9 = arith.constant 0 : index
    %c0_10 = arith.constant 0 : index
    %4 = vector.load %arg4[%c0_8, %c0_9, %c0_10] : memref<2x1x32xf32, #tpu.memory_space<vmem>>, vector<1x1x32xf32>
    %5 = vector.shape_cast %4 : vector<1x1x32xf32> to vector<1x32xf32>
    %6 = arith.mulf %1, %1 : vector<16x32xf32>
    %cst = arith.constant dense<0.000000e+00> : vector<16xf32>
    %7 = vector.multi_reduction <add>, %6, %cst [1] : vector<16x32xf32> to vector<16xf32>
    %8 = vector.shape_cast %7 : vector<16xf32> to vector<16x1xf32>
    %cst_11 = arith.constant 3.200000e+01 : f32
    %9 = vector.broadcast %cst_11 : f32 to vector<16x1xf32>
    %10 = arith.divf %8, %9 : vector<16x1xf32>
    %cst_12 = arith.constant 9.99999997E-7 : f32
    %11 = vector.broadcast %cst_12 : f32 to vector<16x1xf32>
    %12 = arith.addf %10, %11 : vector<16x1xf32>
    %13 = math.rsqrt %12 : vector<16x1xf32>
    %14 = vector.broadcast %13 : vector<16x1xf32> to vector<16x32xf32>
    %15 = arith.mulf %1, %14 : vector<16x32xf32>
    %16 = vector.broadcast %5 : vector<1x32xf32> to vector<16x32xf32>
    %17 = arith.mulf %15, %16 : vector<16x32xf32>
    %c0_13 = arith.constant 0 : index
    %c0_14 = arith.constant 0 : index
    %c0_15 = arith.constant 0 : index
    %18 = vector.load %arg5[%c0_13, %c0_14, %c0_15] : memref<2x32x32xf32, #tpu.memory_space<vmem>>, vector<1x32x32xf32>
    %19 = vector.shape_cast %18 : vector<1x32x32xf32> to vector<32x32xf32>
    %cst_16 = arith.constant dense<0.000000e+00> : vector<16x32xf32>
    %20 = tpu.matmul %17, %19, %cst_16 {dimension_numbers = #tpu.dot_dimension_numbers<[1], [0], [0], [1], [0, 0, 1, 1], [], []>} : vector<16x32xf32>, vector<32x32xf32>, vector<16x32xf32> -> vector<16x32xf32>
    %c0_17 = arith.constant 0 : index
    %c0_18 = arith.constant 0 : index
    %c0_19 = arith.constant 0 : index
    %21 = vector.load %arg6[%c0_17, %c0_18, %c0_19] : memref<2x32x32xf32, #tpu.memory_space<vmem>>, vector<1x32x32xf32>
    %22 = vector.shape_cast %21 : vector<1x32x32xf32> to vector<32x32xf32>
    %cst_20 = arith.constant dense<0.000000e+00> : vector<16x32xf32>
    %23 = tpu.matmul %17, %22, %cst_20 {dimension_numbers = #tpu.dot_dimension_numbers<[1], [0], [0], [1], [0, 0, 1, 1], [], []>} : vector<16x32xf32>, vector<32x32xf32>, vector<16x32xf32> -> vector<16x32xf32>
    %c0_21 = arith.constant 0 : index
    %c0_22 = arith.constant 0 : index
    %c0_23 = arith.constant 0 : index
    %24 = vector.load %arg7[%c0_21, %c0_22, %c0_23] : memref<2x32x32xf32, #tpu.memory_space<vmem>>, vector<1x32x32xf32>
    %25 = vector.shape_cast %24 : vector<1x32x32xf32> to vector<32x32xf32>
    %cst_24 = arith.constant dense<0.000000e+00> : vector<16x32xf32>
    %26 = tpu.matmul %17, %25, %cst_24 {dimension_numbers = #tpu.dot_dimension_numbers<[1], [0], [0], [1], [0, 0, 1, 1], [], []>} : vector<16x32xf32>, vector<32x32xf32>, vector<16x32xf32> -> vector<16x32xf32>
    %27 = vector.shape_cast %20 : vector<16x32xf32> to vector<2x8x32xf32>
    %28 = vector.shape_cast %23 : vector<16x32xf32> to vector<2x8x32xf32>
    %29 = vector.shape_cast %26 : vector<16x32xf32> to vector<2x8x32xf32>
    %c0_25 = arith.constant 0 : index
    %c0_26 = arith.constant 0 : index
    %c0_27 = arith.constant 0 : index
    %30 = vector.load %arg8[%c0_25, %c0_26, %c0_27] : memref<2x32x32xf32, #tpu.memory_space<vmem>>, vector<1x32x32xf32>
    %31 = vector.shape_cast %30 : vector<1x32x32xf32> to vector<32x32xf32>
    %cst_28 = arith.constant 0.000000e+00 : f32
    %32 = vector.broadcast %cst_28 : f32 to vector<16x32xf32>
    %33 = vector.extract_strided_slice %27 {offsets = [0, 0, 0], sizes = [2, 8, 8], strides = [1, 1, 1]} : vector<2x8x32xf32> to vector<2x8x8xf32>
    %34 = vector.extract_strided_slice %28 {offsets = [0, 0, 0], sizes = [2, 8, 8], strides = [1, 1, 1]} : vector<2x8x32xf32> to vector<2x8x8xf32>
    %35 = vector.extract_strided_slice %29 {offsets = [0, 0, 0], sizes = [2, 8, 8], strides = [1, 1, 1]} : vector<2x8x32xf32> to vector<2x8x8xf32>
    "tpu.trace_start"() <{level = 10 : i32, message = "bqe,bke->bqk"}> : () -> ()
    %cst_29 = arith.constant dense<0.000000e+00> : vector<2x8x8xf32>
    %36 = tpu.matmul %33, %34, %cst_29 {dimension_numbers = #tpu.dot_dimension_numbers<[2], [2], [1], [1], [0, 0, 0, 1, 1, 1], [0], [0]>} : vector<2x8x8xf32>, vector<2x8x8xf32>, vector<2x8x8xf32> -> vector<2x8x8xf32>
    "tpu.trace_stop"() : () -> ()
    %37 = vector.extract_strided_slice %3 {offsets = [0, 0, 0], sizes = [1, 8, 8], strides = [1, 1, 1]} : vector<4x8x8xf32> to vector<1x8x8xf32>
    %38 = vector.shape_cast %37 : vector<1x8x8xf32> to vector<8x8xf32>
    %39 = vector.shape_cast %38 : vector<8x8xf32> to vector<1x8x8xf32>
    %40 = vector.broadcast %39 : vector<1x8x8xf32> to vector<2x8x8xf32>
    %41 = arith.addf %36, %40 : vector<2x8x8xf32>
    %42 = vector.broadcast %2 : vector<2x1x8xf32> to vector<2x8x8xf32>
    %43 = arith.addf %41, %42 : vector<2x8x8xf32>
    %cst_30 = arith.constant dense<0xFF800000> : vector<2x8xf32>
    %44 = vector.multi_reduction <maximumf>, %43, %cst_30 [2] : vector<2x8x8xf32> to vector<2x8xf32>
    %45 = vector.shape_cast %44 : vector<2x8xf32> to vector<2x8x1xf32>
    %46 = vector.broadcast %45 : vector<2x8x1xf32> to vector<2x8x8xf32>
    %47 = arith.subf %43, %46 : vector<2x8x8xf32>
    %48 = math.exp %47 : vector<2x8x8xf32>
    %cst_31 = arith.constant dense<0.000000e+00> : vector<2x8xf32>
    %49 = vector.multi_reduction <add>, %48, %cst_31 [2] : vector<2x8x8xf32> to vector<2x8xf32>
    %50 = vector.shape_cast %49 : vector<2x8xf32> to vector<2x8x1xf32>
    %51 = tpu.reciprocal %50 {approx = true} : vector<2x8x1xf32> -> vector<2x8x1xf32>
    %52 = vector.broadcast %51 : vector<2x8x1xf32> to vector<2x8x8xf32>
    %53 = arith.mulf %48, %52 : vector<2x8x8xf32>
    "tpu.trace_start"() <{level = 10 : i32, message = "bqk,bke->bqe"}> : () -> ()
    %cst_32 = arith.constant dense<0.000000e+00> : vector<2x8x8xf32>
    %54 = tpu.matmul %53, %35, %cst_32 {dimension_numbers = #tpu.dot_dimension_numbers<[2], [1], [1], [2], [0, 0, 0, 1, 1, 2], [0], [0]>} : vector<2x8x8xf32>, vector<2x8x8xf32>, vector<2x8x8xf32> -> vector<2x8x8xf32>
    "tpu.trace_stop"() : () -> ()
    %55 = vector.shape_cast %54 : vector<2x8x8xf32> to vector<16x8xf32>
    %56 = vector.extract_strided_slice %31 {offsets = [0, 0], sizes = [8, 32], strides = [1, 1]} : vector<32x32xf32> to vector<8x32xf32>
    %cst_33 = arith.constant dense<0.000000e+00> : vector<16x32xf32>
    %57 = tpu.matmul %55, %56, %cst_33 {dimension_numbers = #tpu.dot_dimension_numbers<[1], [0], [0], [1], [0, 0, 1, 1], [], []>} : vector<16x8xf32>, vector<8x32xf32>, vector<16x32xf32> -> vector<16x32xf32>
    %58 = arith.addf %32, %57 : vector<16x32xf32>
    %59 = vector.extract_strided_slice %27 {offsets = [0, 0, 8], sizes = [2, 8, 8], strides = [1, 1, 1]} : vector<2x8x32xf32> to vector<2x8x8xf32>
    %60 = vector.extract_strided_slice %28 {offsets = [0, 0, 8], sizes = [2, 8, 8], strides = [1, 1, 1]} : vector<2x8x32xf32> to vector<2x8x8xf32>
    %61 = vector.extract_strided_slice %29 {offsets = [0, 0, 8], sizes = [2, 8, 8], strides = [1, 1, 1]} : vector<2x8x32xf32> to vector<2x8x8xf32>
    "tpu.trace_start"() <{level = 10 : i32, message = "bqe,bke->bqk"}> : () -> ()
    %cst_34 = arith.constant dense<0.000000e+00> : vector<2x8x8xf32>
    %62 = tpu.matmul %59, %60, %cst_34 {dimension_numbers = #tpu.dot_dimension_numbers<[2], [2], [1], [1], [0, 0, 0, 1, 1, 1], [0], [0]>} : vector<2x8x8xf32>, vector<2x8x8xf32>, vector<2x8x8xf32> -> vector<2x8x8xf32>
    "tpu.trace_stop"() : () -> ()
    %63 = vector.extract_strided_slice %3 {offsets = [1, 0, 0], sizes = [1, 8, 8], strides = [1, 1, 1]} : vector<4x8x8xf32> to vector<1x8x8xf32>
    %64 = vector.shape_cast %63 : vector<1x8x8xf32> to vector<8x8xf32>
    %65 = vector.shape_cast %64 : vector<8x8xf32> to vector<1x8x8xf32>
    %66 = vector.broadcast %65 : vector<1x8x8xf32> to vector<2x8x8xf32>
    %67 = arith.addf %62, %66 : vector<2x8x8xf32>
    %68 = vector.broadcast %2 : vector<2x1x8xf32> to vector<2x8x8xf32>
    %69 = arith.addf %67, %68 : vector<2x8x8xf32>
    %cst_35 = arith.constant dense<0xFF800000> : vector<2x8xf32>
    %70 = vector.multi_reduction <maximumf>, %69, %cst_35 [2] : vector<2x8x8xf32> to vector<2x8xf32>
    %71 = vector.shape_cast %70 : vector<2x8xf32> to vector<2x8x1xf32>
    %72 = vector.broadcast %71 : vector<2x8x1xf32> to vector<2x8x8xf32>
    %73 = arith.subf %69, %72 : vector<2x8x8xf32>
    %74 = math.exp %73 : vector<2x8x8xf32>
    %cst_36 = arith.constant dense<0.000000e+00> : vector<2x8xf32>
    %75 = vector.multi_reduction <add>, %74, %cst_36 [2] : vector<2x8x8xf32> to vector<2x8xf32>
    %76 = vector.shape_cast %75 : vector<2x8xf32> to vector<2x8x1xf32>
    %77 = tpu.reciprocal %76 {approx = true} : vector<2x8x1xf32> -> vector<2x8x1xf32>
    %78 = vector.broadcast %77 : vector<2x8x1xf32> to vector<2x8x8xf32>
    %79 = arith.mulf %74, %78 : vector<2x8x8xf32>
    "tpu.trace_start"() <{level = 10 : i32, message = "bqk,bke->bqe"}> : () -> ()
    %cst_37 = arith.constant dense<0.000000e+00> : vector<2x8x8xf32>
    %80 = tpu.matmul %79, %61, %cst_37 {dimension_numbers = #tpu.dot_dimension_numbers<[2], [1], [1], [2], [0, 0, 0, 1, 1, 2], [0], [0]>} : vector<2x8x8xf32>, vector<2x8x8xf32>, vector<2x8x8xf32> -> vector<2x8x8xf32>
    "tpu.trace_stop"() : () -> ()
    %81 = vector.shape_cast %80 : vector<2x8x8xf32> to vector<16x8xf32>
    %82 = vector.extract_strided_slice %31 {offsets = [8, 0], sizes = [8, 32], strides = [1, 1]} : vector<32x32xf32> to vector<8x32xf32>
    %cst_38 = arith.constant dense<0.000000e+00> : vector<16x32xf32>
    %83 = tpu.matmul %81, %82, %cst_38 {dimension_numbers = #tpu.dot_dimension_numbers<[1], [0], [0], [1], [0, 0, 1, 1], [], []>} : vector<16x8xf32>, vector<8x32xf32>, vector<16x32xf32> -> vector<16x32xf32>
    %84 = arith.addf %58, %83 : vector<16x32xf32>
    %85 = vector.extract_strided_slice %27 {offsets = [0, 0, 16], sizes = [2, 8, 8], strides = [1, 1, 1]} : vector<2x8x32xf32> to vector<2x8x8xf32>
    %86 = vector.extract_strided_slice %28 {offsets = [0, 0, 16], sizes = [2, 8, 8], strides = [1, 1, 1]} : vector<2x8x32xf32> to vector<2x8x8xf32>
    %87 = vector.extract_strided_slice %29 {offsets = [0, 0, 16], sizes = [2, 8, 8], strides = [1, 1, 1]} : vector<2x8x32xf32> to vector<2x8x8xf32>
    "tpu.trace_start"() <{level = 10 : i32, message = "bqe,bke->bqk"}> : () -> ()
    %cst_39 = arith.constant dense<0.000000e+00> : vector<2x8x8xf32>
    %88 = tpu.matmul %85, %86, %cst_39 {dimension_numbers = #tpu.dot_dimension_numbers<[2], [2], [1], [1], [0, 0, 0, 1, 1, 1], [0], [0]>} : vector<2x8x8xf32>, vector<2x8x8xf32>, vector<2x8x8xf32> -> vector<2x8x8xf32>
    "tpu.trace_stop"() : () -> ()
    %89 = vector.extract_strided_slice %3 {offsets = [2, 0, 0], sizes = [1, 8, 8], strides = [1, 1, 1]} : vector<4x8x8xf32> to vector<1x8x8xf32>
    %90 = vector.shape_cast %89 : vector<1x8x8xf32> to vector<8x8xf32>
    %91 = vector.shape_cast %90 : vector<8x8xf32> to vector<1x8x8xf32>
    %92 = vector.broadcast %91 : vector<1x8x8xf32> to vector<2x8x8xf32>
    %93 = arith.addf %88, %92 : vector<2x8x8xf32>
    %94 = vector.broadcast %2 : vector<2x1x8xf32> to vector<2x8x8xf32>
    %95 = arith.addf %93, %94 : vector<2x8x8xf32>
    %cst_40 = arith.constant dense<0xFF800000> : vector<2x8xf32>
    %96 = vector.multi_reduction <maximumf>, %95, %cst_40 [2] : vector<2x8x8xf32> to vector<2x8xf32>
    %97 = vector.shape_cast %96 : vector<2x8xf32> to vector<2x8x1xf32>
    %98 = vector.broadcast %97 : vector<2x8x1xf32> to vector<2x8x8xf32>
    %99 = arith.subf %95, %98 : vector<2x8x8xf32>
    %100 = math.exp %99 : vector<2x8x8xf32>
    %cst_41 = arith.constant dense<0.000000e+00> : vector<2x8xf32>
    %101 = vector.multi_reduction <add>, %100, %cst_41 [2] : vector<2x8x8xf32> to vector<2x8xf32>
    %102 = vector.shape_cast %101 : vector<2x8xf32> to vector<2x8x1xf32>
    %103 = tpu.reciprocal %102 {approx = true} : vector<2x8x1xf32> -> vector<2x8x1xf32>
    %104 = vector.broadcast %103 : vector<2x8x1xf32> to vector<2x8x8xf32>
    %105 = arith.mulf %100, %104 : vector<2x8x8xf32>
    "tpu.trace_start"() <{level = 10 : i32, message = "bqk,bke->bqe"}> : () -> ()
    %cst_42 = arith.constant dense<0.000000e+00> : vector<2x8x8xf32>
    %106 = tpu.matmul %105, %87, %cst_42 {dimension_numbers = #tpu.dot_dimension_numbers<[2], [1], [1], [2], [0, 0, 0, 1, 1, 2], [0], [0]>} : vector<2x8x8xf32>, vector<2x8x8xf32>, vector<2x8x8xf32> -> vector<2x8x8xf32>
    "tpu.trace_stop"() : () -> ()
    %107 = vector.shape_cast %106 : vector<2x8x8xf32> to vector<16x8xf32>
    %108 = vector.extract_strided_slice %31 {offsets = [16, 0], sizes = [8, 32], strides = [1, 1]} : vector<32x32xf32> to vector<8x32xf32>
    %cst_43 = arith.constant dense<0.000000e+00> : vector<16x32xf32>
    %109 = tpu.matmul %107, %108, %cst_43 {dimension_numbers = #tpu.dot_dimension_numbers<[1], [0], [0], [1], [0, 0, 1, 1], [], []>} : vector<16x8xf32>, vector<8x32xf32>, vector<16x32xf32> -> vector<16x32xf32>
    %110 = arith.addf %84, %109 : vector<16x32xf32>
    %111 = vector.extract_strided_slice %27 {offsets = [0, 0, 24], sizes = [2, 8, 8], strides = [1, 1, 1]} : vector<2x8x32xf32> to vector<2x8x8xf32>
    %112 = vector.extract_strided_slice %28 {offsets = [0, 0, 24], sizes = [2, 8, 8], strides = [1, 1, 1]} : vector<2x8x32xf32> to vector<2x8x8xf32>
    %113 = vector.extract_strided_slice %29 {offsets = [0, 0, 24], sizes = [2, 8, 8], strides = [1, 1, 1]} : vector<2x8x32xf32> to vector<2x8x8xf32>
    "tpu.trace_start"() <{level = 10 : i32, message = "bqe,bke->bqk"}> : () -> ()
    %cst_44 = arith.constant dense<0.000000e+00> : vector<2x8x8xf32>
    %114 = tpu.matmul %111, %112, %cst_44 {dimension_numbers = #tpu.dot_dimension_numbers<[2], [2], [1], [1], [0, 0, 0, 1, 1, 1], [0], [0]>} : vector<2x8x8xf32>, vector<2x8x8xf32>, vector<2x8x8xf32> -> vector<2x8x8xf32>
    "tpu.trace_stop"() : () -> ()
    %115 = vector.extract_strided_slice %3 {offsets = [3, 0, 0], sizes = [1, 8, 8], strides = [1, 1, 1]} : vector<4x8x8xf32> to vector<1x8x8xf32>
    %116 = vector.shape_cast %115 : vector<1x8x8xf32> to vector<8x8xf32>
    %117 = vector.shape_cast %116 : vector<8x8xf32> to vector<1x8x8xf32>
    %118 = vector.broadcast %117 : vector<1x8x8xf32> to vector<2x8x8xf32>
    %119 = arith.addf %114, %118 : vector<2x8x8xf32>
    %120 = vector.broadcast %2 : vector<2x1x8xf32> to vector<2x8x8xf32>
    %121 = arith.addf %119, %120 : vector<2x8x8xf32>
    %cst_45 = arith.constant dense<0xFF800000> : vector<2x8xf32>
    %122 = vector.multi_reduction <maximumf>, %121, %cst_45 [2] : vector<2x8x8xf32> to vector<2x8xf32>
    %123 = vector.shape_cast %122 : vector<2x8xf32> to vector<2x8x1xf32>
    %124 = vector.broadcast %123 : vector<2x8x1xf32> to vector<2x8x8xf32>
    %125 = arith.subf %121, %124 : vector<2x8x8xf32>
    %126 = math.exp %125 : vector<2x8x8xf32>
    %cst_46 = arith.constant dense<0.000000e+00> : vector<2x8xf32>
    %127 = vector.multi_reduction <add>, %126, %cst_46 [2] : vector<2x8x8xf32> to vector<2x8xf32>
    %128 = vector.shape_cast %127 : vector<2x8xf32> to vector<2x8x1xf32>
    %129 = tpu.reciprocal %128 {approx = true} : vector<2x8x1xf32> -> vector<2x8x1xf32>
    %130 = vector.broadcast %129 : vector<2x8x1xf32> to vector<2x8x8xf32>
    %131 = arith.mulf %126, %130 : vector<2x8x8xf32>
    "tpu.trace_start"() <{level = 10 : i32, message = "bqk,bke->bqe"}> : () -> ()
    %cst_47 = arith.constant dense<0.000000e+00> : vector<2x8x8xf32>
    %132 = tpu.matmul %131, %113, %cst_47 {dimension_numbers = #tpu.dot_dimension_numbers<[2], [1], [1], [2], [0, 0, 0, 1, 1, 2], [0], [0]>} : vector<2x8x8xf32>, vector<2x8x8xf32>, vector<2x8x8xf32> -> vector<2x8x8xf32>
    "tpu.trace_stop"() : () -> ()
    %133 = vector.shape_cast %132 : vector<2x8x8xf32> to vector<16x8xf32>
    %134 = vector.extract_strided_slice %31 {offsets = [24, 0], sizes = [8, 32], strides = [1, 1]} : vector<32x32xf32> to vector<8x32xf32>
    %cst_48 = arith.constant dense<0.000000e+00> : vector<16x32xf32>
    %135 = tpu.matmul %133, %134, %cst_48 {dimension_numbers = #tpu.dot_dimension_numbers<[1], [0], [0], [1], [0, 0, 1, 1], [], []>} : vector<16x8xf32>, vector<8x32xf32>, vector<16x32xf32> -> vector<16x32xf32>
    %136 = arith.addf %110, %135 : vector<16x32xf32>
    %137 = arith.addf %1, %136 : vector<16x32xf32>
    %c0_49 = arith.constant 0 : index
    %c0_50 = arith.constant 0 : index
    %c0_51 = arith.constant 0 : index
    %138 = vector.load %arg9[%c0_49, %c0_50, %c0_51] : memref<2x1x32xf32, #tpu.memory_space<vmem>>, vector<1x1x32xf32>
    %139 = vector.shape_cast %138 : vector<1x1x32xf32> to vector<1x32xf32>
    %140 = arith.mulf %137, %137 : vector<16x32xf32>
    %cst_52 = arith.constant dense<0.000000e+00> : vector<16xf32>
    %141 = vector.multi_reduction <add>, %140, %cst_52 [1] : vector<16x32xf32> to vector<16xf32>
    %142 = vector.shape_cast %141 : vector<16xf32> to vector<16x1xf32>
    %cst_53 = arith.constant 3.200000e+01 : f32
    %143 = vector.broadcast %cst_53 : f32 to vector<16x1xf32>
    %144 = arith.divf %142, %143 : vector<16x1xf32>
    %cst_54 = arith.constant 9.99999997E-7 : f32
    %145 = vector.broadcast %cst_54 : f32 to vector<16x1xf32>
    %146 = arith.addf %144, %145 : vector<16x1xf32>
    %147 = math.rsqrt %146 : vector<16x1xf32>
    %148 = vector.broadcast %147 : vector<16x1xf32> to vector<16x32xf32>
    %149 = arith.mulf %137, %148 : vector<16x32xf32>
    %150 = vector.broadcast %139 : vector<1x32xf32> to vector<16x32xf32>
    %151 = arith.mulf %149, %150 : vector<16x32xf32>
    %c0_55 = arith.constant 0 : index
    %c0_56 = arith.constant 0 : index
    %c0_57 = arith.constant 0 : index
    %152 = vector.load %arg10[%c0_55, %c0_56, %c0_57] : memref<2x32x64xf32, #tpu.memory_space<vmem>>, vector<1x32x64xf32>
    %153 = vector.shape_cast %152 : vector<1x32x64xf32> to vector<32x64xf32>
    %cst_58 = arith.constant dense<0.000000e+00> : vector<16x64xf32>
    %154 = tpu.matmul %151, %153, %cst_58 {dimension_numbers = #tpu.dot_dimension_numbers<[1], [0], [0], [1], [0, 0, 1, 1], [], []>} : vector<16x32xf32>, vector<32x64xf32>, vector<16x64xf32> -> vector<16x64xf32>
    %cst_59 = arith.constant 0.000000e+00 : f32
    %155 = vector.broadcast %cst_59 : f32 to vector<16x64xf32>
    %156 = arith.maximumf %154, %155 : vector<16x64xf32>
    %c0_60 = arith.constant 0 : index
    %c0_61 = arith.constant 0 : index
    %c0_62 = arith.constant 0 : index
    %157 = vector.load %arg11[%c0_60, %c0_61, %c0_62] : memref<2x64x32xf32, #tpu.memory_space<vmem>>, vector<1x64x32xf32>
    %158 = vector.shape_cast %157 : vector<1x64x32xf32> to vector<64x32xf32>
    %cst_63 = arith.constant dense<0.000000e+00> : vector<16x32xf32>
    %159 = tpu.matmul %156, %158, %cst_63 {dimension_numbers = #tpu.dot_dimension_numbers<[1], [0], [0], [1], [0, 0, 1, 1], [], []>} : vector<16x64xf32>, vector<64x32xf32>, vector<16x32xf32> -> vector<16x32xf32>
    %160 = arith.addf %137, %159 : vector<16x32xf32>
    %c1 = arith.constant 1 : index
    %c0_64 = arith.constant 0 : index
    %c0_65 = arith.constant 0 : index
    %161 = vector.load %arg4[%c1, %c0_64, %c0_65] : memref<2x1x32xf32, #tpu.memory_space<vmem>>, vector<1x1x32xf32>
    %162 = vector.shape_cast %161 : vector<1x1x32xf32> to vector<1x32xf32>
    %163 = arith.mulf %160, %160 : vector<16x32xf32>
    %cst_66 = arith.constant dense<0.000000e+00> : vector<16xf32>
    %164 = vector.multi_reduction <add>, %163, %cst_66 [1] : vector<16x32xf32> to vector<16xf32>
    %165 = vector.shape_cast %164 : vector<16xf32> to vector<16x1xf32>
    %cst_67 = arith.constant 3.200000e+01 : f32
    %166 = vector.broadcast %cst_67 : f32 to vector<16x1xf32>
    %167 = arith.divf %165, %166 : vector<16x1xf32>
    %cst_68 = arith.constant 9.99999997E-7 : f32
    %168 = vector.broadcast %cst_68 : f32 to vector<16x1xf32>
    %169 = arith.addf %167, %168 : vector<16x1xf32>
    %170 = math.rsqrt %169 : vector<16x1xf32>
    %171 = vector.broadcast %170 : vector<16x1xf32> to vector<16x32xf32>
    %172 = arith.mulf %160, %171 : vector<16x32xf32>
    %173 = vector.broadcast %162 : vector<1x32xf32> to vector<16x32xf32>
    %174 = arith.mulf %172, %173 : vector<16x32xf32>
    %c1_69 = arith.constant 1 : index
    %c0_70 = arith.constant 0 : index
    %c0_71 = arith.constant 0 : index
    %175 = vector.load %arg5[%c1_69, %c0_70, %c0_71] : memref<2x32x32xf32, #tpu.memory_space<vmem>>, vector<1x32x32xf32>
    %176 = vector.shape_cast %175 : vector<1x32x32xf32> to vector<32x32xf32>
    %cst_72 = arith.constant dense<0.000000e+00> : vector<16x32xf32>
    %177 = tpu.matmul %174, %176, %cst_72 {dimension_numbers = #tpu.dot_dimension_numbers<[1], [0], [0], [1], [0, 0, 1, 1], [], []>} : vector<16x32xf32>, vector<32x32xf32>, vector<16x32xf32> -> vector<16x32xf32>
    %c1_73 = arith.constant 1 : index
    %c0_74 = arith.constant 0 : index
    %c0_75 = arith.constant 0 : index
    %178 = vector.load %arg6[%c1_73, %c0_74, %c0_75] : memref<2x32x32xf32, #tpu.memory_space<vmem>>, vector<1x32x32xf32>
    %179 = vector.shape_cast %178 : vector<1x32x32xf32> to vector<32x32xf32>
    %cst_76 = arith.constant dense<0.000000e+00> : vector<16x32xf32>
    %180 = tpu.matmul %174, %179, %cst_76 {dimension_numbers = #tpu.dot_dimension_numbers<[1], [0], [0], [1], [0, 0, 1, 1], [], []>} : vector<16x32xf32>, vector<32x32xf32>, vector<16x32xf32> -> vector<16x32xf32>
    %c1_77 = arith.constant 1 : index
    %c0_78 = arith.constant 0 : index
    %c0_79 = arith.constant 0 : index
    %181 = vector.load %arg7[%c1_77, %c0_78, %c0_79] : memref<2x32x32xf32, #tpu.memory_space<vmem>>, vector<1x32x32xf32>
    %182 = vector.shape_cast %181 : vector<1x32x32xf32> to vector<32x32xf32>
    %cst_80 = arith.constant dense<0.000000e+00> : vector<16x32xf32>
    %183 = tpu.matmul %174, %182, %cst_80 {dimension_numbers = #tpu.dot_dimension_numbers<[1], [0], [0], [1], [0, 0, 1, 1], [], []>} : vector<16x32xf32>, vector<32x32xf32>, vector<16x32xf32> -> vector<16x32xf32>
    %184 = vector.shape_cast %177 : vector<16x32xf32> to vector<2x8x32xf32>
    %185 = vector.shape_cast %180 : vector<16x32xf32> to vector<2x8x32xf32>
    %186 = vector.shape_cast %183 : vector<16x32xf32> to vector<2x8x32xf32>
    %c1_81 = arith.constant 1 : index
    %c0_82 = arith.constant 0 : index
    %c0_83 = arith.constant 0 : index
    %187 = vector.load %arg8[%c1_81, %c0_82, %c0_83] : memref<2x32x32xf32, #tpu.memory_space<vmem>>, vector<1x32x32xf32>
    %188 = vector.shape_cast %187 : vector<1x32x32xf32> to vector<32x32xf32>
    %cst_84 = arith.constant 0.000000e+00 : f32
    %189 = vector.broadcast %cst_84 : f32 to vector<16x32xf32>
    %190 = vector.extract_strided_slice %184 {offsets = [0, 0, 0], sizes = [2, 8, 8], strides = [1, 1, 1]} : vector<2x8x32xf32> to vector<2x8x8xf32>
    %191 = vector.extract_strided_slice %185 {offsets = [0, 0, 0], sizes = [2, 8, 8], strides = [1, 1, 1]} : vector<2x8x32xf32> to vector<2x8x8xf32>
    %192 = vector.extract_strided_slice %186 {offsets = [0, 0, 0], sizes = [2, 8, 8], strides = [1, 1, 1]} : vector<2x8x32xf32> to vector<2x8x8xf32>
    "tpu.trace_start"() <{level = 10 : i32, message = "bqe,bke->bqk"}> : () -> ()
    %cst_85 = arith.constant dense<0.000000e+00> : vector<2x8x8xf32>
    %193 = tpu.matmul %190, %191, %cst_85 {dimension_numbers = #tpu.dot_dimension_numbers<[2], [2], [1], [1], [0, 0, 0, 1, 1, 1], [0], [0]>} : vector<2x8x8xf32>, vector<2x8x8xf32>, vector<2x8x8xf32> -> vector<2x8x8xf32>
    "tpu.trace_stop"() : () -> ()
    %194 = vector.extract_strided_slice %3 {offsets = [0, 0, 0], sizes = [1, 8, 8], strides = [1, 1, 1]} : vector<4x8x8xf32> to vector<1x8x8xf32>
    %195 = vector.shape_cast %194 : vector<1x8x8xf32> to vector<8x8xf32>
    %196 = vector.shape_cast %195 : vector<8x8xf32> to vector<1x8x8xf32>
    %197 = vector.broadcast %196 : vector<1x8x8xf32> to vector<2x8x8xf32>
    %198 = arith.addf %193, %197 : vector<2x8x8xf32>
    %199 = vector.broadcast %2 : vector<2x1x8xf32> to vector<2x8x8xf32>
    %200 = arith.addf %198, %199 : vector<2x8x8xf32>
    %cst_86 = arith.constant dense<0xFF800000> : vector<2x8xf32>
    %201 = vector.multi_reduction <maximumf>, %200, %cst_86 [2] : vector<2x8x8xf32> to vector<2x8xf32>
    %202 = vector.shape_cast %201 : vector<2x8xf32> to vector<2x8x1xf32>
    %203 = vector.broadcast %202 : vector<2x8x1xf32> to vector<2x8x8xf32>
    %204 = arith.subf %200, %203 : vector<2x8x8xf32>
    %205 = math.exp %204 : vector<2x8x8xf32>
    %cst_87 = arith.constant dense<0.000000e+00> : vector<2x8xf32>
    %206 = vector.multi_reduction <add>, %205, %cst_87 [2] : vector<2x8x8xf32> to vector<2x8xf32>
    %207 = vector.shape_cast %206 : vector<2x8xf32> to vector<2x8x1xf32>
    %208 = tpu.reciprocal %207 {approx = true} : vector<2x8x1xf32> -> vector<2x8x1xf32>
    %209 = vector.broadcast %208 : vector<2x8x1xf32> to vector<2x8x8xf32>
    %210 = arith.mulf %205, %209 : vector<2x8x8xf32>
    "tpu.trace_start"() <{level = 10 : i32, message = "bqk,bke->bqe"}> : () -> ()
    %cst_88 = arith.constant dense<0.000000e+00> : vector<2x8x8xf32>
    %211 = tpu.matmul %210, %192, %cst_88 {dimension_numbers = #tpu.dot_dimension_numbers<[2], [1], [1], [2], [0, 0, 0, 1, 1, 2], [0], [0]>} : vector<2x8x8xf32>, vector<2x8x8xf32>, vector<2x8x8xf32> -> vector<2x8x8xf32>
    "tpu.trace_stop"() : () -> ()
    %212 = vector.shape_cast %211 : vector<2x8x8xf32> to vector<16x8xf32>
    %213 = vector.extract_strided_slice %188 {offsets = [0, 0], sizes = [8, 32], strides = [1, 1]} : vector<32x32xf32> to vector<8x32xf32>
    %cst_89 = arith.constant dense<0.000000e+00> : vector<16x32xf32>
    %214 = tpu.matmul %212, %213, %cst_89 {dimension_numbers = #tpu.dot_dimension_numbers<[1], [0], [0], [1], [0, 0, 1, 1], [], []>} : vector<16x8xf32>, vector<8x32xf32>, vector<16x32xf32> -> vector<16x32xf32>
    %215 = arith.addf %189, %214 : vector<16x32xf32>
    %216 = vector.extract_strided_slice %184 {offsets = [0, 0, 8], sizes = [2, 8, 8], strides = [1, 1, 1]} : vector<2x8x32xf32> to vector<2x8x8xf32>
    %217 = vector.extract_strided_slice %185 {offsets = [0, 0, 8], sizes = [2, 8, 8], strides = [1, 1, 1]} : vector<2x8x32xf32> to vector<2x8x8xf32>
    %218 = vector.extract_strided_slice %186 {offsets = [0, 0, 8], sizes = [2, 8, 8], strides = [1, 1, 1]} : vector<2x8x32xf32> to vector<2x8x8xf32>
    "tpu.trace_start"() <{level = 10 : i32, message = "bqe,bke->bqk"}> : () -> ()
    %cst_90 = arith.constant dense<0.000000e+00> : vector<2x8x8xf32>
    %219 = tpu.matmul %216, %217, %cst_90 {dimension_numbers = #tpu.dot_dimension_numbers<[2], [2], [1], [1], [0, 0, 0, 1, 1, 1], [0], [0]>} : vector<2x8x8xf32>, vector<2x8x8xf32>, vector<2x8x8xf32> -> vector<2x8x8xf32>
    "tpu.trace_stop"() : () -> ()
    %220 = vector.extract_strided_slice %3 {offsets = [1, 0, 0], sizes = [1, 8, 8], strides = [1, 1, 1]} : vector<4x8x8xf32> to vector<1x8x8xf32>
    %221 = vector.shape_cast %220 : vector<1x8x8xf32> to vector<8x8xf32>
    %222 = vector.shape_cast %221 : vector<8x8xf32> to vector<1x8x8xf32>
    %223 = vector.broadcast %222 : vector<1x8x8xf32> to vector<2x8x8xf32>
    %224 = arith.addf %219, %223 : vector<2x8x8xf32>
    %225 = vector.broadcast %2 : vector<2x1x8xf32> to vector<2x8x8xf32>
    %226 = arith.addf %224, %225 : vector<2x8x8xf32>
    %cst_91 = arith.constant dense<0xFF800000> : vector<2x8xf32>
    %227 = vector.multi_reduction <maximumf>, %226, %cst_91 [2] : vector<2x8x8xf32> to vector<2x8xf32>
    %228 = vector.shape_cast %227 : vector<2x8xf32> to vector<2x8x1xf32>
    %229 = vector.broadcast %228 : vector<2x8x1xf32> to vector<2x8x8xf32>
    %230 = arith.subf %226, %229 : vector<2x8x8xf32>
    %231 = math.exp %230 : vector<2x8x8xf32>
    %cst_92 = arith.constant dense<0.000000e+00> : vector<2x8xf32>
    %232 = vector.multi_reduction <add>, %231, %cst_92 [2] : vector<2x8x8xf32> to vector<2x8xf32>
    %233 = vector.shape_cast %232 : vector<2x8xf32> to vector<2x8x1xf32>
    %234 = tpu.reciprocal %233 {approx = true} : vector<2x8x1xf32> -> vector<2x8x1xf32>
    %235 = vector.broadcast %234 : vector<2x8x1xf32> to vector<2x8x8xf32>
    %236 = arith.mulf %231, %235 : vector<2x8x8xf32>
    "tpu.trace_start"() <{level = 10 : i32, message = "bqk,bke->bqe"}> : () -> ()
    %cst_93 = arith.constant dense<0.000000e+00> : vector<2x8x8xf32>
    %237 = tpu.matmul %236, %218, %cst_93 {dimension_numbers = #tpu.dot_dimension_numbers<[2], [1], [1], [2], [0, 0, 0, 1, 1, 2], [0], [0]>} : vector<2x8x8xf32>, vector<2x8x8xf32>, vector<2x8x8xf32> -> vector<2x8x8xf32>
    "tpu.trace_stop"() : () -> ()
    %238 = vector.shape_cast %237 : vector<2x8x8xf32> to vector<16x8xf32>
    %239 = vector.extract_strided_slice %188 {offsets = [8, 0], sizes = [8, 32], strides = [1, 1]} : vector<32x32xf32> to vector<8x32xf32>
    %cst_94 = arith.constant dense<0.000000e+00> : vector<16x32xf32>
    %240 = tpu.matmul %238, %239, %cst_94 {dimension_numbers = #tpu.dot_dimension_numbers<[1], [0], [0], [1], [0, 0, 1, 1], [], []>} : vector<16x8xf32>, vector<8x32xf32>, vector<16x32xf32> -> vector<16x32xf32>
    %241 = arith.addf %215, %240 : vector<16x32xf32>
    %242 = vector.extract_strided_slice %184 {offsets = [0, 0, 16], sizes = [2, 8, 8], strides = [1, 1, 1]} : vector<2x8x32xf32> to vector<2x8x8xf32>
    %243 = vector.extract_strided_slice %185 {offsets = [0, 0, 16], sizes = [2, 8, 8], strides = [1, 1, 1]} : vector<2x8x32xf32> to vector<2x8x8xf32>
    %244 = vector.extract_strided_slice %186 {offsets = [0, 0, 16], sizes = [2, 8, 8], strides = [1, 1, 1]} : vector<2x8x32xf32> to vector<2x8x8xf32>
    "tpu.trace_start"() <{level = 10 : i32, message = "bqe,bke->bqk"}> : () -> ()
    %cst_95 = arith.constant dense<0.000000e+00> : vector<2x8x8xf32>
    %245 = tpu.matmul %242, %243, %cst_95 {dimension_numbers = #tpu.dot_dimension_numbers<[2], [2], [1], [1], [0, 0, 0, 1, 1, 1], [0], [0]>} : vector<2x8x8xf32>, vector<2x8x8xf32>, vector<2x8x8xf32> -> vector<2x8x8xf32>
    "tpu.trace_stop"() : () -> ()
    %246 = vector.extract_strided_slice %3 {offsets = [2, 0, 0], sizes = [1, 8, 8], strides = [1, 1, 1]} : vector<4x8x8xf32> to vector<1x8x8xf32>
    %247 = vector.shape_cast %246 : vector<1x8x8xf32> to vector<8x8xf32>
    %248 = vector.shape_cast %247 : vector<8x8xf32> to vector<1x8x8xf32>
    %249 = vector.broadcast %248 : vector<1x8x8xf32> to vector<2x8x8xf32>
    %250 = arith.addf %245, %249 : vector<2x8x8xf32>
    %251 = vector.broadcast %2 : vector<2x1x8xf32> to vector<2x8x8xf32>
    %252 = arith.addf %250, %251 : vector<2x8x8xf32>
    %cst_96 = arith.constant dense<0xFF800000> : vector<2x8xf32>
    %253 = vector.multi_reduction <maximumf>, %252, %cst_96 [2] : vector<2x8x8xf32> to vector<2x8xf32>
    %254 = vector.shape_cast %253 : vector<2x8xf32> to vector<2x8x1xf32>
    %255 = vector.broadcast %254 : vector<2x8x1xf32> to vector<2x8x8xf32>
    %256 = arith.subf %252, %255 : vector<2x8x8xf32>
    %257 = math.exp %256 : vector<2x8x8xf32>
    %cst_97 = arith.constant dense<0.000000e+00> : vector<2x8xf32>
    %258 = vector.multi_reduction <add>, %257, %cst_97 [2] : vector<2x8x8xf32> to vector<2x8xf32>
    %259 = vector.shape_cast %258 : vector<2x8xf32> to vector<2x8x1xf32>
    %260 = tpu.reciprocal %259 {approx = true} : vector<2x8x1xf32> -> vector<2x8x1xf32>
    %261 = vector.broadcast %260 : vector<2x8x1xf32> to vector<2x8x8xf32>
    %262 = arith.mulf %257, %261 : vector<2x8x8xf32>
    "tpu.trace_start"() <{level = 10 : i32, message = "bqk,bke->bqe"}> : () -> ()
    %cst_98 = arith.constant dense<0.000000e+00> : vector<2x8x8xf32>
    %263 = tpu.matmul %262, %244, %cst_98 {dimension_numbers = #tpu.dot_dimension_numbers<[2], [1], [1], [2], [0, 0, 0, 1, 1, 2], [0], [0]>} : vector<2x8x8xf32>, vector<2x8x8xf32>, vector<2x8x8xf32> -> vector<2x8x8xf32>
    "tpu.trace_stop"() : () -> ()
    %264 = vector.shape_cast %263 : vector<2x8x8xf32> to vector<16x8xf32>
    %265 = vector.extract_strided_slice %188 {offsets = [16, 0], sizes = [8, 32], strides = [1, 1]} : vector<32x32xf32> to vector<8x32xf32>
    %cst_99 = arith.constant dense<0.000000e+00> : vector<16x32xf32>
    %266 = tpu.matmul %264, %265, %cst_99 {dimension_numbers = #tpu.dot_dimension_numbers<[1], [0], [0], [1], [0, 0, 1, 1], [], []>} : vector<16x8xf32>, vector<8x32xf32>, vector<16x32xf32> -> vector<16x32xf32>
    %267 = arith.addf %241, %266 : vector<16x32xf32>
    %268 = vector.extract_strided_slice %184 {offsets = [0, 0, 24], sizes = [2, 8, 8], strides = [1, 1, 1]} : vector<2x8x32xf32> to vector<2x8x8xf32>
    %269 = vector.extract_strided_slice %185 {offsets = [0, 0, 24], sizes = [2, 8, 8], strides = [1, 1, 1]} : vector<2x8x32xf32> to vector<2x8x8xf32>
    %270 = vector.extract_strided_slice %186 {offsets = [0, 0, 24], sizes = [2, 8, 8], strides = [1, 1, 1]} : vector<2x8x32xf32> to vector<2x8x8xf32>
    "tpu.trace_start"() <{level = 10 : i32, message = "bqe,bke->bqk"}> : () -> ()
    %cst_100 = arith.constant dense<0.000000e+00> : vector<2x8x8xf32>
    %271 = tpu.matmul %268, %269, %cst_100 {dimension_numbers = #tpu.dot_dimension_numbers<[2], [2], [1], [1], [0, 0, 0, 1, 1, 1], [0], [0]>} : vector<2x8x8xf32>, vector<2x8x8xf32>, vector<2x8x8xf32> -> vector<2x8x8xf32>
    "tpu.trace_stop"() : () -> ()
    %272 = vector.extract_strided_slice %3 {offsets = [3, 0, 0], sizes = [1, 8, 8], strides = [1, 1, 1]} : vector<4x8x8xf32> to vector<1x8x8xf32>
    %273 = vector.shape_cast %272 : vector<1x8x8xf32> to vector<8x8xf32>
    %274 = vector.shape_cast %273 : vector<8x8xf32> to vector<1x8x8xf32>
    %275 = vector.broadcast %274 : vector<1x8x8xf32> to vector<2x8x8xf32>
    %276 = arith.addf %271, %275 : vector<2x8x8xf32>
    %277 = vector.broadcast %2 : vector<2x1x8xf32> to vector<2x8x8xf32>
    %278 = arith.addf %276, %277 : vector<2x8x8xf32>
    %cst_101 = arith.constant dense<0xFF800000> : vector<2x8xf32>
    %279 = vector.multi_reduction <maximumf>, %278, %cst_101 [2] : vector<2x8x8xf32> to vector<2x8xf32>
    %280 = vector.shape_cast %279 : vector<2x8xf32> to vector<2x8x1xf32>
    %281 = vector.broadcast %280 : vector<2x8x1xf32> to vector<2x8x8xf32>
    %282 = arith.subf %278, %281 : vector<2x8x8xf32>
    %283 = math.exp %282 : vector<2x8x8xf32>
    %cst_102 = arith.constant dense<0.000000e+00> : vector<2x8xf32>
    %284 = vector.multi_reduction <add>, %283, %cst_102 [2] : vector<2x8x8xf32> to vector<2x8xf32>
    %285 = vector.shape_cast %284 : vector<2x8xf32> to vector<2x8x1xf32>
    %286 = tpu.reciprocal %285 {approx = true} : vector<2x8x1xf32> -> vector<2x8x1xf32>
    %287 = vector.broadcast %286 : vector<2x8x1xf32> to vector<2x8x8xf32>
    %288 = arith.mulf %283, %287 : vector<2x8x8xf32>
    "tpu.trace_start"() <{level = 10 : i32, message = "bqk,bke->bqe"}> : () -> ()
    %cst_103 = arith.constant dense<0.000000e+00> : vector<2x8x8xf32>
    %289 = tpu.matmul %288, %270, %cst_103 {dimension_numbers = #tpu.dot_dimension_numbers<[2], [1], [1], [2], [0, 0, 0, 1, 1, 2], [0], [0]>} : vector<2x8x8xf32>, vector<2x8x8xf32>, vector<2x8x8xf32> -> vector<2x8x8xf32>
    "tpu.trace_stop"() : () -> ()
    %290 = vector.shape_cast %289 : vector<2x8x8xf32> to vector<16x8xf32>
    %291 = vector.extract_strided_slice %188 {offsets = [24, 0], sizes = [8, 32], strides = [1, 1]} : vector<32x32xf32> to vector<8x32xf32>
    %cst_104 = arith.constant dense<0.000000e+00> : vector<16x32xf32>
    %292 = tpu.matmul %290, %291, %cst_104 {dimension_numbers = #tpu.dot_dimension_numbers<[1], [0], [0], [1], [0, 0, 1, 1], [], []>} : vector<16x8xf32>, vector<8x32xf32>, vector<16x32xf32> -> vector<16x32xf32>
    %293 = arith.addf %267, %292 : vector<16x32xf32>
    %294 = arith.addf %160, %293 : vector<16x32xf32>
    %c1_105 = arith.constant 1 : index
    %c0_106 = arith.constant 0 : index
    %c0_107 = arith.constant 0 : index
    %295 = vector.load %arg9[%c1_105, %c0_106, %c0_107] : memref<2x1x32xf32, #tpu.memory_space<vmem>>, vector<1x1x32xf32>
    %296 = vector.shape_cast %295 : vector<1x1x32xf32> to vector<1x32xf32>
    %297 = arith.mulf %294, %294 : vector<16x32xf32>
    %cst_108 = arith.constant dense<0.000000e+00> : vector<16xf32>
    %298 = vector.multi_reduction <add>, %297, %cst_108 [1] : vector<16x32xf32> to vector<16xf32>
    %299 = vector.shape_cast %298 : vector<16xf32> to vector<16x1xf32>
    %cst_109 = arith.constant 3.200000e+01 : f32
    %300 = vector.broadcast %cst_109 : f32 to vector<16x1xf32>
    %301 = arith.divf %299, %300 : vector<16x1xf32>
    %cst_110 = arith.constant 9.99999997E-7 : f32
    %302 = vector.broadcast %cst_110 : f32 to vector<16x1xf32>
    %303 = arith.addf %301, %302 : vector<16x1xf32>
    %304 = math.rsqrt %303 : vector<16x1xf32>
    %305 = vector.broadcast %304 : vector<16x1xf32> to vector<16x32xf32>
    %306 = arith.mulf %294, %305 : vector<16x32xf32>
    %307 = vector.broadcast %296 : vector<1x32xf32> to vector<16x32xf32>
    %308 = arith.mulf %306, %307 : vector<16x32xf32>
    %c1_111 = arith.constant 1 : index
    %c0_112 = arith.constant 0 : index
    %c0_113 = arith.constant 0 : index
    %309 = vector.load %arg10[%c1_111, %c0_112, %c0_113] : memref<2x32x64xf32, #tpu.memory_space<vmem>>, vector<1x32x64xf32>
    %310 = vector.shape_cast %309 : vector<1x32x64xf32> to vector<32x64xf32>
    %cst_114 = arith.constant dense<0.000000e+00> : vector<16x64xf32>
    %311 = tpu.matmul %308, %310, %cst_114 {dimension_numbers = #tpu.dot_dimension_numbers<[1], [0], [0], [1], [0, 0, 1, 1], [], []>} : vector<16x32xf32>, vector<32x64xf32>, vector<16x64xf32> -> vector<16x64xf32>
    %cst_115 = arith.constant 0.000000e+00 : f32
    %312 = vector.broadcast %cst_115 : f32 to vector<16x64xf32>
    %313 = arith.maximumf %311, %312 : vector<16x64xf32>
    %c1_116 = arith.constant 1 : index
    %c0_117 = arith.constant 0 : index
    %c0_118 = arith.constant 0 : index
    %314 = vector.load %arg11[%c1_116, %c0_117, %c0_118] : memref<2x64x32xf32, #tpu.memory_space<vmem>>, vector<1x64x32xf32>
    %315 = vector.shape_cast %314 : vector<1x64x32xf32> to vector<64x32xf32>
    %cst_119 = arith.constant dense<0.000000e+00> : vector<16x32xf32>
    %316 = tpu.matmul %313, %315, %cst_119 {dimension_numbers = #tpu.dot_dimension_numbers<[1], [0], [0], [1], [0, 0, 1, 1], [], []>} : vector<16x64xf32>, vector<64x32xf32>, vector<16x32xf32> -> vector<16x32xf32>
    %317 = arith.addf %294, %316 : vector<16x32xf32>
    %c0_120 = arith.constant 0 : index
    %c0_121 = arith.constant 0 : index
    %318 = vector.load %arg12[%c0_120, %c0_121] : memref<1x32xf32, #tpu.memory_space<vmem>>, vector<1x32xf32>
    %319 = arith.mulf %317, %317 : vector<16x32xf32>
    %cst_122 = arith.constant dense<0.000000e+00> : vector<16xf32>
    %320 = vector.multi_reduction <add>, %319, %cst_122 [1] : vector<16x32xf32> to vector<16xf32>
    %321 = vector.shape_cast %320 : vector<16xf32> to vector<16x1xf32>
    %cst_123 = arith.constant 3.200000e+01 : f32
    %322 = vector.broadcast %cst_123 : f32 to vector<16x1xf32>
    %323 = arith.divf %321, %322 : vector<16x1xf32>
    %cst_124 = arith.constant 9.99999997E-7 : f32
    %324 = vector.broadcast %cst_124 : f32 to vector<16x1xf32>
    %325 = arith.addf %323, %324 : vector<16x1xf32>
    %326 = math.rsqrt %325 : vector<16x1xf32>
    %327 = vector.broadcast %326 : vector<16x1xf32> to vector<16x32xf32>
    %328 = arith.mulf %317, %327 : vector<16x32xf32>
    %329 = vector.broadcast %318 : vector<1x32xf32> to vector<16x32xf32>
    %330 = arith.mulf %328, %329 : vector<16x32xf32>
    %331 = vector.shape_cast %330 : vector<16x32xf32> to vector<2x8x32xf32>
    %cst_125 = arith.constant dense<0.000000e+00> : vector<2x32xf32>
    %332 = vector.multi_reduction <add>, %331, %cst_125 [1] : vector<2x8x32xf32> to vector<2x32xf32>
    %cst_126 = arith.constant 8.000000e+00 : f32
    %333 = vector.broadcast %cst_126 : f32 to vector<2x32xf32>
    %334 = arith.divf %332, %333 : vector<2x32xf32>
    %c0_127 = arith.constant 0 : index
    %c0_128 = arith.constant 0 : index
    %335 = vector.load %arg13[%c0_127, %c0_128] : memref<2x32xf32, #tpu.memory_space<vmem>>, vector<2x32xf32>
    tpu.vector_store %arg13[%c0_127, %c0_128], %334 {strides = array<i32>} : memref<2x32xf32, #tpu.memory_space<vmem>>, vector<2x32xf32>,
    return
  }
  func.func @transform_0(%arg0: i32) -> (i32, i32, i32) {
    %c0_i32 = arith.constant 0 : i32
    %c0_i32_0 = arith.constant 0 : i32
    %c0_i32_1 = arith.constant 0 : i32
    %c0_i32_2 = arith.constant 0 : i32
    return %c0_i32, %c0_i32_0, %c0_i32_1 : i32, i32, i32
  }
  func.func @transform_1(%arg0: i32) -> (i32, i32, i32) {
    %c0_i32 = arith.constant 0 : i32
    %c0_i32_0 = arith.constant 0 : i32
    %c0_i32_1 = arith.constant 0 : i32
    %c0_i32_2 = arith.constant 0 : i32
    return %c0_i32, %c0_i32_0, %c0_i32_1 : i32, i32, i32
  }
  func.func @transform_2(%arg0: i32) -> (i32, i32, i32) {
    %c0_i32 = arith.constant 0 : i32
    %c0_i32_0 = arith.constant 0 : i32
    %c0_i32_1 = arith.constant 0 : i32
    %c0_i32_2 = arith.constant 0 : i32
    return %c0_i32, %c0_i32_0, %c0_i32_1 : i32, i32, i32
  }
  func.func @transform_3(%arg0: i32) -> (i32, i32, i32) {
    %c0_i32 = arith.constant 0 : i32
    %c0_i32_0 = arith.constant 0 : i32
    %c0_i32_1 = arith.constant 0 : i32
    %c0_i32_2 = arith.constant 0 : i32
    return %c0_i32, %c0_i32_0, %c0_i32_1 : i32, i32, i32
  }
  func.func @transform_4(%arg0: i32) -> (i32, i32, i32) {
    %c0_i32 = arith.constant 0 : i32
    %c0_i32_0 = arith.constant 0 : i32
    %c0_i32_1 = arith.constant 0 : i32
    %c0_i32_2 = arith.constant 0 : i32
    return %c0_i32, %c0_i32_0, %c0_i32_1 : i32, i32, i32
  }
  func.func @transform_5(%arg0: i32) -> (i32, i32, i32) {
    %c0_i32 = arith.constant 0 : i32
    %c0_i32_0 = arith.constant 0 : i32
    %c0_i32_1 = arith.constant 0 : i32
    %c0_i32_2 = arith.constant 0 : i32
    return %c0_i32, %c0_i32_0, %c0_i32_1 : i32, i32, i32
  }
  func.func @transform_6(%arg0: i32) -> (i32, i32, i32) {
    %c0_i32 = arith.constant 0 : i32
    %c0_i32_0 = arith.constant 0 : i32
    %c0_i32_1 = arith.constant 0 : i32
    %c0_i32_2 = arith.constant 0 : i32
    return %c0_i32, %c0_i32_0, %c0_i32_1 : i32, i32, i32
  }
  func.func @transform_7(%arg0: i32) -> (i32, i32, i32) {
    %c0_i32 = arith.constant 0 : i32
    %c0_i32_0 = arith.constant 0 : i32
    %c0_i32_1 = arith.constant 0 : i32
    %c0_i32_2 = arith.constant 0 : i32
    return %c0_i32, %c0_i32_0, %c0_i32_1 : i32, i32, i32
  }
  func.func @transform_8(%arg0: i32) -> (i32, i32, i32) {
    %c0_i32 = arith.constant 0 : i32
    %c0_i32_0 = arith.constant 0 : i32
    %c0_i32_1 = arith.constant 0 : i32
    %c0_i32_2 = arith.constant 0 : i32
    return %c0_i32, %c0_i32_0, %c0_i32_1 : i32, i32, i32
  }
  func.func @transform_9(%arg0: i32) -> (i32, i32, i32) {
    %c0_i32 = arith.constant 0 : i32
    %c0_i32_0 = arith.constant 0 : i32
    %c0_i32_1 = arith.constant 0 : i32
    %c0_i32_2 = arith.constant 0 : i32
    return %c0_i32, %c0_i32_0, %c0_i32_1 : i32, i32, i32
  }
  func.func @transform_10(%arg0: i32) -> (i32, i32, i32) {
    %c0_i32 = arith.constant 0 : i32
    %c0_i32_0 = arith.constant 0 : i32
    %c0_i32_1 = arith.constant 0 : i32
    %c0_i32_2 = arith.constant 0 : i32
    return %c0_i32, %c0_i32_0, %c0_i32_1 : i32, i32, i32
  }
  func.func @transform_11(%arg0: i32) -> (i32, i32) {
    %c0_i32 = arith.constant 0 : i32
    %c0_i32_0 = arith.constant 0 : i32
    %c0_i32_1 = arith.constant 0 : i32
    return %c0_i32, %c0_i32_0 : i32, i32
  }
  func.func @transform_12(%arg0: i32) -> (i32, i32) {
    %c0_i32 = arith.constant 0 : i32
    %c0_i32_0 = arith.constant 0 : i32
    %c0_i32_1 = arith.constant 0 : i32
    return %c0_i32, %c0_i32_0 : i32, i32
  }
}

</mosaic_0001>

<llo_original>
// kernel: t5_prost_target_encoder.1
$region0: #{t5_prost_target_encoder.1}
  #allocation0 [shape = 'u32[]', space=smem, size = 0x4, offset = 0x4, fixed_abs, tag = 'smem constant byte address 0x4 - core index']
  #allocation1 [shape = 'u32[144,128]{1,0:T(1,128)}', space=vmem, size = 0x12000, scoped, tag = 'internal scratch']
  %s0 = inlined_call_operand.vmem [shape: f32[2,8,32], index: 0, kind: input, shape index: {}]
  %s1 = inlined_call_operand.vmem [shape: f32[2,1,8], index: 1, kind: input, shape index: {}]
  %s2 = inlined_call_operand.vmem [shape: f32[4,8,8], index: 2, kind: input, shape index: {}]
  %s3 = inlined_call_operand.vmem [shape: f32[2,1,32], index: 3, kind: input, shape index: {}]
  %s4 = inlined_call_operand.vmem [shape: f32[2,32,32], index: 4, kind: input, shape index: {}]
  %s5 = inlined_call_operand.vmem [shape: f32[2,32,32], index: 5, kind: input, shape index: {}]
  %s6 = inlined_call_operand.vmem [shape: f32[2,32,32], index: 6, kind: input, shape index: {}]
  %s7 = inlined_call_operand.vmem [shape: f32[2,32,32], index: 7, kind: input, shape index: {}]
  %s8 = inlined_call_operand.vmem [shape: f32[2,1,32], index: 8, kind: input, shape index: {}]
  %s9 = inlined_call_operand.vmem [shape: f32[2,32,64], index: 9, kind: input, shape index: {}]
  %s10 = inlined_call_operand.vmem [shape: f32[2,64,32], index: 10, kind: input, shape index: {}]
  %s11 = inlined_call_operand.vmem [shape: f32[1,32], index: 11, kind: input, shape index: {}]
  %s12 = inlined_call_operand.hbm [shape: f32[2,32], index: 12, kind: output, shape index: {}]
  %s13 = sld [smem:[#allocation0]]
  $region58: #{t5_prost_target_encoder.1} parent=0
    _
  %s15 = ssub.s32 1, %s13
  %s16 = scalar_select 0, %s15, %s13
  $region1: #{t5_prost_target_encoder.1} parent=0
    #allocation2 [shape = 'u8[1024]{0}', space=vmem, size = 0x400, scoped, tag = 'output window, operand 0, single buffered']
    #allocation3 [shape = 's32[1]{0}', space=sflag, size = 0x4, scoped, tag = 'scoped memory for t5_prost_target_encoder.1']
    %17 = vsyncpa [#allocation3], 0
    // Predicated region
    $region2: #{t5_prost_target_encoder.1} parent=1 // pred_check
      _
    $region3: #{t5_prost_target_encoder.1} parent=1 // pred_check_branch
      %19 = sbr.rel (0) target = $region5
    $region4: #{t5_prost_target_encoder.1} parent=1 // pred_region
      _
    $region5: #{t5_prost_target_encoder.1} parent=1 // pred_fallthru
      _
    // Predicated region
    $region6: #{t5_prost_target_encoder.1} parent=1 // pred_check
      _
    $region7: #{t5_prost_target_encoder.1} parent=1 // pred_check_branch
      %21 = sbr.rel (0) target = $region9
    $region8: #{t5_prost_target_encoder.1} parent=1 // pred_region
      _
    $region9: #{t5_prost_target_encoder.1} parent=1 // pred_fallthru
      _
    // Predicated region
    $region10: #{t5_prost_target_encoder.1} parent=1 // pred_check
      _
    $region11: #{t5_prost_target_encoder.1} parent=1 // pred_check_branch
      %23 = sbr.rel (0) target = $region13
    $region12: #{t5_prost_target_encoder.1} parent=1 // pred_region
      _
    $region13: #{t5_prost_target_encoder.1} parent=1 // pred_fallthru
      _
    // Predicated region
    $region14: #{t5_prost_target_encoder.1} parent=1 // pred_check
      _
    $region15: #{t5_prost_target_encoder.1} parent=1 // pred_check_branch
      %25 = sbr.rel (0) target = $region17
    $region16: #{t5_prost_target_encoder.1} parent=1 // pred_region
      _
    $region17: #{t5_prost_target_encoder.1} parent=1 // pred_fallthru
      _
    // Predicated region
    $region18: #{t5_prost_target_encoder.1} parent=1 // pred_check
      _
    $region19: #{t5_prost_target_encoder.1} parent=1 // pred_check_branch
      %27 = sbr.rel (0) target = $region21
    $region20: #{t5_prost_target_encoder.1} parent=1 // pred_region
      _
    $region21: #{t5_prost_target_encoder.1} parent=1 // pred_fallthru
      _
    // Predicated region
    $region22: #{t5_prost_target_encoder.1} parent=1 // pred_check
      _
    $region23: #{t5_prost_target_encoder.1} parent=1 // pred_check_branch
      %29 = sbr.rel (0) target = $region25
    $region24: #{t5_prost_target_encoder.1} parent=1 // pred_region
      _
    $region25: #{t5_prost_target_encoder.1} parent=1 // pred_fallthru
      _
    // Predicated region
    $region26: #{t5_prost_target_encoder.1} parent=1 // pred_check
      _
    $region27: #{t5_prost_target_encoder.1} parent=1 // pred_check_branch
      %31 = sbr.rel (0) target = $region29
    $region28: #{t5_prost_target_encoder.1} parent=1 // pred_region
      _
    $region29: #{t5_prost_target_encoder.1} parent=1 // pred_fallthru
      _
    // Predicated region
    $region30: #{t5_prost_target_encoder.1} parent=1 // pred_check
      _
    $region31: #{t5_prost_target_encoder.1} parent=1 // pred_check_branch
      %33 = sbr.rel (0) target = $region33
    $region32: #{t5_prost_target_encoder.1} parent=1 // pred_region
      _
    $region33: #{t5_prost_target_encoder.1} parent=1 // pred_fallthru
      _
    // Predicated region
    $region34: #{t5_prost_target_encoder.1} parent=1 // pred_check
      _
    $region35: #{t5_prost_target_encoder.1} parent=1 // pred_check_branch
      %35 = sbr.rel (0) target = $region37
    $region36: #{t5_prost_target_encoder.1} parent=1 // pred_region
      _
    $region37: #{t5_prost_target_encoder.1} parent=1 // pred_fallthru
      _
    // Predicated region
    $region38: #{t5_prost_target_encoder.1} parent=1 // pred_check
      _
    $region39: #{t5_prost_target_encoder.1} parent=1 // pred_check_branch
      %37 = sbr.rel (0) target = $region41
    $region40: #{t5_prost_target_encoder.1} parent=1 // pred_region
      _
    $region41: #{t5_prost_target_encoder.1} parent=1 // pred_fallthru
      _
    // Predicated region
    $region42: #{t5_prost_target_encoder.1} parent=1 // pred_check
      _
    $region43: #{t5_prost_target_encoder.1} parent=1 // pred_check_branch
      %39 = sbr.rel (0) target = $region45
    $region44: #{t5_prost_target_encoder.1} parent=1 // pred_region
      _
    $region45: #{t5_prost_target_encoder.1} parent=1 // pred_fallthru
      _
    // Predicated region
    $region46: #{t5_prost_target_encoder.1} parent=1 // pred_check
      _
    $region47: #{t5_prost_target_encoder.1} parent=1 // pred_check_branch
      %41 = sbr.rel (0) target = $region49
    $region48: #{t5_prost_target_encoder.1} parent=1 // pred_region
      _
    $region49: #{t5_prost_target_encoder.1} parent=1 // pred_fallthru
      _
    %v42 = vld [vmem:[%s0] sm:$0xff]
    %v43 = vld [vmem:[%s0 + $0x8] sm:$0xff]
    %v44 = vld [vmem:[%s1] sm:$0x1]
    %v45 = vld [vmem:[%s1 + $0x1] sm:$0x1]
    %v46 = vld [vmem:[%s2] sm:$0xff]
    %v47 = vld [vmem:[%s2 + $0x8] sm:$0xff]
    %v48 = vld [vmem:[%s2 + $0x10] sm:$0xff]
    %v49 = vld [vmem:[%s2 + $0x18] sm:$0xff]
    %v50 = vld [vmem:[%s3] sm:$0x1]
    %v51 = vmul.f32 %v42, %v42
    %v52 = vmul.f32 %v43, %v43
    %vm53 = vcmask 261120
    %v54 = vsel %vm53, %v51, 0.0
    %55 = vadd.xlane.f32.xlu0 %v54
    %v56 = vpop.xlane.xlu0 %55
    %v57 = vsel %vm53, %v52, 0.0
    %58 = vadd.xlane.f32.xlu0 %v57
    %v59 = vpop.xlane.xlu0 %58
    %v60 = vrcp.pop 32.0
    %v61 = vmul.f32 %v56, %v60
    %v62 = vmul.f32 %v59, %v60
    %v63 = vadd.f32 %v61, 1e-06
    %v64 = vadd.f32 %v62, 1e-06
    %v65 = vrsqrt.pop %v63
    %v66 = vrsqrt.pop %v64
    %v67 = vmul.f32 %v42, %v65
    %v68 = vmul.f32 %v43, %v66
    %v70 = vlaneseq
    %v71 = vshrl.u32 %v70, 7
    %v72 = vsub.s32 0, %v71
    %v73 = vrot.slane %v50, %v72
    %v75 = vmul.f32 %v67, %v73
    %v76 = vmul.f32 %v68, %v73
    %v77 = vld [vmem:[%s4] sm:$0xff]
    %v78 = vld [vmem:[%s4 + $0x8] sm:$0xff]
    %v79 = vld [vmem:[%s4 + $0x10] sm:$0xff]
    %v80 = vld [vmem:[%s4 + $0x18] sm:$0xff]
    %v82 = vsel %vm53, %v75, 0
    %v85 = vsel %vm53, %v76, 0
    %87 = vmatprep.subr.mxu0 0.0
    %88 = vmatpush1.msra.mxu0 %v77
    %89 = vmatprep.subr.mxu0 0.0
    %90 = vmatpush1.msra.mxu0 %v78
    %91 = vmatprep.subr.mxu0 0.0
    %92 = vmatpush1.msra.mxu0 %v79
    %93 = vmatprep.subr.mxu0 0.0
    %94 = vmatpush1.msra.mxu0 %v80
    %95 = vmatprep.subr.mxu0 0.0
    %96 = vmatpush1.msra.mxu0 0.0
    %97 = vmatprep.subr.mxu0 0.0
    %98 = vmatpush1.msra.mxu0 0.0
    %99 = vmatprep.subr.mxu0 0.0
    %100 = vmatpush1.msra.mxu0 0.0
    %101 = vmatprep.subr.mxu0 0.0
    %102 = vmatpush1.msra.mxu0 0.0
    %103 = vmatprep.subr.mxu0 0.0
    %104 = vmatpush1.msra.mxu0 0.0
    %105 = vmatprep.subr.mxu0 0.0
    %106 = vmatpush1.msra.mxu0 0.0
    %107 = vmatprep.subr.mxu0 0.0
    %108 = vmatpush1.msra.mxu0 0.0
    %109 = vmatprep.subr.mxu0 0.0
    %110 = vmatpush1.msra.mxu0 0.0
    %111 = vmatprep.subr.mxu0 0.0
    %112 = vmatpush1.msra.mxu0 0.0
    %113 = vmatprep.subr.mxu0 0.0
    %114 = vmatpush1.msra.mxu0 0.0
    %115 = vmatprep.subr.mxu0 0.0
    %116 = vmatpush1.msra.mxu0 0.0
    %117 = vmatprep.subr.mxu0 0.0
    %118 = vmatpush1.msra.mxu0 0.0
    %119 = vmatprep.subr.mxu0 0.0
    %120 = vmatpush1.msra.mxu0 0.0
    %121 = vmatprep.subr.mxu0 0.0
    %122 = vmatpush1.msra.mxu0 0.0
    %123 = vmatprep.subr.mxu0 0.0
    %124 = vmatpush1.msra.mxu0 0.0
    %125 = vmatprep.subr.mxu0 0.0
    %126 = vmatpush1.msra.mxu0 0.0
    %127 = vmatprep.subr.mxu0 0.0
    %128 = vmatpush1.msra.mxu0 0.0
    %129 = vmatprep.subr.mxu0 0.0
    %130 = vmatpush1.msra.mxu0 0.0
    %131 = vmatprep.subr.mxu0 0.0
    %132 = vmatpush1.msra.mxu0 0.0
    %133 = vmatprep.subr.mxu0 0.0
    %134 = vmatpush1.msra.mxu0 0.0
    %135 = vmatprep.subr.mxu0 0.0
    %136 = vmatpush1.msra.mxu0 0.0
    %137 = vmatprep.subr.mxu0 0.0
    %138 = vmatpush1.msra.mxu0 0.0
    %139 = vmatprep.subr.mxu0 0.0
    %140 = vmatpush1.msra.mxu0 0.0
    %141 = vmatprep.subr.mxu0 0.0
    %142 = vmatpush1.msra.mxu0 0.0
    %143 = vmatprep.subr.mxu0 0.0
    %144 = vmatpush1.msra.mxu0 0.0
    %145 = vmatprep.subr.mxu0 0.0
    %146 = vmatpush1.msra.mxu0 0.0
    %147 = vmatprep.subr.mxu0 0.0
    %148 = vmatpush1.msra.mxu0 0.0
    %149 = vmatprep.subr.mxu0 0.0
    %150 = vmatpush1.msra.mxu0 0.0
    %151 = vmatprep.mubr.f32.mxu0 0.0
    %152 = vmatmul.mubr.f32.gmra.mrb[0].mxu0 %v82
    %v153 = vpop.f32.mrb[0].mxu0
    %v154 = vadd.f32 0.0, %v153
    %v155 = vpop.f32.mrb[0].mxu0
    %156 = vmatprep.mubr.f32.mxu0 0.0
    %157 = vmatmul.mubr.f32.gmra.mrb[0].mxu0 %v85
    %v158 = vpop.f32.mrb[0].mxu0
    %v159 = vadd.f32 0.0, %v158
    %v160 = vpop.f32.mrb[0].mxu0
    %161 = vdwg.mxu0
    %v162 = vld [vmem:[%s5] sm:$0xff]
    %v163 = vld [vmem:[%s5 + $0x8] sm:$0xff]
    %v164 = vld [vmem:[%s5 + $0x10] sm:$0xff]
    %v165 = vld [vmem:[%s5 + $0x18] sm:$0xff]
    %166 = vmatprep.subr.mxu0 0.0
    %167 = vmatpush1.msra.mxu0 %v162
    %168 = vmatprep.subr.mxu0 0.0
    %169 = vmatpush1.msra.mxu0 %v163
    %170 = vmatprep.subr.mxu0 0.0
    %171 = vmatpush1.msra.mxu0 %v164
    %172 = vmatprep.subr.mxu0 0.0
    %173 = vmatpush1.msra.mxu0 %v165
    %174 = vmatprep.subr.mxu0 0.0
    %175 = vmatpush1.msra.mxu0 0.0
    %176 = vmatprep.subr.mxu0 0.0
    %177 = vmatpush1.msra.mxu0 0.0
    %178 = vmatprep.subr.mxu0 0.0
    %179 = vmatpush1.msra.mxu0 0.0
    %180 = vmatprep.subr.mxu0 0.0
    %181 = vmatpush1.msra.mxu0 0.0
    %182 = vmatprep.subr.mxu0 0.0
    %183 = vmatpush1.msra.mxu0 0.0
    %184 = vmatprep.subr.mxu0 0.0
    %185 = vmatpush1.msra.mxu0 0.0
    %186 = vmatprep.subr.mxu0 0.0
    %187 = vmatpush1.msra.mxu0 0.0
    %188 = vmatprep.subr.mxu0 0.0
    %189 = vmatpush1.msra.mxu0 0.0
    %190 = vmatprep.subr.mxu0 0.0
    %191 = vmatpush1.msra.mxu0 0.0
    %192 = vmatprep.subr.mxu0 0.0
    %193 = vmatpush1.msra.mxu0 0.0
    %194 = vmatprep.subr.mxu0 0.0
    %195 = vmatpush1.msra.mxu0 0.0
    %196 = vmatprep.subr.mxu0 0.0
    %197 = vmatpush1.msra.mxu0 0.0
    %198 = vmatprep.subr.mxu0 0.0
    %199 = vmatpush1.msra.mxu0 0.0
    %200 = vmatprep.subr.mxu0 0.0
    %201 = vmatpush1.msra.mxu0 0.0
    %202 = vmatprep.subr.mxu0 0.0
    %203 = vmatpush1.msra.mxu0 0.0
    %204 = vmatprep.subr.mxu0 0.0
    %205 = vmatpush1.msra.mxu0 0.0
    %206 = vmatprep.subr.mxu0 0.0
    %207 = vmatpush1.msra.mxu0 0.0
    %208 = vmatprep.subr.mxu0 0.0
    %209 = vmatpush1.msra.mxu0 0.0
    %210 = vmatprep.subr.mxu0 0.0
    %211 = vmatpush1.msra.mxu0 0.0
    %212 = vmatprep.subr.mxu0 0.0
    %213 = vmatpush1.msra.mxu0 0.0
    %214 = vmatprep.subr.mxu0 0.0
    %215 = vmatpush1.msra.mxu0 0.0
    %216 = vmatprep.subr.mxu0 0.0
    %217 = vmatpush1.msra.mxu0 0.0
    %218 = vmatprep.subr.mxu0 0.0
    %219 = vmatpush1.msra.mxu0 0.0
    %220 = vmatprep.subr.mxu0 0.0
    %221 = vmatpush1.msra.mxu0 0.0
    %222 = vmatprep.subr.mxu0 0.0
    %223 = vmatpush1.msra.mxu0 0.0
    %224 = vmatprep.subr.mxu0 0.0
    %225 = vmatpush1.msra.mxu0 0.0
    %226 = vmatprep.subr.mxu0 0.0
    %227 = vmatpush1.msra.mxu0 0.0
    %228 = vmatprep.subr.mxu0 0.0
    %229 = vmatpush1.msra.mxu0 0.0
    %230 = vmatprep.mubr.f32.mxu0 0.0
    %231 = vmatmul.mubr.f32.gmra.mrb[0].mxu0 %v82
    %v232 = vpop.f32.mrb[0].mxu0
    %v233 = vadd.f32 0.0, %v232
    %v234 = vpop.f32.mrb[0].mxu0
    %235 = vmatprep.mubr.f32.mxu0 0.0
    %236 = vmatmul.mubr.f32.gmra.mrb[0].mxu0 %v85
    %v237 = vpop.f32.mrb[0].mxu0
    %v238 = vadd.f32 0.0, %v237
    %v239 = vpop.f32.mrb[0].mxu0
    %240 = vdwg.mxu0
    %v241 = vld [vmem:[%s6] sm:$0xff]
    %v242 = vld [vmem:[%s6 + $0x8] sm:$0xff]
    %v243 = vld [vmem:[%s6 + $0x10] sm:$0xff]
    %v244 = vld [vmem:[%s6 + $0x18] sm:$0xff]
    %245 = vmatprep.subr.mxu0 0.0
    %246 = vmatpush1.msra.mxu0 %v241
    %247 = vmatprep.subr.mxu0 0.0
    %248 = vmatpush1.msra.mxu0 %v242
    %249 = vmatprep.subr.mxu0 0.0
    %250 = vmatpush1.msra.mxu0 %v243
    %251 = vmatprep.subr.mxu0 0.0
    %252 = vmatpush1.msra.mxu0 %v244
    %253 = vmatprep.subr.mxu0 0.0
    %254 = vmatpush1.msra.mxu0 0.0
    %255 = vmatprep.subr.mxu0 0.0
    %256 = vmatpush1.msra.mxu0 0.0
    %257 = vmatprep.subr.mxu0 0.0
    %258 = vmatpush1.msra.mxu0 0.0
    %259 = vmatprep.subr.mxu0 0.0
    %260 = vmatpush1.msra.mxu0 0.0
    %261 = vmatprep.subr.mxu0 0.0
    %262 = vmatpush1.msra.mxu0 0.0
    %263 = vmatprep.subr.mxu0 0.0
    %264 = vmatpush1.msra.mxu0 0.0
    %265 = vmatprep.subr.mxu0 0.0
    %266 = vmatpush1.msra.mxu0 0.0
    %267 = vmatprep.subr.mxu0 0.0
    %268 = vmatpush1.msra.mxu0 0.0
    %269 = vmatprep.subr.mxu0 0.0
    %270 = vmatpush1.msra.mxu0 0.0
    %271 = vmatprep.subr.mxu0 0.0
    %272 = vmatpush1.msra.mxu0 0.0
    %273 = vmatprep.subr.mxu0 0.0
    %274 = vmatpush1.msra.mxu0 0.0
    %275 = vmatprep.subr.mxu0 0.0
    %276 = vmatpush1.msra.mxu0 0.0
    %277 = vmatprep.subr.mxu0 0.0
    %278 = vmatpush1.msra.mxu0 0.0
    %279 = vmatprep.subr.mxu0 0.0
    %280 = vmatpush1.msra.mxu0 0.0
    %281 = vmatprep.subr.mxu0 0.0
    %282 = vmatpush1.msra.mxu0 0.0
    %283 = vmatprep.subr.mxu0 0.0
    %284 = vmatpush1.msra.mxu0 0.0
    %285 = vmatprep.subr.mxu0 0.0
    %286 = vmatpush1.msra.mxu0 0.0
    %287 = vmatprep.subr.mxu0 0.0
    %288 = vmatpush1.msra.mxu0 0.0
    %289 = vmatprep.subr.mxu0 0.0
    %290 = vmatpush1.msra.mxu0 0.0
    %291 = vmatprep.subr.mxu0 0.0
    %292 = vmatpush1.msra.mxu0 0.0
    %293 = vmatprep.subr.mxu0 0.0
    %294 = vmatpush1.msra.mxu0 0.0
    %295 = vmatprep.subr.mxu0 0.0
    %296 = vmatpush1.msra.mxu0 0.0
    %297 = vmatprep.subr.mxu0 0.0
    %298 = vmatpush1.msra.mxu0 0.0
    %299 = vmatprep.subr.mxu0 0.0
    %300 = vmatpush1.msra.mxu0 0.0
    %301 = vmatprep.subr.mxu0 0.0
    %302 = vmatpush1.msra.mxu0 0.0
    %303 = vmatprep.subr.mxu0 0.0
    %304 = vmatpush1.msra.mxu0 0.0
    %305 = vmatprep.subr.mxu0 0.0
    %306 = vmatpush1.msra.mxu0 0.0
    %307 = vmatprep.subr.mxu0 0.0
    %308 = vmatpush1.msra.mxu0 0.0
    %309 = vmatprep.mubr.f32.mxu0 0.0
    %310 = vmatmul.mubr.f32.gmra.mrb[0].mxu0 %v82
    %v311 = vpop.f32.mrb[0].mxu0
    %v312 = vadd.f32 0.0, %v311
    %v313 = vpop.f32.mrb[0].mxu0
    %314 = vmatprep.mubr.f32.mxu0 0.0
    %315 = vmatmul.mubr.f32.gmra.mrb[0].mxu0 %v85
    %v316 = vpop.f32.mrb[0].mxu0
    %v317 = vadd.f32 0.0, %v316
    %v318 = vpop.f32.mrb[0].mxu0
    %319 = vdwg.mxu0
    %v320 = vld [vmem:[%s7] sm:$0xff]
    %v321 = vld [vmem:[%s7 + $0x8] sm:$0xff]
    %v322 = vld [vmem:[%s7 + $0x10] sm:$0xff]
    %v323 = vld [vmem:[%s7 + $0x18] sm:$0xff]
    %vm324 = vcmask 64512
    %v326 = vsel %vm324, %v154, 0
    %v329 = vsel %vm324, %v233, 0
    %331 = vmatprep.subr.mxu0 0.0
    %332 = vmatpush1.xpose.msra.mxu0 %v329
    %333 = vmatprep.subr.mxu0 0.0
    %334 = vmatpush1.xpose.msra.mxu0 0.0
    %335 = vmatprep.subr.mxu0 0.0
    %336 = vmatpush1.xpose.msra.mxu0 0.0
    %337 = vmatprep.subr.mxu0 0.0
    %338 = vmatpush1.xpose.msra.mxu0 0.0
    %339 = vmatprep.subr.mxu0 0.0
    %340 = vmatpush1.xpose.msra.mxu0 0.0
    %341 = vmatprep.subr.mxu0 0.0
    %342 = vmatpush1.xpose.msra.mxu0 0.0
    %343 = vmatprep.subr.mxu0 0.0
    %344 = vmatpush1.xpose.msra.mxu0 0.0
    %345 = vmatprep.subr.mxu0 0.0
    %346 = vmatpush1.xpose.msra.mxu0 0.0
    %347 = vmatprep.subr.mxu0 0.0
    %348 = vmatpush1.xpose.msra.mxu0 0.0
    %349 = vmatprep.subr.mxu0 0.0
    %350 = vmatpush1.xpose.msra.mxu0 0.0
    %351 = vmatprep.subr.mxu0 0.0
    %352 = vmatpush1.xpose.msra.mxu0 0.0
    %353 = vmatprep.subr.mxu0 0.0
    %354 = vmatpush1.xpose.msra.mxu0 0.0
    %355 = vmatprep.subr.mxu0 0.0
    %356 = vmatpush1.xpose.msra.mxu0 0.0
    %357 = vmatprep.subr.mxu0 0.0
    %358 = vmatpush1.xpose.msra.mxu0 0.0
    %359 = vmatprep.subr.mxu0 0.0
    %360 = vmatpush1.xpose.msra.mxu0 0.0
    %361 = vmatprep.subr.mxu0 0.0
    %362 = vmatpush1.xpose.msra.mxu0 0.0
    %363 = vmatprep.subr.mxu0 0.0
    %364 = vmatpush1.xpose.msra.mxu0 0.0
    %365 = vmatprep.subr.mxu0 0.0
    %366 = vmatpush1.xpose.msra.mxu0 0.0
    %367 = vmatprep.subr.mxu0 0.0
    %368 = vmatpush1.xpose.msra.mxu0 0.0
    %369 = vmatprep.subr.mxu0 0.0
    %370 = vmatpush1.xpose.msra.mxu0 0.0
    %371 = vmatprep.subr.mxu0 0.0
    %372 = vmatpush1.xpose.msra.mxu0 0.0
    %373 = vmatprep.subr.mxu0 0.0
    %374 = vmatpush1.xpose.msra.mxu0 0.0
    %375 = vmatprep.subr.mxu0 0.0
    %376 = vmatpush1.xpose.msra.mxu0 0.0
    %377 = vmatprep.subr.mxu0 0.0
    %378 = vmatpush1.xpose.msra.mxu0 0.0
    %379 = vmatprep.subr.mxu0 0.0
    %380 = vmatpush1.xpose.msra.mxu0 0.0
    %381 = vmatprep.subr.mxu0 0.0
    %382 = vmatpush1.xpose.msra.mxu0 0.0
    %383 = vmatprep.subr.mxu0 0.0
    %384 = vmatpush1.xpose.msra.mxu0 0.0
    %385 = vmatprep.subr.mxu0 0.0
    %386 = vmatpush1.xpose.msra.mxu0 0.0
    %387 = vmatprep.subr.mxu0 0.0
    %388 = vmatpush1.xpose.msra.mxu0 0.0
    %389 = vmatprep.subr.mxu0 0.0
    %390 = vmatpush1.xpose.msra.mxu0 0.0
    %391 = vmatprep.subr.mxu0 0.0
    %392 = vmatpush1.xpose.msra.mxu0 0.0
    %393 = vmatprep.subr.mxu0 0.0
    %394 = vmatpush1.xpose.msra.mxu0 0.0
    %395 = vmatprep.mubr.f32.mxu0 0.0
    %396 = vmatmul.mubr.f32.gmra.mrb[0].mxu0 %v326
    %v397 = vpop.f32.mrb[0].mxu0
    %v398 = vadd.f32 %v46, %v397
    %v399 = vpop.f32.mrb[0].mxu0
    %400 = vdwg.mxu0
    %v402 = vsel %vm324, %v159, 0
    %v405 = vsel %vm324, %v238, 0
    %407 = vmatprep.subr.mxu0 0.0
    %408 = vmatpush1.xpose.msra.mxu0 %v405
    %409 = vmatprep.subr.mxu0 0.0
    %410 = vmatpush1.xpose.msra.mxu0 0.0
    %411 = vmatprep.subr.mxu0 0.0
    %412 = vmatpush1.xpose.msra.mxu0 0.0
    %413 = vmatprep.subr.mxu0 0.0
    %414 = vmatpush1.xpose.msra.mxu0 0.0
    %415 = vmatprep.subr.mxu0 0.0
    %416 = vmatpush1.xpose.msra.mxu0 0.0
    %417 = vmatprep.subr.mxu0 0.0
    %418 = vmatpush1.xpose.msra.mxu0 0.0
    %419 = vmatprep.subr.mxu0 0.0
    %420 = vmatpush1.xpose.msra.mxu0 0.0
    %421 = vmatprep.subr.mxu0 0.0
    %422 = vmatpush1.xpose.msra.mxu0 0.0
    %423 = vmatprep.subr.mxu0 0.0
    %424 = vmatpush1.xpose.msra.mxu0 0.0
    %425 = vmatprep.subr.mxu0 0.0
    %426 = vmatpush1.xpose.msra.mxu0 0.0
    %427 = vmatprep.subr.mxu0 0.0
    %428 = vmatpush1.xpose.msra.mxu0 0.0
    %429 = vmatprep.subr.mxu0 0.0
    %430 = vmatpush1.xpose.msra.mxu0 0.0
    %431 = vmatprep.subr.mxu0 0.0
    %432 = vmatpush1.xpose.msra.mxu0 0.0
    %433 = vmatprep.subr.mxu0 0.0
    %434 = vmatpush1.xpose.msra.mxu0 0.0
    %435 = vmatprep.subr.mxu0 0.0
    %436 = vmatpush1.xpose.msra.mxu0 0.0
    %437 = vmatprep.subr.mxu0 0.0
    %438 = vmatpush1.xpose.msra.mxu0 0.0
    %439 = vmatprep.subr.mxu0 0.0
    %440 = vmatpush1.xpose.msra.mxu0 0.0
    %441 = vmatprep.subr.mxu0 0.0
    %442 = vmatpush1.xpose.msra.mxu0 0.0
    %443 = vmatprep.subr.mxu0 0.0
    %444 = vmatpush1.xpose.msra.mxu0 0.0
    %445 = vmatprep.subr.mxu0 0.0
    %446 = vmatpush1.xpose.msra.mxu0 0.0
    %447 = vmatprep.subr.mxu0 0.0
    %448 = vmatpush1.xpose.msra.mxu0 0.0
    %449 = vmatprep.subr.mxu0 0.0
    %450 = vmatpush1.xpose.msra.mxu0 0.0
    %451 = vmatprep.subr.mxu0 0.0
    %452 = vmatpush1.xpose.msra.mxu0 0.0
    %453 = vmatprep.subr.mxu0 0.0
    %454 = vmatpush1.xpose.msra.mxu0 0.0
    %455 = vmatprep.subr.mxu0 0.0
    %456 = vmatpush1.xpose.msra.mxu0 0.0
    %457 = vmatprep.subr.mxu0 0.0
    %458 = vmatpush1.xpose.msra.mxu0 0.0
    %459 = vmatprep.subr.mxu0 0.0
    %460 = vmatpush1.xpose.msra.mxu0 0.0
    %461 = vmatprep.subr.mxu0 0.0
    %462 = vmatpush1.xpose.msra.mxu0 0.0
    %463 = vmatprep.subr.mxu0 0.0
    %464 = vmatpush1.xpose.msra.mxu0 0.0
    %465 = vmatprep.subr.mxu0 0.0
    %466 = vmatpush1.xpose.msra.mxu0 0.0
    %467 = vmatprep.subr.mxu0 0.0
    %468 = vmatpush1.xpose.msra.mxu0 0.0
    %469 = vmatprep.subr.mxu0 0.0
    %470 = vmatpush1.xpose.msra.mxu0 0.0
    %471 = vmatprep.mubr.f32.mxu0 0.0
    %472 = vmatmul.mubr.f32.gmra.mrb[0].mxu0 %v402
    %v473 = vpop.f32.mrb[0].mxu0
    %v474 = vadd.f32 %v46, %v473
    %v475 = vpop.f32.mrb[0].mxu0
    %476 = vdwg.mxu0
    %v479 = vlaneseq
    %v480 = vshrl.u32 %v479, 7
    %v481 = vsub.s32 0, %v480
    %v482 = vrot.slane %v44, %v481
    %v483 = vlaneseq
    %v484 = vshrl.u32 %v483, 7
    %v485 = vsub.s32 0, %v484
    %v486 = vrot.slane %v45, %v485
    %v489 = vadd.f32 %v398, %v482
    %v490 = vadd.f32 %v474, %v486
    %v491 = vsel %vm324, %v489, -inf
    %492 = vmax.xlane.f32.xlu0 %v491
    %v493 = vpop.xlane.xlu0 %492
    %v494 = vsel %vm324, %v490, -inf
    %495 = vmax.xlane.f32.xlu0 %v494
    %v496 = vpop.xlane.xlu0 %495
    %v497 = vsub.f32 %v489, %v493
    %v498 = vsub.f32 %v490, %v496
    %v499 = vmul.f32 %v497, 1.442695
    %v500 = vpow.pop %v499
    %v501 = vmul.f32 %v498, 1.442695
    %v502 = vpow.pop %v501
    %v503 = vsel %vm324, %v500, 0.0
    %504 = vadd.xlane.f32.xlu0 %v503
    %v505 = vpop.xlane.xlu0 %504
    %v506 = vsel %vm324, %v502, 0.0
    %507 = vadd.xlane.f32.xlu0 %v506
    %v508 = vpop.xlane.xlu0 %507
    %v509 = vrcp.pop %v505
    %v510 = vrcp.pop %v508
    %v511 = vmul.f32 %v500, %v509
    %v512 = vmul.f32 %v502, %v510
    %v514 = vsel %vm324, %v511, 0
    %516 = vmatprep.subr.mxu0 0.0
    %517 = vmatpush1.msra.mxu0 %v312
    %518 = vmatprep.subr.mxu0 0.0
    %519 = vmatpush1.msra.mxu0 0.0
    %520 = vmatprep.subr.mxu0 0.0
    %521 = vmatpush1.msra.mxu0 0.0
    %522 = vmatprep.subr.mxu0 0.0
    %523 = vmatpush1.msra.mxu0 0.0
    %524 = vmatprep.subr.mxu0 0.0
    %525 = vmatpush1.msra.mxu0 0.0
    %526 = vmatprep.subr.mxu0 0.0
    %527 = vmatpush1.msra.mxu0 0.0
    %528 = vmatprep.subr.mxu0 0.0
    %529 = vmatpush1.msra.mxu0 0.0
    %530 = vmatprep.subr.mxu0 0.0
    %531 = vmatpush1.msra.mxu0 0.0
    %532 = vmatprep.subr.mxu0 0.0
    %533 = vmatpush1.msra.mxu0 0.0
    %534 = vmatprep.subr.mxu0 0.0
    %535 = vmatpush1.msra.mxu0 0.0
    %536 = vmatprep.subr.mxu0 0.0
    %537 = vmatpush1.msra.mxu0 0.0
    %538 = vmatprep.subr.mxu0 0.0
    %539 = vmatpush1.msra.mxu0 0.0
    %540 = vmatprep.subr.mxu0 0.0
    %541 = vmatpush1.msra.mxu0 0.0
    %542 = vmatprep.subr.mxu0 0.0
    %543 = vmatpush1.msra.mxu0 0.0
    %544 = vmatprep.subr.mxu0 0.0
    %545 = vmatpush1.msra.mxu0 0.0
    %546 = vmatprep.subr.mxu0 0.0
    %547 = vmatpush1.msra.mxu0 0.0
    %548 = vmatprep.subr.mxu0 0.0
    %549 = vmatpush1.msra.mxu0 0.0
    %550 = vmatprep.subr.mxu0 0.0
    %551 = vmatpush1.msra.mxu0 0.0
    %552 = vmatprep.subr.mxu0 0.0
    %553 = vmatpush1.msra.mxu0 0.0
    %554 = vmatprep.subr.mxu0 0.0
    %555 = vmatpush1.msra.mxu0 0.0
    %556 = vmatprep.subr.mxu0 0.0
    %557 = vmatpush1.msra.mxu0 0.0
    %558 = vmatprep.subr.mxu0 0.0
    %559 = vmatpush1.msra.mxu0 0.0
    %560 = vmatprep.subr.mxu0 0.0
    %561 = vmatpush1.msra.mxu0 0.0
    %562 = vmatprep.subr.mxu0 0.0
    %563 = vmatpush1.msra.mxu0 0.0
    %564 = vmatprep.subr.mxu0 0.0
    %565 = vmatpush1.msra.mxu0 0.0
    %566 = vmatprep.subr.mxu0 0.0
    %567 = vmatpush1.msra.mxu0 0.0
    %568 = vmatprep.subr.mxu0 0.0
    %569 = vmatpush1.msra.mxu0 0.0
    %570 = vmatprep.subr.mxu0 0.0
    %571 = vmatpush1.msra.mxu0 0.0
    %572 = vmatprep.subr.mxu0 0.0
    %573 = vmatpush1.msra.mxu0 0.0
    %574 = vmatprep.subr.mxu0 0.0
    %575 = vmatpush1.msra.mxu0 0.0
    %576 = vmatprep.subr.mxu0 0.0
    %577 = vmatpush1.msra.mxu0 0.0
    %578 = vmatprep.subr.mxu0 0.0
    %579 = vmatpush1.msra.mxu0 0.0
    %580 = vmatprep.mubr.f32.mxu0 0.0
    %581 = vmatmul.mubr.f32.gmra.mrb[0].mxu0 %v514
    %v582 = vpop.f32.mrb[0].mxu0
    %v583 = vadd.f32 0.0, %v582
    %v584 = vpop.f32.mrb[0].mxu0
    %585 = vdwg.mxu0
    %v587 = vsel %vm324, %v512, 0
    %589 = vmatprep.subr.mxu0 0.0
    %590 = vmatpush1.msra.mxu0 %v317
    %591 = vmatprep.subr.mxu0 0.0
    %592 = vmatpush1.msra.mxu0 0.0
    %593 = vmatprep.subr.mxu0 0.0
    %594 = vmatpush1.msra.mxu0 0.0
    %595 = vmatprep.subr.mxu0 0.0
    %596 = vmatpush1.msra.mxu0 0.0
    %597 = vmatprep.subr.mxu0 0.0
    %598 = vmatpush1.msra.mxu0 0.0
    %599 = vmatprep.subr.mxu0 0.0
    %600 = vmatpush1.msra.mxu0 0.0
    %601 = vmatprep.subr.mxu0 0.0
    %602 = vmatpush1.msra.mxu0 0.0
    %603 = vmatprep.subr.mxu0 0.0
    %604 = vmatpush1.msra.mxu0 0.0
    %605 = vmatprep.subr.mxu0 0.0
    %606 = vmatpush1.msra.mxu0 0.0
    %607 = vmatprep.subr.mxu0 0.0
    %608 = vmatpush1.msra.mxu0 0.0
    %609 = vmatprep.subr.mxu0 0.0
    %610 = vmatpush1.msra.mxu0 0.0
    %611 = vmatprep.subr.mxu0 0.0
    %612 = vmatpush1.msra.mxu0 0.0
    %613 = vmatprep.subr.mxu0 0.0
    %614 = vmatpush1.msra.mxu0 0.0
    %615 = vmatprep.subr.mxu0 0.0
    %616 = vmatpush1.msra.mxu0 0.0
    %617 = vmatprep.subr.mxu0 0.0
    %618 = vmatpush1.msra.mxu0 0.0
    %619 = vmatprep.subr.mxu0 0.0
    %620 = vmatpush1.msra.mxu0 0.0
    %621 = vmatprep.subr.mxu0 0.0
    %622 = vmatpush1.msra.mxu0 0.0
    %623 = vmatprep.subr.mxu0 0.0
    %624 = vmatpush1.msra.mxu0 0.0
    %625 = vmatprep.subr.mxu0 0.0
    %626 = vmatpush1.msra.mxu0 0.0
    %627 = vmatprep.subr.mxu0 0.0
    %628 = vmatpush1.msra.mxu0 0.0
    %629 = vmatprep.subr.mxu0 0.0
    %630 = vmatpush1.msra.mxu0 0.0
    %631 = vmatprep.subr.mxu0 0.0
    %632 = vmatpush1.msra.mxu0 0.0
    %633 = vmatprep.subr.mxu0 0.0
    %634 = vmatpush1.msra.mxu0 0.0
    %635 = vmatprep.subr.mxu0 0.0
    %636 = vmatpush1.msra.mxu0 0.0
    %637 = vmatprep.subr.mxu0 0.0
    %638 = vmatpush1.msra.mxu0 0.0
    %639 = vmatprep.subr.mxu0 0.0
    %640 = vmatpush1.msra.mxu0 0.0
    %641 = vmatprep.subr.mxu0 0.0
    %642 = vmatpush1.msra.mxu0 0.0
    %643 = vmatprep.subr.mxu0 0.0
    %644 = vmatpush1.msra.mxu0 0.0
    %645 = vmatprep.subr.mxu0 0.0
    %646 = vmatpush1.msra.mxu0 0.0
    %647 = vmatprep.subr.mxu0 0.0
    %648 = vmatpush1.msra.mxu0 0.0
    %649 = vmatprep.subr.mxu0 0.0
    %650 = vmatpush1.msra.mxu0 0.0
    %651 = vmatprep.subr.mxu0 0.0
    %652 = vmatpush1.msra.mxu0 0.0
    %653 = vmatprep.mubr.f32.mxu0 0.0
    %654 = vmatmul.mubr.f32.gmra.mrb[0].mxu0 %v587
    %v655 = vpop.f32.mrb[0].mxu0
    %v656 = vadd.f32 0.0, %v655
    %v657 = vpop.f32.mrb[0].mxu0
    %658 = vdwg.mxu0
    %659 = vrot.lane.b32.xlu0 %v154, 120
    %v660 = vpop.permute.xlu0 %659
    %661 = vrot.lane.b32.xlu0 %v233, 120
    %v662 = vpop.permute.xlu0 %661
    %v663 = vsel %vm324, %v660, 0
    %v665 = vsel %vm324, %v662, 0
    %667 = vmatprep.subr.mxu0 0.0
    %668 = vmatpush1.xpose.msra.mxu0 %v665
    %669 = vmatprep.subr.mxu0 0.0
    %670 = vmatpush1.xpose.msra.mxu0 0.0
    %671 = vmatprep.subr.mxu0 0.0
    %672 = vmatpush1.xpose.msra.mxu0 0.0
    %673 = vmatprep.subr.mxu0 0.0
    %674 = vmatpush1.xpose.msra.mxu0 0.0
    %675 = vmatprep.subr.mxu0 0.0
    %676 = vmatpush1.xpose.msra.mxu0 0.0
    %677 = vmatprep.subr.mxu0 0.0
    %678 = vmatpush1.xpose.msra.mxu0 0.0
    %679 = vmatprep.subr.mxu0 0.0
    %680 = vmatpush1.xpose.msra.mxu0 0.0
    %681 = vmatprep.subr.mxu0 0.0
    %682 = vmatpush1.xpose.msra.mxu0 0.0
    %683 = vmatprep.subr.mxu0 0.0
    %684 = vmatpush1.xpose.msra.mxu0 0.0
    %685 = vmatprep.subr.mxu0 0.0
    %686 = vmatpush1.xpose.msra.mxu0 0.0
    %687 = vmatprep.subr.mxu0 0.0
    %688 = vmatpush1.xpose.msra.mxu0 0.0
    %689 = vmatprep.subr.mxu0 0.0
    %690 = vmatpush1.xpose.msra.mxu0 0.0
    %691 = vmatprep.subr.mxu0 0.0
    %692 = vmatpush1.xpose.msra.mxu0 0.0
    %693 = vmatprep.subr.mxu0 0.0
    %694 = vmatpush1.xpose.msra.mxu0 0.0
    %695 = vmatprep.subr.mxu0 0.0
    %696 = vmatpush1.xpose.msra.mxu0 0.0
    %697 = vmatprep.subr.mxu0 0.0
    %698 = vmatpush1.xpose.msra.mxu0 0.0
    %699 = vmatprep.subr.mxu0 0.0
    %700 = vmatpush1.xpose.msra.mxu0 0.0
    %701 = vmatprep.subr.mxu0 0.0
    %702 = vmatpush1.xpose.msra.mxu0 0.0
    %703 = vmatprep.subr.mxu0 0.0
    %704 = vmatpush1.xpose.msra.mxu0 0.0
    %705 = vmatprep.subr.mxu0 0.0
    %706 = vmatpush1.xpose.msra.mxu0 0.0
    %707 = vmatprep.subr.mxu0 0.0
    %708 = vmatpush1.xpose.msra.mxu0 0.0
    %709 = vmatprep.subr.mxu0 0.0
    %710 = vmatpush1.xpose.msra.mxu0 0.0
    %711 = vmatprep.subr.mxu0 0.0
    %712 = vmatpush1.xpose.msra.mxu0 0.0
    %713 = vmatprep.subr.mxu0 0.0
    %714 = vmatpush1.xpose.msra.mxu0 0.0
    %715 = vmatprep.subr.mxu0 0.0
    %716 = vmatpush1.xpose.msra.mxu0 0.0
    %717 = vmatprep.subr.mxu0 0.0
    %718 = vmatpush1.xpose.msra.mxu0 0.0
    %719 = vmatprep.subr.mxu0 0.0
    %720 = vmatpush1.xpose.msra.mxu0 0.0
    %721 = vmatprep.subr.mxu0 0.0
    %722 = vmatpush1.xpose.msra.mxu0 0.0
    %723 = vmatprep.subr.mxu0 0.0
    %724 = vmatpush1.xpose.msra.mxu0 0.0
    %725 = vmatprep.subr.mxu0 0.0
    %726 = vmatpush1.xpose.msra.mxu0 0.0
    %727 = vmatprep.subr.mxu0 0.0
    %728 = vmatpush1.xpose.msra.mxu0 0.0
    %729 = vmatprep.subr.mxu0 0.0
    %730 = vmatpush1.xpose.msra.mxu0 0.0
    %731 = vmatprep.mubr.f32.mxu0 0.0
    %732 = vmatmul.mubr.f32.gmra.mrb[0].mxu0 %v663
    %v733 = vpop.f32.mrb[0].mxu0
    %v734 = vadd.f32 %v47, %v733
    %v735 = vpop.f32.mrb[0].mxu0
    %736 = vdwg.mxu0
    %737 = vrot.lane.b32.xlu0 %v159, 120
    %v738 = vpop.permute.xlu0 %737
    %739 = vrot.lane.b32.xlu0 %v238, 120
    %v740 = vpop.permute.xlu0 %739
    %v741 = vsel %vm324, %v738, 0
    %v743 = vsel %vm324, %v740, 0
    %745 = vmatprep.subr.mxu0 0.0
    %746 = vmatpush1.xpose.msra.mxu0 %v743
    %747 = vmatprep.subr.mxu0 0.0
    %748 = vmatpush1.xpose.msra.mxu0 0.0
    %749 = vmatprep.subr.mxu0 0.0
    %750 = vmatpush1.xpose.msra.mxu0 0.0
    %751 = vmatprep.subr.mxu0 0.0
    %752 = vmatpush1.xpose.msra.mxu0 0.0
    %753 = vmatprep.subr.mxu0 0.0
    %754 = vmatpush1.xpose.msra.mxu0 0.0
    %755 = vmatprep.subr.mxu0 0.0
    %756 = vmatpush1.xpose.msra.mxu0 0.0
    %757 = vmatprep.subr.mxu0 0.0
    %758 = vmatpush1.xpose.msra.mxu0 0.0
    %759 = vmatprep.subr.mxu0 0.0
    %760 = vmatpush1.xpose.msra.mxu0 0.0
    %761 = vmatprep.subr.mxu0 0.0
    %762 = vmatpush1.xpose.msra.mxu0 0.0
    %763 = vmatprep.subr.mxu0 0.0
    %764 = vmatpush1.xpose.msra.mxu0 0.0
    %765 = vmatprep.subr.mxu0 0.0
    %766 = vmatpush1.xpose.msra.mxu0 0.0
    %767 = vmatprep.subr.mxu0 0.0
    %768 = vmatpush1.xpose.msra.mxu0 0.0
    %769 = vmatprep.subr.mxu0 0.0
    %770 = vmatpush1.xpose.msra.mxu0 0.0
    %771 = vmatprep.subr.mxu0 0.0
    %772 = vmatpush1.xpose.msra.mxu0 0.0
    %773 = vmatprep.subr.mxu0 0.0
    %774 = vmatpush1.xpose.msra.mxu0 0.0
    %775 = vmatprep.subr.mxu0 0.0
    %776 = vmatpush1.xpose.msra.mxu0 0.0
    %777 = vmatprep.subr.mxu0 0.0
    %778 = vmatpush1.xpose.msra.mxu0 0.0
    %779 = vmatprep.subr.mxu0 0.0
    %780 = vmatpush1.xpose.msra.mxu0 0.0
    %781 = vmatprep.subr.mxu0 0.0
    %782 = vmatpush1.xpose.msra.mxu0 0.0
    %783 = vmatprep.subr.mxu0 0.0
    %784 = vmatpush1.xpose.msra.mxu0 0.0
    %785 = vmatprep.subr.mxu0 0.0
    %786 = vmatpush1.xpose.msra.mxu0 0.0
    %787 = vmatprep.subr.mxu0 0.0
    %788 = vmatpush1.xpose.msra.mxu0 0.0
    %789 = vmatprep.subr.mxu0 0.0
    %790 = vmatpush1.xpose.msra.mxu0 0.0
    %791 = vmatprep.subr.mxu0 0.0
    %792 = vmatpush1.xpose.msra.mxu0 0.0
    %793 = vmatprep.subr.mxu0 0.0
    %794 = vmatpush1.xpose.msra.mxu0 0.0
    %795 = vmatprep.subr.mxu0 0.0
    %796 = vmatpush1.xpose.msra.mxu0 0.0
    %797 = vmatprep.subr.mxu0 0.0
    %798 = vmatpush1.xpose.msra.mxu0 0.0
    %799 = vmatprep.subr.mxu0 0.0
    %800 = vmatpush1.xpose.msra.mxu0 0.0
    %801 = vmatprep.subr.mxu0 0.0
    %802 = vmatpush1.xpose.msra.mxu0 0.0
    %803 = vmatprep.subr.mxu0 0.0
    %804 = vmatpush1.xpose.msra.mxu0 0.0
    %805 = vmatprep.subr.mxu0 0.0
    %806 = vmatpush1.xpose.msra.mxu0 0.0
    %807 = vmatprep.subr.mxu0 0.0
    %808 = vmatpush1.xpose.msra.mxu0 0.0
    %809 = vmatprep.mubr.f32.mxu0 0.0
    %810 = vmatmul.mubr.f32.gmra.mrb[0].mxu0 %v741
    %v811 = vpop.f32.mrb[0].mxu0
    %v812 = vadd.f32 %v47, %v811
    %v813 = vpop.f32.mrb[0].mxu0
    %814 = vdwg.mxu0
    %v815 = vadd.f32 %v734, %v482
    %v816 = vadd.f32 %v812, %v486
    %v817 = vsel %vm324, %v815, -inf
    %818 = vmax.xlane.f32.xlu0 %v817
    %v819 = vpop.xlane.xlu0 %818
    %v820 = vsel %vm324, %v816, -inf
    %821 = vmax.xlane.f32.xlu0 %v820
    %v822 = vpop.xlane.xlu0 %821
    %v823 = vsub.f32 %v815, %v819
    %v824 = vsub.f32 %v816, %v822
    %v825 = vmul.f32 %v823, 1.442695
    %v826 = vpow.pop %v825
    %v827 = vmul.f32 %v824, 1.442695
    %v828 = vpow.pop %v827
    %v829 = vsel %vm324, %v826, 0.0
    %830 = vadd.xlane.f32.xlu0 %v829
    %v831 = vpop.xlane.xlu0 %830
    %v832 = vsel %vm324, %v828, 0.0
    %833 = vadd.xlane.f32.xlu0 %v832
    %v834 = vpop.xlane.xlu0 %833
    %v835 = vrcp.pop %v831
    %v836 = vrcp.pop %v834
    %v837 = vmul.f32 %v826, %v835
    %v838 = vmul.f32 %v828, %v836
    %840 = vrot.lane.b32.xlu0 %v312, 120
    %v841 = vpop.permute.xlu0 %840
    %v844 = vsel %vm324, %v837, 0
    %846 = vmatprep.subr.mxu0 0.0
    %847 = vmatpush1.msra.mxu0 %v841
    %848 = vmatprep.subr.mxu0 0.0
    %849 = vmatpush1.msra.mxu0 0.0
    %850 = vmatprep.subr.mxu0 0.0
    %851 = vmatpush1.msra.mxu0 0.0
    %852 = vmatprep.subr.mxu0 0.0
    %853 = vmatpush1.msra.mxu0 0.0
    %854 = vmatprep.subr.mxu0 0.0
    %855 = vmatpush1.msra.mxu0 0.0
    %856 = vmatprep.subr.mxu0 0.0
    %857 = vmatpush1.msra.mxu0 0.0
    %858 = vmatprep.subr.mxu0 0.0
    %859 = vmatpush1.msra.mxu0 0.0
    %860 = vmatprep.subr.mxu0 0.0
    %861 = vmatpush1.msra.mxu0 0.0
    %862 = vmatprep.subr.mxu0 0.0
    %863 = vmatpush1.msra.mxu0 0.0
    %864 = vmatprep.subr.mxu0 0.0
    %865 = vmatpush1.msra.mxu0 0.0
    %866 = vmatprep.subr.mxu0 0.0
    %867 = vmatpush1.msra.mxu0 0.0
    %868 = vmatprep.subr.mxu0 0.0
    %869 = vmatpush1.msra.mxu0 0.0
    %870 = vmatprep.subr.mxu0 0.0
    %871 = vmatpush1.msra.mxu0 0.0
    %872 = vmatprep.subr.mxu0 0.0
    %873 = vmatpush1.msra.mxu0 0.0
    %874 = vmatprep.subr.mxu0 0.0
    %875 = vmatpush1.msra.mxu0 0.0
    %876 = vmatprep.subr.mxu0 0.0
    %877 = vmatpush1.msra.mxu0 0.0
    %878 = vmatprep.subr.mxu0 0.0
    %879 = vmatpush1.msra.mxu0 0.0
    %880 = vmatprep.subr.mxu0 0.0
    %881 = vmatpush1.msra.mxu0 0.0
    %882 = vmatprep.subr.mxu0 0.0
    %883 = vmatpush1.msra.mxu0 0.0
    %884 = vmatprep.subr.mxu0 0.0
    %885 = vmatpush1.msra.mxu0 0.0
    %886 = vmatprep.subr.mxu0 0.0
    %887 = vmatpush1.msra.mxu0 0.0
    %888 = vmatprep.subr.mxu0 0.0
    %889 = vmatpush1.msra.mxu0 0.0
    %890 = vmatprep.subr.mxu0 0.0
    %891 = vmatpush1.msra.mxu0 0.0
    %892 = vmatprep.subr.mxu0 0.0
    %893 = vmatpush1.msra.mxu0 0.0
    %894 = vmatprep.subr.mxu0 0.0
    %895 = vmatpush1.msra.mxu0 0.0
    %896 = vmatprep.subr.mxu0 0.0
    %897 = vmatpush1.msra.mxu0 0.0
    %898 = vmatprep.subr.mxu0 0.0
    %899 = vmatpush1.msra.mxu0 0.0
    %900 = vmatprep.subr.mxu0 0.0
    %901 = vmatpush1.msra.mxu0 0.0
    %902 = vmatprep.subr.mxu0 0.0
    %903 = vmatpush1.msra.mxu0 0.0
    %904 = vmatprep.subr.mxu0 0.0
    %905 = vmatpush1.msra.mxu0 0.0
    %906 = vmatprep.subr.mxu0 0.0
    %907 = vmatpush1.msra.mxu0 0.0
    %908 = vmatprep.subr.mxu0 0.0
    %909 = vmatpush1.msra.mxu0 0.0
    %910 = vmatprep.mubr.f32.mxu0 0.0
    %911 = vmatmul.mubr.f32.gmra.mrb[0].mxu0 %v844
    %v912 = vpop.f32.mrb[0].mxu0
    %v913 = vadd.f32 0.0, %v912
    %v914 = vpop.f32.mrb[0].mxu0
    %915 = vdwg.mxu0
    %917 = vrot.lane.b32.xlu0 %v317, 120
    %v918 = vpop.permute.xlu0 %917
    %v921 = vsel %vm324, %v838, 0
    %923 = vmatprep.subr.mxu0 0.0
    %924 = vmatpush1.msra.mxu0 %v918
    %925 = vmatprep.subr.mxu0 0.0
    %926 = vmatpush1.msra.mxu0 0.0
    %927 = vmatprep.subr.mxu0 0.0
    %928 = vmatpush1.msra.mxu0 0.0
    %929 = vmatprep.subr.mxu0 0.0
    %930 = vmatpush1.msra.mxu0 0.0
    %931 = vmatprep.subr.mxu0 0.0
    %932 = vmatpush1.msra.mxu0 0.0
    %933 = vmatprep.subr.mxu0 0.0
    %934 = vmatpush1.msra.mxu0 0.0
    %935 = vmatprep.subr.mxu0 0.0
    %936 = vmatpush1.msra.mxu0 0.0
    %937 = vmatprep.subr.mxu0 0.0
    %938 = vmatpush1.msra.mxu0 0.0
    %939 = vmatprep.subr.mxu0 0.0
    %940 = vmatpush1.msra.mxu0 0.0
    %941 = vmatprep.subr.mxu0 0.0
    %942 = vmatpush1.msra.mxu0 0.0
    %943 = vmatprep.subr.mxu0 0.0
    %944 = vmatpush1.msra.mxu0 0.0
    %945 = vmatprep.subr.mxu0 0.0
    %946 = vmatpush1.msra.mxu0 0.0
    %947 = vmatprep.subr.mxu0 0.0
    %948 = vmatpush1.msra.mxu0 0.0
    %949 = vmatprep.subr.mxu0 0.0
    %950 = vmatpush1.msra.mxu0 0.0
    %951 = vmatprep.subr.mxu0 0.0
    %952 = vmatpush1.msra.mxu0 0.0
    %953 = vmatprep.subr.mxu0 0.0
    %954 = vmatpush1.msra.mxu0 0.0
    %955 = vmatprep.subr.mxu0 0.0
    %956 = vmatpush1.msra.mxu0 0.0
    %957 = vmatprep.subr.mxu0 0.0
    %958 = vmatpush1.msra.mxu0 0.0
    %959 = vmatprep.subr.mxu0 0.0
    %960 = vmatpush1.msra.mxu0 0.0
    %961 = vmatprep.subr.mxu0 0.0
    %962 = vmatpush1.msra.mxu0 0.0
    %963 = vmatprep.subr.mxu0 0.0
    %964 = vmatpush1.msra.mxu0 0.0
    %965 = vmatprep.subr.mxu0 0.0
    %966 = vmatpush1.msra.mxu0 0.0
    %967 = vmatprep.subr.mxu0 0.0
    %968 = vmatpush1.msra.mxu0 0.0
    %969 = vmatprep.subr.mxu0 0.0
    %970 = vmatpush1.msra.mxu0 0.0
    %971 = vmatprep.subr.mxu0 0.0
    %972 = vmatpush1.msra.mxu0 0.0
    %973 = vmatprep.subr.mxu0 0.0
    %974 = vmatpush1.msra.mxu0 0.0
    %975 = vmatprep.subr.mxu0 0.0
    %976 = vmatpush1.msra.mxu0 0.0
    %977 = vmatprep.subr.mxu0 0.0
    %978 = vmatpush1.msra.mxu0 0.0
    %979 = vmatprep.subr.mxu0 0.0
    %980 = vmatpush1.msra.mxu0 0.0
    %981 = vmatprep.subr.mxu0 0.0
    %982 = vmatpush1.msra.mxu0 0.0
    %983 = vmatprep.subr.mxu0 0.0
    %984 = vmatpush1.msra.mxu0 0.0
    %985 = vmatprep.subr.mxu0 0.0
    %986 = vmatpush1.msra.mxu0 0.0
    %987 = vmatprep.mubr.f32.mxu0 0.0
    %988 = vmatmul.mubr.f32.gmra.mrb[0].mxu0 %v921
    %v989 = vpop.f32.mrb[0].mxu0
    %v990 = vadd.f32 0.0, %v989
    %v991 = vpop.f32.mrb[0].mxu0
    %992 = vdwg.mxu0
    %v994 = vsel %vm324, %v913, 0
    %v997 = vsel %vm324, %v990, 0
    %999 = vmatprep.subr.mxu0 0.0
    %1000 = vmatpush1.msra.mxu0 %v321
    %1001 = vmatprep.subr.mxu0 0.0
    %1002 = vmatpush1.msra.mxu0 0.0
    %1003 = vmatprep.subr.mxu0 0.0
    %1004 = vmatpush1.msra.mxu0 0.0
    %1005 = vmatprep.subr.mxu0 0.0
    %1006 = vmatpush1.msra.mxu0 0.0
    %1007 = vmatprep.subr.mxu0 0.0
    %1008 = vmatpush1.msra.mxu0 0.0
    %1009 = vmatprep.subr.mxu0 0.0
    %1010 = vmatpush1.msra.mxu0 0.0
    %1011 = vmatprep.subr.mxu0 0.0
    %1012 = vmatpush1.msra.mxu0 0.0
    %1013 = vmatprep.subr.mxu0 0.0
    %1014 = vmatpush1.msra.mxu0 0.0
    %1015 = vmatprep.subr.mxu0 0.0
    %1016 = vmatpush1.msra.mxu0 0.0
    %1017 = vmatprep.subr.mxu0 0.0
    %1018 = vmatpush1.msra.mxu0 0.0
    %1019 = vmatprep.subr.mxu0 0.0
    %1020 = vmatpush1.msra.mxu0 0.0
    %1021 = vmatprep.subr.mxu0 0.0
    %1022 = vmatpush1.msra.mxu0 0.0
    %1023 = vmatprep.subr.mxu0 0.0
    %1024 = vmatpush1.msra.mxu0 0.0
    %1025 = vmatprep.subr.mxu0 0.0
    %1026 = vmatpush1.msra.mxu0 0.0
    %1027 = vmatprep.subr.mxu0 0.0
    %1028 = vmatpush1.msra.mxu0 0.0
    %1029 = vmatprep.subr.mxu0 0.0
    %1030 = vmatpush1.msra.mxu0 0.0
    %1031 = vmatprep.subr.mxu0 0.0
    %1032 = vmatpush1.msra.mxu0 0.0
    %1033 = vmatprep.subr.mxu0 0.0
    %1034 = vmatpush1.msra.mxu0 0.0
    %1035 = vmatprep.subr.mxu0 0.0
    %1036 = vmatpush1.msra.mxu0 0.0
    %1037 = vmatprep.subr.mxu0 0.0
    %1038 = vmatpush1.msra.mxu0 0.0
    %1039 = vmatprep.subr.mxu0 0.0
    %1040 = vmatpush1.msra.mxu0 0.0
    %1041 = vmatprep.subr.mxu0 0.0
    %1042 = vmatpush1.msra.mxu0 0.0
    %1043 = vmatprep.subr.mxu0 0.0
    %1044 = vmatpush1.msra.mxu0 0.0
    %1045 = vmatprep.subr.mxu0 0.0
    %1046 = vmatpush1.msra.mxu0 0.0
    %1047 = vmatprep.subr.mxu0 0.0
    %1048 = vmatpush1.msra.mxu0 0.0
    %1049 = vmatprep.subr.mxu0 0.0
    %1050 = vmatpush1.msra.mxu0 0.0
    %1051 = vmatprep.subr.mxu0 0.0
    %1052 = vmatpush1.msra.mxu0 0.0
    %1053 = vmatprep.subr.mxu0 0.0
    %1054 = vmatpush1.msra.mxu0 0.0
    %1055 = vmatprep.subr.mxu0 0.0
    %1056 = vmatpush1.msra.mxu0 0.0
    %1057 = vmatprep.subr.mxu0 0.0
    %1058 = vmatpush1.msra.mxu0 0.0
    %1059 = vmatprep.subr.mxu0 0.0
    %1060 = vmatpush1.msra.mxu0 0.0
    %1061 = vmatprep.subr.mxu0 0.0
    %1062 = vmatpush1.msra.mxu0 0.0
    %1063 = vmatprep.mubr.f32.mxu0 0.0
    %1064 = vmatmul.mubr.f32.gmra.mrb[0].mxu0 %v994
    %v1065 = vpop.f32.mrb[0].mxu0
    %v1066 = vadd.f32 0.0, %v1065
    %v1067 = vpop.f32.mrb[0].mxu0
    %1068 = vmatprep.mubr.f32.mxu0 0.0
    %1069 = vmatmul.mubr.f32.gmra.mrb[0].mxu0 %v997
    %v1070 = vpop.f32.mrb[0].mxu0
    %v1071 = vadd.f32 0.0, %v1070
    %v1072 = vpop.f32.mrb[0].mxu0
    %1073 = vdwg.mxu0
    %v1075 = vsel %vm324, %v583, 0
    %v1078 = vsel %vm324, %v656, 0
    %1080 = vmatprep.subr.mxu0 0.0
    %1081 = vmatpush1.msra.mxu0 %v320
    %1082 = vmatprep.subr.mxu0 0.0
    %1083 = vmatpush1.msra.mxu0 0.0
    %1084 = vmatprep.subr.mxu0 0.0
    %1085 = vmatpush1.msra.mxu0 0.0
    %1086 = vmatprep.subr.mxu0 0.0
    %1087 = vmatpush1.msra.mxu0 0.0
    %1088 = vmatprep.subr.mxu0 0.0
    %1089 = vmatpush1.msra.mxu0 0.0
    %1090 = vmatprep.subr.mxu0 0.0
    %1091 = vmatpush1.msra.mxu0 0.0
    %1092 = vmatprep.subr.mxu0 0.0
    %1093 = vmatpush1.msra.mxu0 0.0
    %1094 = vmatprep.subr.mxu0 0.0
    %1095 = vmatpush1.msra.mxu0 0.0
    %1096 = vmatprep.subr.mxu0 0.0
    %1097 = vmatpush1.msra.mxu0 0.0
    %1098 = vmatprep.subr.mxu0 0.0
    %1099 = vmatpush1.msra.mxu0 0.0
    %1100 = vmatprep.subr.mxu0 0.0
    %1101 = vmatpush1.msra.mxu0 0.0
    %1102 = vmatprep.subr.mxu0 0.0
    %1103 = vmatpush1.msra.mxu0 0.0
    %1104 = vmatprep.subr.mxu0 0.0
    %1105 = vmatpush1.msra.mxu0 0.0
    %1106 = vmatprep.subr.mxu0 0.0
    %1107 = vmatpush1.msra.mxu0 0.0
    %1108 = vmatprep.subr.mxu0 0.0
    %1109 = vmatpush1.msra.mxu0 0.0
    %1110 = vmatprep.subr.mxu0 0.0
    %1111 = vmatpush1.msra.mxu0 0.0
    %1112 = vmatprep.subr.mxu0 0.0
    %1113 = vmatpush1.msra.mxu0 0.0
    %1114 = vmatprep.subr.mxu0 0.0
    %1115 = vmatpush1.msra.mxu0 0.0
    %1116 = vmatprep.subr.mxu0 0.0
    %1117 = vmatpush1.msra.mxu0 0.0
    %1118 = vmatprep.subr.mxu0 0.0
    %1119 = vmatpush1.msra.mxu0 0.0
    %1120 = vmatprep.subr.mxu0 0.0
    %1121 = vmatpush1.msra.mxu0 0.0
    %1122 = vmatprep.subr.mxu0 0.0
    %1123 = vmatpush1.msra.mxu0 0.0
    %1124 = vmatprep.subr.mxu0 0.0
    %1125 = vmatpush1.msra.mxu0 0.0
    %1126 = vmatprep.subr.mxu0 0.0
    %1127 = vmatpush1.msra.mxu0 0.0
    %1128 = vmatprep.subr.mxu0 0.0
    %1129 = vmatpush1.msra.mxu0 0.0
    %1130 = vmatprep.subr.mxu0 0.0
    %1131 = vmatpush1.msra.mxu0 0.0
    %1132 = vmatprep.subr.mxu0 0.0
    %1133 = vmatpush1.msra.mxu0 0.0
    %1134 = vmatprep.subr.mxu0 0.0
    %1135 = vmatpush1.msra.mxu0 0.0
    %1136 = vmatprep.subr.mxu0 0.0
    %1137 = vmatpush1.msra.mxu0 0.0
    %1138 = vmatprep.subr.mxu0 0.0
    %1139 = vmatpush1.msra.mxu0 0.0
    %1140 = vmatprep.subr.mxu0 0.0
    %1141 = vmatpush1.msra.mxu0 0.0
    %1142 = vmatprep.subr.mxu0 0.0
    %1143 = vmatpush1.msra.mxu0 0.0
    %1144 = vmatprep.mubr.f32.mxu0 0.0
    %1145 = vmatmul.mubr.f32.gmra.mrb[0].mxu0 %v1075
    %v1146 = vpop.f32.mrb[0].mxu0
    %v1147 = vadd.f32 %v1066, %v1146
    %v1148 = vpop.f32.mrb[0].mxu0
    %1149 = vmatprep.mubr.f32.mxu0 0.0
    %1150 = vmatmul.mubr.f32.gmra.mrb[0].mxu0 %v1078
    %v1151 = vpop.f32.mrb[0].mxu0
    %v1152 = vadd.f32 %v1071, %v1151
    %v1153 = vpop.f32.mrb[0].mxu0
    %1154 = vdwg.mxu0
    %1155 = vrot.lane.b32.xlu0 %v154, 112
    %v1156 = vpop.permute.xlu0 %1155
    %1157 = vrot.lane.b32.xlu0 %v233, 112
    %v1158 = vpop.permute.xlu0 %1157
    %v1159 = vsel %vm324, %v1156, 0
    %v1161 = vsel %vm324, %v1158, 0
    %1163 = vmatprep.subr.mxu0 0.0
    %1164 = vmatpush1.xpose.msra.mxu0 %v1161
    %1165 = vmatprep.subr.mxu0 0.0
    %1166 = vmatpush1.xpose.msra.mxu0 0.0
    %1167 = vmatprep.subr.mxu0 0.0
    %1168 = vmatpush1.xpose.msra.mxu0 0.0
    %1169 = vmatprep.subr.mxu0 0.0
    %1170 = vmatpush1.xpose.msra.mxu0 0.0
    %1171 = vmatprep.subr.mxu0 0.0
    %1172 = vmatpush1.xpose.msra.mxu0 0.0
    %1173 = vmatprep.subr.mxu0 0.0
    %1174 = vmatpush1.xpose.msra.mxu0 0.0
    %1175 = vmatprep.subr.mxu0 0.0
    %1176 = vmatpush1.xpose.msra.mxu0 0.0
    %1177 = vmatprep.subr.mxu0 0.0
    %1178 = vmatpush1.xpose.msra.mxu0 0.0
    %1179 = vmatprep.subr.mxu0 0.0
    %1180 = vmatpush1.xpose.msra.mxu0 0.0
    %1181 = vmatprep.subr.mxu0 0.0
    %1182 = vmatpush1.xpose.msra.mxu0 0.0
    %1183 = vmatprep.subr.mxu0 0.0
    %1184 = vmatpush1.xpose.msra.mxu0 0.0
    %1185 = vmatprep.subr.mxu0 0.0
    %1186 = vmatpush1.xpose.msra.mxu0 0.0
    %1187 = vmatprep.subr.mxu0 0.0
    %1188 = vmatpush1.xpose.msra.mxu0 0.0
    %1189 = vmatprep.subr.mxu0 0.0
    %1190 = vmatpush1.xpose.msra.mxu0 0.0
    %1191 = vmatprep.subr.mxu0 0.0
    %1192 = vmatpush1.xpose.msra.mxu0 0.0
    %1193 = vmatprep.subr.mxu0 0.0
    %1194 = vmatpush1.xpose.msra.mxu0 0.0
    %1195 = vmatprep.subr.mxu0 0.0
    %1196 = vmatpush1.xpose.msra.mxu0 0.0
    %1197 = vmatprep.subr.mxu0 0.0
    %1198 = vmatpush1.xpose.msra.mxu0 0.0
    %1199 = vmatprep.subr.mxu0 0.0
    %1200 = vmatpush1.xpose.msra.mxu0 0.0
    %1201 = vmatprep.subr.mxu0 0.0
    %1202 = vmatpush1.xpose.msra.mxu0 0.0
    %1203 = vmatprep.subr.mxu0 0.0
    %1204 = vmatpush1.xpose.msra.mxu0 0.0
    %1205 = vmatprep.subr.mxu0 0.0
    %1206 = vmatpush1.xpose.msra.mxu0 0.0
    %1207 = vmatprep.subr.mxu0 0.0
    %1208 = vmatpush1.xpose.msra.mxu0 0.0
    %1209 = vmatprep.subr.mxu0 0.0
    %1210 = vmatpush1.xpose.msra.mxu0 0.0
    %1211 = vmatprep.subr.mxu0 0.0
    %1212 = vmatpush1.xpose.msra.mxu0 0.0
    %1213 = vmatprep.subr.mxu0 0.0
    %1214 = vmatpush1.xpose.msra.mxu0 0.0
    %1215 = vmatprep.subr.mxu0 0.0
    %1216 = vmatpush1.xpose.msra.mxu0 0.0
    %1217 = vmatprep.subr.mxu0 0.0
    %1218 = vmatpush1.xpose.msra.mxu0 0.0
    %1219 = vmatprep.subr.mxu0 0.0
    %1220 = vmatpush1.xpose.msra.mxu0 0.0
    %1221 = vmatprep.subr.mxu0 0.0
    %1222 = vmatpush1.xpose.msra.mxu0 0.0
    %1223 = vmatprep.subr.mxu0 0.0
    %1224 = vmatpush1.xpose.msra.mxu0 0.0
    %1225 = vmatprep.subr.mxu0 0.0
    %1226 = vmatpush1.xpose.msra.mxu0 0.0
    %1227 = vmatprep.mubr.f32.mxu0 0.0
    %1228 = vmatmul.mubr.f32.gmra.mrb[0].mxu0 %v1159
    %v1229 = vpop.f32.mrb[0].mxu0
    %v1230 = vadd.f32 %v48, %v1229
    %v1231 = vpop.f32.mrb[0].mxu0
    %1232 = vdwg.mxu0
    %1233 = vrot.lane.b32.xlu0 %v159, 112
    %v1234 = vpop.permute.xlu0 %1233
    %1235 = vrot.lane.b32.xlu0 %v238, 112
    %v1236 = vpop.permute.xlu0 %1235
    %v1237 = vsel %vm324, %v1234, 0
    %v1239 = vsel %vm324, %v1236, 0
    %1241 = vmatprep.subr.mxu0 0.0
    %1242 = vmatpush1.xpose.msra.mxu0 %v1239
    %1243 = vmatprep.subr.mxu0 0.0
    %1244 = vmatpush1.xpose.msra.mxu0 0.0
    %1245 = vmatprep.subr.mxu0 0.0
    %1246 = vmatpush1.xpose.msra.mxu0 0.0
    %1247 = vmatprep.subr.mxu0 0.0
    %1248 = vmatpush1.xpose.msra.mxu0 0.0
    %1249 = vmatprep.subr.mxu0 0.0
    %1250 = vmatpush1.xpose.msra.mxu0 0.0
    %1251 = vmatprep.subr.mxu0 0.0
    %1252 = vmatpush1.xpose.msra.mxu0 0.0
    %1253 = vmatprep.subr.mxu0 0.0
    %1254 = vmatpush1.xpose.msra.mxu0 0.0
    %1255 = vmatprep.subr.mxu0 0.0
    %1256 = vmatpush1.xpose.msra.mxu0 0.0
    %1257 = vmatprep.subr.mxu0 0.0
    %1258 = vmatpush1.xpose.msra.mxu0 0.0
    %1259 = vmatprep.subr.mxu0 0.0
    %1260 = vmatpush1.xpose.msra.mxu0 0.0
    %1261 = vmatprep.subr.mxu0 0.0
    %1262 = vmatpush1.xpose.msra.mxu0 0.0
    %1263 = vmatprep.subr.mxu0 0.0
    %1264 = vmatpush1.xpose.msra.mxu0 0.0
    %1265 = vmatprep.subr.mxu0 0.0
    %1266 = vmatpush1.xpose.msra.mxu0 0.0
    %1267 = vmatprep.subr.mxu0 0.0
    %1268 = vmatpush1.xpose.msra.mxu0 0.0
    %1269 = vmatprep.subr.mxu0 0.0
    %1270 = vmatpush1.xpose.msra.mxu0 0.0
    %1271 = vmatprep.subr.mxu0 0.0
    %1272 = vmatpush1.xpose.msra.mxu0 0.0
    %1273 = vmatprep.subr.mxu0 0.0
    %1274 = vmatpush1.xpose.msra.mxu0 0.0
    %1275 = vmatprep.subr.mxu0 0.0
    %1276 = vmatpush1.xpose.msra.mxu0 0.0
    %1277 = vmatprep.subr.mxu0 0.0
    %1278 = vmatpush1.xpose.msra.mxu0 0.0
    %1279 = vmatprep.subr.mxu0 0.0
    %1280 = vmatpush1.xpose.msra.mxu0 0.0
    %1281 = vmatprep.subr.mxu0 0.0
    %1282 = vmatpush1.xpose.msra.mxu0 0.0
    %1283 = vmatprep.subr.mxu0 0.0
    %1284 = vmatpush1.xpose.msra.mxu0 0.0
    %1285 = vmatprep.subr.mxu0 0.0
    %1286 = vmatpush1.xpose.msra.mxu0 0.0
    %1287 = vmatprep.subr.mxu0 0.0
    %1288 = vmatpush1.xpose.msra.mxu0 0.0
    %1289 = vmatprep.subr.mxu0 0.0
    %1290 = vmatpush1.xpose.msra.mxu0 0.0
    %1291 = vmatprep.subr.mxu0 0.0
    %1292 = vmatpush1.xpose.msra.mxu0 0.0
    %1293 = vmatprep.subr.mxu0 0.0
    %1294 = vmatpush1.xpose.msra.mxu0 0.0
    %1295 = vmatprep.subr.mxu0 0.0
    %1296 = vmatpush1.xpose.msra.mxu0 0.0
    %1297 = vmatprep.subr.mxu0 0.0
    %1298 = vmatpush1.xpose.msra.mxu0 0.0
    %1299 = vmatprep.subr.mxu0 0.0
    %1300 = vmatpush1.xpose.msra.mxu0 0.0
    %1301 = vmatprep.subr.mxu0 0.0
    %1302 = vmatpush1.xpose.msra.mxu0 0.0
    %1303 = vmatprep.subr.mxu0 0.0
    %1304 = vmatpush1.xpose.msra.mxu0 0.0
    %1305 = vmatprep.mubr.f32.mxu0 0.0
    %1306 = vmatmul.mubr.f32.gmra.mrb[0].mxu0 %v1237
    %v1307 = vpop.f32.mrb[0].mxu0
    %v1308 = vadd.f32 %v48, %v1307
    %v1309 = vpop.f32.mrb[0].mxu0
    %1310 = vdwg.mxu0
    %v1311 = vadd.f32 %v1230, %v482
    %v1312 = vadd.f32 %v1308, %v486
    %v1313 = vsel %vm324, %v1311, -inf
    %1314 = vmax.xlane.f32.xlu0 %v1313
    %v1315 = vpop.xlane.xlu0 %1314
    %v1316 = vsel %vm324, %v1312, -inf
    %1317 = vmax.xlane.f32.xlu0 %v1316
    %v1318 = vpop.xlane.xlu0 %1317
    %v1319 = vsub.f32 %v1311, %v1315
    %v1320 = vsub.f32 %v1312, %v1318
    %v1321 = vmul.f32 %v1319, 1.442695
    %v1322 = vpow.pop %v1321
    %v1323 = vmul.f32 %v1320, 1.442695
    %v1324 = vpow.pop %v1323
    %v1325 = vsel %vm324, %v1322, 0.0
    %1326 = vadd.xlane.f32.xlu0 %v1325
    %v1327 = vpop.xlane.xlu0 %1326
    %v1328 = vsel %vm324, %v1324, 0.0
    %1329 = vadd.xlane.f32.xlu0 %v1328
    %v1330 = vpop.xlane.xlu0 %1329
    %v1331 = vrcp.pop %v1327
    %v1332 = vrcp.pop %v1330
    %v1333 = vmul.f32 %v1322, %v1331
    %v1334 = vmul.f32 %v1324, %v1332
    %1335 = vrot.lane.b32.xlu0 %v312, 112
    %v1336 = vpop.permute.xlu0 %1335
    %v1339 = vsel %vm324, %v1333, 0
    %1341 = vmatprep.subr.mxu0 0.0
    %1342 = vmatpush1.msra.mxu0 %v1336
    %1343 = vmatprep.subr.mxu0 0.0
    %1344 = vmatpush1.msra.mxu0 0.0
    %1345 = vmatprep.subr.mxu0 0.0
    %1346 = vmatpush1.msra.mxu0 0.0
    %1347 = vmatprep.subr.mxu0 0.0
    %1348 = vmatpush1.msra.mxu0 0.0
    %1349 = vmatprep.subr.mxu0 0.0
    %1350 = vmatpush1.msra.mxu0 0.0
    %1351 = vmatprep.subr.mxu0 0.0
    %1352 = vmatpush1.msra.mxu0 0.0
    %1353 = vmatprep.subr.mxu0 0.0
    %1354 = vmatpush1.msra.mxu0 0.0
    %1355 = vmatprep.subr.mxu0 0.0
    %1356 = vmatpush1.msra.mxu0 0.0
    %1357 = vmatprep.subr.mxu0 0.0
    %1358 = vmatpush1.msra.mxu0 0.0
    %1359 = vmatprep.subr.mxu0 0.0
    %1360 = vmatpush1.msra.mxu0 0.0
    %1361 = vmatprep.subr.mxu0 0.0
    %1362 = vmatpush1.msra.mxu0 0.0
    %1363 = vmatprep.subr.mxu0 0.0
    %1364 = vmatpush1.msra.mxu0 0.0
    %1365 = vmatprep.subr.mxu0 0.0
    %1366 = vmatpush1.msra.mxu0 0.0
    %1367 = vmatprep.subr.mxu0 0.0
    %1368 = vmatpush1.msra.mxu0 0.0
    %1369 = vmatprep.subr.mxu0 0.0
    %1370 = vmatpush1.msra.mxu0 0.0
    %1371 = vmatprep.subr.mxu0 0.0
    %1372 = vmatpush1.msra.mxu0 0.0
    %1373 = vmatprep.subr.mxu0 0.0
    %1374 = vmatpush1.msra.mxu0 0.0
    %1375 = vmatprep.subr.mxu0 0.0
    %1376 = vmatpush1.msra.mxu0 0.0
    %1377 = vmatprep.subr.mxu0 0.0
    %1378 = vmatpush1.msra.mxu0 0.0
    %1379 = vmatprep.subr.mxu0 0.0
    %1380 = vmatpush1.msra.mxu0 0.0
    %1381 = vmatprep.subr.mxu0 0.0
    %1382 = vmatpush1.msra.mxu0 0.0
    %1383 = vmatprep.subr.mxu0 0.0
    %1384 = vmatpush1.msra.mxu0 0.0
    %1385 = vmatprep.subr.mxu0 0.0
    %1386 = vmatpush1.msra.mxu0 0.0
    %1387 = vmatprep.subr.mxu0 0.0
    %1388 = vmatpush1.msra.mxu0 0.0
    %1389 = vmatprep.subr.mxu0 0.0
    %1390 = vmatpush1.msra.mxu0 0.0
    %1391 = vmatprep.subr.mxu0 0.0
    %1392 = vmatpush1.msra.mxu0 0.0
    %1393 = vmatprep.subr.mxu0 0.0
    %1394 = vmatpush1.msra.mxu0 0.0
    %1395 = vmatprep.subr.mxu0 0.0
    %1396 = vmatpush1.msra.mxu0 0.0
    %1397 = vmatprep.subr.mxu0 0.0
    %1398 = vmatpush1.msra.mxu0 0.0
    %1399 = vmatprep.subr.mxu0 0.0
    %1400 = vmatpush1.msra.mxu0 0.0
    %1401 = vmatprep.subr.mxu0 0.0
    %1402 = vmatpush1.msra.mxu0 0.0
    %1403 = vmatprep.subr.mxu0 0.0
    %1404 = vmatpush1.msra.mxu0 0.0
    %1405 = vmatprep.mubr.f32.mxu0 0.0
    %1406 = vmatmul.mubr.f32.gmra.mrb[0].mxu0 %v1339
    %v1407 = vpop.f32.mrb[0].mxu0
    %v1408 = vadd.f32 0.0, %v1407
    %v1409 = vpop.f32.mrb[0].mxu0
    %1410 = vdwg.mxu0
    %1411 = vrot.lane.b32.xlu0 %v317, 112
    %v1412 = vpop.permute.xlu0 %1411
    %v1415 = vsel %vm324, %v1334, 0
    %1417 = vmatprep.subr.mxu0 0.0
    %1418 = vmatpush1.msra.mxu0 %v1412
    %1419 = vmatprep.subr.mxu0 0.0
    %1420 = vmatpush1.msra.mxu0 0.0
    %1421 = vmatprep.subr.mxu0 0.0
    %1422 = vmatpush1.msra.mxu0 0.0
    %1423 = vmatprep.subr.mxu0 0.0
    %1424 = vmatpush1.msra.mxu0 0.0
    %1425 = vmatprep.subr.mxu0 0.0
    %1426 = vmatpush1.msra.mxu0 0.0
    %1427 = vmatprep.subr.mxu0 0.0
    %1428 = vmatpush1.msra.mxu0 0.0
    %1429 = vmatprep.subr.mxu0 0.0
    %1430 = vmatpush1.msra.mxu0 0.0
    %1431 = vmatprep.subr.mxu0 0.0
    %1432 = vmatpush1.msra.mxu0 0.0
    %1433 = vmatprep.subr.mxu0 0.0
    %1434 = vmatpush1.msra.mxu0 0.0
    %1435 = vmatprep.subr.mxu0 0.0
    %1436 = vmatpush1.msra.mxu0 0.0
    %1437 = vmatprep.subr.mxu0 0.0
    %1438 = vmatpush1.msra.mxu0 0.0
    %1439 = vmatprep.subr.mxu0 0.0
    %1440 = vmatpush1.msra.mxu0 0.0
    %1441 = vmatprep.subr.mxu0 0.0
    %1442 = vmatpush1.msra.mxu0 0.0
    %1443 = vmatprep.subr.mxu0 0.0
    %1444 = vmatpush1.msra.mxu0 0.0
    %1445 = vmatprep.subr.mxu0 0.0
    %1446 = vmatpush1.msra.mxu0 0.0
    %1447 = vmatprep.subr.mxu0 0.0
    %1448 = vmatpush1.msra.mxu0 0.0
    %1449 = vmatprep.subr.mxu0 0.0
    %1450 = vmatpush1.msra.mxu0 0.0
    %1451 = vmatprep.subr.mxu0 0.0
    %1452 = vmatpush1.msra.mxu0 0.0
    %1453 = vmatprep.subr.mxu0 0.0
    %1454 = vmatpush1.msra.mxu0 0.0
    %1455 = vmatprep.subr.mxu0 0.0
    %1456 = vmatpush1.msra.mxu0 0.0
    %1457 = vmatprep.subr.mxu0 0.0
    %1458 = vmatpush1.msra.mxu0 0.0
    %1459 = vmatprep.subr.mxu0 0.0
    %1460 = vmatpush1.msra.mxu0 0.0
    %1461 = vmatprep.subr.mxu0 0.0
    %1462 = vmatpush1.msra.mxu0 0.0
    %1463 = vmatprep.subr.mxu0 0.0
    %1464 = vmatpush1.msra.mxu0 0.0
    %1465 = vmatprep.subr.mxu0 0.0
    %1466 = vmatpush1.msra.mxu0 0.0
    %1467 = vmatprep.subr.mxu0 0.0
    %1468 = vmatpush1.msra.mxu0 0.0
    %1469 = vmatprep.subr.mxu0 0.0
    %1470 = vmatpush1.msra.mxu0 0.0
    %1471 = vmatprep.subr.mxu0 0.0
    %1472 = vmatpush1.msra.mxu0 0.0
    %1473 = vmatprep.subr.mxu0 0.0
    %1474 = vmatpush1.msra.mxu0 0.0
    %1475 = vmatprep.subr.mxu0 0.0
    %1476 = vmatpush1.msra.mxu0 0.0
    %1477 = vmatprep.subr.mxu0 0.0
    %1478 = vmatpush1.msra.mxu0 0.0
    %1479 = vmatprep.subr.mxu0 0.0
    %1480 = vmatpush1.msra.mxu0 0.0
    %1481 = vmatprep.mubr.f32.mxu0 0.0
    %1482 = vmatmul.mubr.f32.gmra.mrb[0].mxu0 %v1415
    %v1483 = vpop.f32.mrb[0].mxu0
    %v1484 = vadd.f32 0.0, %v1483
    %v1485 = vpop.f32.mrb[0].mxu0
    %1486 = vdwg.mxu0
    %v1488 = vsel %vm324, %v1408, 0
    %v1491 = vsel %vm324, %v1484, 0
    %1493 = vmatprep.subr.mxu0 0.0
    %1494 = vmatpush1.msra.mxu0 %v322
    %1495 = vmatprep.subr.mxu0 0.0
    %1496 = vmatpush1.msra.mxu0 0.0
    %1497 = vmatprep.subr.mxu0 0.0
    %1498 = vmatpush1.msra.mxu0 0.0
    %1499 = vmatprep.subr.mxu0 0.0
    %1500 = vmatpush1.msra.mxu0 0.0
    %1501 = vmatprep.subr.mxu0 0.0
    %1502 = vmatpush1.msra.mxu0 0.0
    %1503 = vmatprep.subr.mxu0 0.0
    %1504 = vmatpush1.msra.mxu0 0.0
    %1505 = vmatprep.subr.mxu0 0.0
    %1506 = vmatpush1.msra.mxu0 0.0
    %1507 = vmatprep.subr.mxu0 0.0
    %1508 = vmatpush1.msra.mxu0 0.0
    %1509 = vmatprep.subr.mxu0 0.0
    %1510 = vmatpush1.msra.mxu0 0.0
    %1511 = vmatprep.subr.mxu0 0.0
    %1512 = vmatpush1.msra.mxu0 0.0
    %1513 = vmatprep.subr.mxu0 0.0
    %1514 = vmatpush1.msra.mxu0 0.0
    %1515 = vmatprep.subr.mxu0 0.0
    %1516 = vmatpush1.msra.mxu0 0.0
    %1517 = vmatprep.subr.mxu0 0.0
    %1518 = vmatpush1.msra.mxu0 0.0
    %1519 = vmatprep.subr.mxu0 0.0
    %1520 = vmatpush1.msra.mxu0 0.0
    %1521 = vmatprep.subr.mxu0 0.0
    %1522 = vmatpush1.msra.mxu0 0.0
    %1523 = vmatprep.subr.mxu0 0.0
    %1524 = vmatpush1.msra.mxu0 0.0
    %1525 = vmatprep.subr.mxu0 0.0
    %1526 = vmatpush1.msra.mxu0 0.0
    %1527 = vmatprep.subr.mxu0 0.0
    %1528 = vmatpush1.msra.mxu0 0.0
    %1529 = vmatprep.subr.mxu0 0.0
    %1530 = vmatpush1.msra.mxu0 0.0
    %1531 = vmatprep.subr.mxu0 0.0
    %1532 = vmatpush1.msra.mxu0 0.0
    %1533 = vmatprep.subr.mxu0 0.0
    %1534 = vmatpush1.msra.mxu0 0.0
    %1535 = vmatprep.subr.mxu0 0.0
    %1536 = vmatpush1.msra.mxu0 0.0
    %1537 = vmatprep.subr.mxu0 0.0
    %1538 = vmatpush1.msra.mxu0 0.0
    %1539 = vmatprep.subr.mxu0 0.0
    %1540 = vmatpush1.msra.mxu0 0.0
    %1541 = vmatprep.subr.mxu0 0.0
    %1542 = vmatpush1.msra.mxu0 0.0
    %1543 = vmatprep.subr.mxu0 0.0
    %1544 = vmatpush1.msra.mxu0 0.0
    %1545 = vmatprep.subr.mxu0 0.0
    %1546 = vmatpush1.msra.mxu0 0.0
    %1547 = vmatprep.subr.mxu0 0.0
    %1548 = vmatpush1.msra.mxu0 0.0
    %1549 = vmatprep.subr.mxu0 0.0
    %1550 = vmatpush1.msra.mxu0 0.0
    %1551 = vmatprep.subr.mxu0 0.0
    %1552 = vmatpush1.msra.mxu0 0.0
    %1553 = vmatprep.subr.mxu0 0.0
    %1554 = vmatpush1.msra.mxu0 0.0
    %1555 = vmatprep.subr.mxu0 0.0
    %1556 = vmatpush1.msra.mxu0 0.0
    %1557 = vmatprep.mubr.f32.mxu0 0.0
    %1558 = vmatmul.mubr.f32.gmra.mrb[0].mxu0 %v1488
    %v1559 = vpop.f32.mrb[0].mxu0
    %v1560 = vadd.f32 0.0, %v1559
    %v1561 = vpop.f32.mrb[0].mxu0
    %1562 = vmatprep.mubr.f32.mxu0 0.0
    %1563 = vmatmul.mubr.f32.gmra.mrb[0].mxu0 %v1491
    %v1564 = vpop.f32.mrb[0].mxu0
    %v1565 = vadd.f32 0.0, %v1564
    %v1566 = vpop.f32.mrb[0].mxu0
    %1567 = vdwg.mxu0
    %v1568 = vadd.f32 %v1147, %v1560
    %v1569 = vadd.f32 %v1152, %v1565
    %1570 = vrot.lane.b32.xlu0 %v154, 104
    %v1571 = vpop.permute.xlu0 %1570
    %1572 = vrot.lane.b32.xlu0 %v233, 104
    %v1573 = vpop.permute.xlu0 %1572
    %v1574 = vsel %vm324, %v1571, 0
    %v1576 = vsel %vm324, %v1573, 0
    %1578 = vmatprep.subr.mxu0 0.0
    %1579 = vmatpush1.xpose.msra.mxu0 %v1576
    %1580 = vmatprep.subr.mxu0 0.0
    %1581 = vmatpush1.xpose.msra.mxu0 0.0
    %1582 = vmatprep.subr.mxu0 0.0
    %1583 = vmatpush1.xpose.msra.mxu0 0.0
    %1584 = vmatprep.subr.mxu0 0.0
    %1585 = vmatpush1.xpose.msra.mxu0 0.0
    %1586 = vmatprep.subr.mxu0 0.0
    %1587 = vmatpush1.xpose.msra.mxu0 0.0
    %1588 = vmatprep.subr.mxu0 0.0
    %1589 = vmatpush1.xpose.msra.mxu0 0.0
    %1590 = vmatprep.subr.mxu0 0.0
    %1591 = vmatpush1.xpose.msra.mxu0 0.0
    %1592 = vmatprep.subr.mxu0 0.0
    %1593 = vmatpush1.xpose.msra.mxu0 0.0
    %1594 = vmatprep.subr.mxu0 0.0
    %1595 = vmatpush1.xpose.msra.mxu0 0.0
    %1596 = vmatprep.subr.mxu0 0.0
    %1597 = vmatpush1.xpose.msra.mxu0 0.0
    %1598 = vmatprep.subr.mxu0 0.0
    %1599 = vmatpush1.xpose.msra.mxu0 0.0
    %1600 = vmatprep.subr.mxu0 0.0
    %1601 = vmatpush1.xpose.msra.mxu0 0.0
    %1602 = vmatprep.subr.mxu0 0.0
    %1603 = vmatpush1.xpose.msra.mxu0 0.0
    %1604 = vmatprep.subr.mxu0 0.0
    %1605 = vmatpush1.xpose.msra.mxu0 0.0
    %1606 = vmatprep.subr.mxu0 0.0
    %1607 = vmatpush1.xpose.msra.mxu0 0.0
    %1608 = vmatprep.subr.mxu0 0.0
    %1609 = vmatpush1.xpose.msra.mxu0 0.0
    %1610 = vmatprep.subr.mxu0 0.0
    %1611 = vmatpush1.xpose.msra.mxu0 0.0
    %1612 = vmatprep.subr.mxu0 0.0
    %1613 = vmatpush1.xpose.msra.mxu0 0.0
    %1614 = vmatprep.subr.mxu0 0.0
    %1615 = vmatpush1.xpose.msra.mxu0 0.0
    %1616 = vmatprep.subr.mxu0 0.0
    %1617 = vmatpush1.xpose.msra.mxu0 0.0
    %1618 = vmatprep.subr.mxu0 0.0
    %1619 = vmatpush1.xpose.msra.mxu0 0.0
    %1620 = vmatprep.subr.mxu0 0.0
    %1621 = vmatpush1.xpose.msra.mxu0 0.0
    %1622 = vmatprep.subr.mxu0 0.0
    %1623 = vmatpush1.xpose.msra.mxu0 0.0
    %1624 = vmatprep.subr.mxu0 0.0
    %1625 = vmatpush1.xpose.msra.mxu0 0.0
    %1626 = vmatprep.subr.mxu0 0.0
    %1627 = vmatpush1.xpose.msra.mxu0 0.0
    %1628 = vmatprep.subr.mxu0 0.0
    %1629 = vmatpush1.xpose.msra.mxu0 0.0
    %1630 = vmatprep.subr.mxu0 0.0
    %1631 = vmatpush1.xpose.msra.mxu0 0.0
    %1632 = vmatprep.subr.mxu0 0.0
    %1633 = vmatpush1.xpose.msra.mxu0 0.0
    %1634 = vmatprep.subr.mxu0 0.0
    %1635 = vmatpush1.xpose.msra.mxu0 0.0
    %1636 = vmatprep.subr.mxu0 0.0
    %1637 = vmatpush1.xpose.msra.mxu0 0.0
    %1638 = vmatprep.subr.mxu0 0.0
    %1639 = vmatpush1.xpose.msra.mxu0 0.0
    %1640 = vmatprep.subr.mxu0 0.0
    %1641 = vmatpush1.xpose.msra.mxu0 0.0
    %1642 = vmatprep.mubr.f32.mxu0 0.0
    %1643 = vmatmul.mubr.f32.gmra.mrb[0].mxu0 %v1574
    %v1644 = vpop.f32.mrb[0].mxu0
    %v1645 = vadd.f32 %v49, %v1644
    %v1646 = vpop.f32.mrb[0].mxu0
    %1647 = vdwg.mxu0
    %1648 = vrot.lane.b32.xlu0 %v159, 104
    %v1649 = vpop.permute.xlu0 %1648
    %1650 = vrot.lane.b32.xlu0 %v238, 104
    %v1651 = vpop.permute.xlu0 %1650
    %v1652 = vsel %vm324, %v1649, 0
    %v1654 = vsel %vm324, %v1651, 0
    %1656 = vmatprep.subr.mxu0 0.0
    %1657 = vmatpush1.xpose.msra.mxu0 %v1654
    %1658 = vmatprep.subr.mxu0 0.0
    %1659 = vmatpush1.xpose.msra.mxu0 0.0
    %1660 = vmatprep.subr.mxu0 0.0
    %1661 = vmatpush1.xpose.msra.mxu0 0.0
    %1662 = vmatprep.subr.mxu0 0.0
    %1663 = vmatpush1.xpose.msra.mxu0 0.0
    %1664 = vmatprep.subr.mxu0 0.0
    %1665 = vmatpush1.xpose.msra.mxu0 0.0
    %1666 = vmatprep.subr.mxu0 0.0
    %1667 = vmatpush1.xpose.msra.mxu0 0.0
    %1668 = vmatprep.subr.mxu0 0.0
    %1669 = vmatpush1.xpose.msra.mxu0 0.0
    %1670 = vmatprep.subr.mxu0 0.0
    %1671 = vmatpush1.xpose.msra.mxu0 0.0
    %1672 = vmatprep.subr.mxu0 0.0
    %1673 = vmatpush1.xpose.msra.mxu0 0.0
    %1674 = vmatprep.subr.mxu0 0.0
    %1675 = vmatpush1.xpose.msra.mxu0 0.0
    %1676 = vmatprep.subr.mxu0 0.0
    %1677 = vmatpush1.xpose.msra.mxu0 0.0
    %1678 = vmatprep.subr.mxu0 0.0
    %1679 = vmatpush1.xpose.msra.mxu0 0.0
    %1680 = vmatprep.subr.mxu0 0.0
    %1681 = vmatpush1.xpose.msra.mxu0 0.0
    %1682 = vmatprep.subr.mxu0 0.0
    %1683 = vmatpush1.xpose.msra.mxu0 0.0
    %1684 = vmatprep.subr.mxu0 0.0
    %1685 = vmatpush1.xpose.msra.mxu0 0.0
    %1686 = vmatprep.subr.mxu0 0.0
    %1687 = vmatpush1.xpose.msra.mxu0 0.0
    %1688 = vmatprep.subr.mxu0 0.0
    %1689 = vmatpush1.xpose.msra.mxu0 0.0
    %1690 = vmatprep.subr.mxu0 0.0
    %1691 = vmatpush1.xpose.msra.mxu0 0.0
    %1692 = vmatprep.subr.mxu0 0.0
    %1693 = vmatpush1.xpose.msra.mxu0 0.0
    %1694 = vmatprep.subr.mxu0 0.0
    %1695 = vmatpush1.xpose.msra.mxu0 0.0
    %1696 = vmatprep.subr.mxu0 0.0
    %1697 = vmatpush1.xpose.msra.mxu0 0.0
    %1698 = vmatprep.subr.mxu0 0.0
    %1699 = vmatpush1.xpose.msra.mxu0 0.0
    %1700 = vmatprep.subr.mxu0 0.0
    %1701 = vmatpush1.xpose.msra.mxu0 0.0
    %1702 = vmatprep.subr.mxu0 0.0
    %1703 = vmatpush1.xpose.msra.mxu0 0.0
    %1704 = vmatprep.subr.mxu0 0.0
    %1705 = vmatpush1.xpose.msra.mxu0 0.0
    %1706 = vmatprep.subr.mxu0 0.0
    %1707 = vmatpush1.xpose.msra.mxu0 0.0
    %1708 = vmatprep.subr.mxu0 0.0
    %1709 = vmatpush1.xpose.msra.mxu0 0.0
    %1710 = vmatprep.subr.mxu0 0.0
    %1711 = vmatpush1.xpose.msra.mxu0 0.0
    %1712 = vmatprep.subr.mxu0 0.0
    %1713 = vmatpush1.xpose.msra.mxu0 0.0
    %1714 = vmatprep.subr.mxu0 0.0
    %1715 = vmatpush1.xpose.msra.mxu0 0.0
    %1716 = vmatprep.subr.mxu0 0.0
    %1717 = vmatpush1.xpose.msra.mxu0 0.0
    %1718 = vmatprep.subr.mxu0 0.0
    %1719 = vmatpush1.xpose.msra.mxu0 0.0
    %1720 = vmatprep.mubr.f32.mxu0 0.0
    %1721 = vmatmul.mubr.f32.gmra.mrb[0].mxu0 %v1652
    %v1722 = vpop.f32.mrb[0].mxu0
    %v1723 = vadd.f32 %v49, %v1722
    %v1724 = vpop.f32.mrb[0].mxu0
    %1725 = vdwg.mxu0
    %v1726 = vadd.f32 %v1645, %v482
    %v1727 = vadd.f32 %v1723, %v486
    %v1728 = vsel %vm324, %v1726, -inf
    %1729 = vmax.xlane.f32.xlu0 %v1728
    %v1730 = vpop.xlane.xlu0 %1729
    %v1731 = vsel %vm324, %v1727, -inf
    %1732 = vmax.xlane.f32.xlu0 %v1731
    %v1733 = vpop.xlane.xlu0 %1732
    %v1734 = vsub.f32 %v1726, %v1730
    %v1735 = vsub.f32 %v1727, %v1733
    %v1736 = vmul.f32 %v1734, 1.442695
    %v1737 = vpow.pop %v1736
    %v1738 = vmul.f32 %v1735, 1.442695
    %v1739 = vpow.pop %v1738
    %v1740 = vsel %vm324, %v1737, 0.0
    %1741 = vadd.xlane.f32.xlu0 %v1740
    %v1742 = vpop.xlane.xlu0 %1741
    %v1743 = vsel %vm324, %v1739, 0.0
    %1744 = vadd.xlane.f32.xlu0 %v1743
    %v1745 = vpop.xlane.xlu0 %1744
    %v1746 = vrcp.pop %v1742
    %v1747 = vrcp.pop %v1745
    %v1748 = vmul.f32 %v1737, %v1746
    %v1749 = vmul.f32 %v1739, %v1747
    %1750 = vrot.lane.b32.xlu0 %v312, 104
    %v1751 = vpop.permute.xlu0 %1750
    %v1754 = vsel %vm324, %v1748, 0
    %1756 = vmatprep.subr.mxu0 0.0
    %1757 = vmatpush1.msra.mxu0 %v1751
    %1758 = vmatprep.subr.mxu0 0.0
    %1759 = vmatpush1.msra.mxu0 0.0
    %1760 = vmatprep.subr.mxu0 0.0
    %1761 = vmatpush1.msra.mxu0 0.0
    %1762 = vmatprep.subr.mxu0 0.0
    %1763 = vmatpush1.msra.mxu0 0.0
    %1764 = vmatprep.subr.mxu0 0.0
    %1765 = vmatpush1.msra.mxu0 0.0
    %1766 = vmatprep.subr.mxu0 0.0
    %1767 = vmatpush1.msra.mxu0 0.0
    %1768 = vmatprep.subr.mxu0 0.0
    %1769 = vmatpush1.msra.mxu0 0.0
    %1770 = vmatprep.subr.mxu0 0.0
    %1771 = vmatpush1.msra.mxu0 0.0
    %1772 = vmatprep.subr.mxu0 0.0
    %1773 = vmatpush1.msra.mxu0 0.0
    %1774 = vmatprep.subr.mxu0 0.0
    %1775 = vmatpush1.msra.mxu0 0.0
    %1776 = vmatprep.subr.mxu0 0.0
    %1777 = vmatpush1.msra.mxu0 0.0
    %1778 = vmatprep.subr.mxu0 0.0
    %1779 = vmatpush1.msra.mxu0 0.0
    %1780 = vmatprep.subr.mxu0 0.0
    %1781 = vmatpush1.msra.mxu0 0.0
    %1782 = vmatprep.subr.mxu0 0.0
    %1783 = vmatpush1.msra.mxu0 0.0
    %1784 = vmatprep.subr.mxu0 0.0
    %1785 = vmatpush1.msra.mxu0 0.0
    %1786 = vmatprep.subr.mxu0 0.0
    %1787 = vmatpush1.msra.mxu0 0.0
    %1788 = vmatprep.subr.mxu0 0.0
    %1789 = vmatpush1.msra.mxu0 0.0
    %1790 = vmatprep.subr.mxu0 0.0
    %1791 = vmatpush1.msra.mxu0 0.0
    %1792 = vmatprep.subr.mxu0 0.0
    %1793 = vmatpush1.msra.mxu0 0.0
    %1794 = vmatprep.subr.mxu0 0.0
    %1795 = vmatpush1.msra.mxu0 0.0
    %1796 = vmatprep.subr.mxu0 0.0
    %1797 = vmatpush1.msra.mxu0 0.0
    %1798 = vmatprep.subr.mxu0 0.0
    %1799 = vmatpush1.msra.mxu0 0.0
    %1800 = vmatprep.subr.mxu0 0.0
    %1801 = vmatpush1.msra.mxu0 0.0
    %1802 = vmatprep.subr.mxu0 0.0
    %1803 = vmatpush1.msra.mxu0 0.0
    %1804 = vmatprep.subr.mxu0 0.0
    %1805 = vmatpush1.msra.mxu0 0.0
    %1806 = vmatprep.subr.mxu0 0.0
    %1807 = vmatpush1.msra.mxu0 0.0
    %1808 = vmatprep.subr.mxu0 0.0
    %1809 = vmatpush1.msra.mxu0 0.0
    %1810 = vmatprep.subr.mxu0 0.0
    %1811 = vmatpush1.msra.mxu0 0.0
    %1812 = vmatprep.subr.mxu0 0.0
    %1813 = vmatpush1.msra.mxu0 0.0
    %1814 = vmatprep.subr.mxu0 0.0
    %1815 = vmatpush1.msra.mxu0 0.0
    %1816 = vmatprep.subr.mxu0 0.0
    %1817 = vmatpush1.msra.mxu0 0.0
    %1818 = vmatprep.subr.mxu0 0.0
    %1819 = vmatpush1.msra.mxu0 0.0
    %1820 = vmatprep.mubr.f32.mxu0 0.0
    %1821 = vmatmul.mubr.f32.gmra.mrb[0].mxu0 %v1754
    %v1822 = vpop.f32.mrb[0].mxu0
    %v1823 = vadd.f32 0.0, %v1822
    %v1824 = vpop.f32.mrb[0].mxu0
    %1825 = vdwg.mxu0
    %1826 = vrot.lane.b32.xlu0 %v317, 104
    %v1827 = vpop.permute.xlu0 %1826
    %v1830 = vsel %vm324, %v1749, 0
    %1832 = vmatprep.subr.mxu0 0.0
    %1833 = vmatpush1.msra.mxu0 %v1827
    %1834 = vmatprep.subr.mxu0 0.0
    %1835 = vmatpush1.msra.mxu0 0.0
    %1836 = vmatprep.subr.mxu0 0.0
    %1837 = vmatpush1.msra.mxu0 0.0
    %1838 = vmatprep.subr.mxu0 0.0
    %1839 = vmatpush1.msra.mxu0 0.0
    %1840 = vmatprep.subr.mxu0 0.0
    %1841 = vmatpush1.msra.mxu0 0.0
    %1842 = vmatprep.subr.mxu0 0.0
    %1843 = vmatpush1.msra.mxu0 0.0
    %1844 = vmatprep.subr.mxu0 0.0
    %1845 = vmatpush1.msra.mxu0 0.0
    %1846 = vmatprep.subr.mxu0 0.0
    %1847 = vmatpush1.msra.mxu0 0.0
    %1848 = vmatprep.subr.mxu0 0.0
    %1849 = vmatpush1.msra.mxu0 0.0
    %1850 = vmatprep.subr.mxu0 0.0
    %1851 = vmatpush1.msra.mxu0 0.0
    %1852 = vmatprep.subr.mxu0 0.0
    %1853 = vmatpush1.msra.mxu0 0.0
    %1854 = vmatprep.subr.mxu0 0.0
    %1855 = vmatpush1.msra.mxu0 0.0
    %1856 = vmatprep.subr.mxu0 0.0
    %1857 = vmatpush1.msra.mxu0 0.0
    %1858 = vmatprep.subr.mxu0 0.0
    %1859 = vmatpush1.msra.mxu0 0.0
    %1860 = vmatprep.subr.mxu0 0.0
    %1861 = vmatpush1.msra.mxu0 0.0
    %1862 = vmatprep.subr.mxu0 0.0
    %1863 = vmatpush1.msra.mxu0 0.0
    %1864 = vmatprep.subr.mxu0 0.0
    %1865 = vmatpush1.msra.mxu0 0.0
    %1866 = vmatprep.subr.mxu0 0.0
    %1867 = vmatpush1.msra.mxu0 0.0
    %1868 = vmatprep.subr.mxu0 0.0
    %1869 = vmatpush1.msra.mxu0 0.0
    %1870 = vmatprep.subr.mxu0 0.0
    %1871 = vmatpush1.msra.mxu0 0.0
    %1872 = vmatprep.subr.mxu0 0.0
    %1873 = vmatpush1.msra.mxu0 0.0
    %1874 = vmatprep.subr.mxu0 0.0
    %1875 = vmatpush1.msra.mxu0 0.0
    %1876 = vmatprep.subr.mxu0 0.0
    %1877 = vmatpush1.msra.mxu0 0.0
    %1878 = vmatprep.subr.mxu0 0.0
    %1879 = vmatpush1.msra.mxu0 0.0
    %1880 = vmatprep.subr.mxu0 0.0
    %1881 = vmatpush1.msra.mxu0 0.0
    %1882 = vmatprep.subr.mxu0 0.0
    %1883 = vmatpush1.msra.mxu0 0.0
    %1884 = vmatprep.subr.mxu0 0.0
    %1885 = vmatpush1.msra.mxu0 0.0
    %1886 = vmatprep.subr.mxu0 0.0
    %1887 = vmatpush1.msra.mxu0 0.0
    %1888 = vmatprep.subr.mxu0 0.0
    %1889 = vmatpush1.msra.mxu0 0.0
    %1890 = vmatprep.subr.mxu0 0.0
    %1891 = vmatpush1.msra.mxu0 0.0
    %1892 = vmatprep.subr.mxu0 0.0
    %1893 = vmatpush1.msra.mxu0 0.0
    %1894 = vmatprep.subr.mxu0 0.0
    %1895 = vmatpush1.msra.mxu0 0.0
    %1896 = vmatprep.mubr.f32.mxu0 0.0
    %1897 = vmatmul.mubr.f32.gmra.mrb[0].mxu0 %v1830
    %v1898 = vpop.f32.mrb[0].mxu0
    %v1899 = vadd.f32 0.0, %v1898
    %v1900 = vpop.f32.mrb[0].mxu0
    %1901 = vdwg.mxu0
    %v1903 = vsel %vm324, %v1823, 0
    %v1906 = vsel %vm324, %v1899, 0
    %1908 = vmatprep.subr.mxu0 0.0
    %1909 = vmatpush1.msra.mxu0 %v323
    %1910 = vmatprep.subr.mxu0 0.0
    %1911 = vmatpush1.msra.mxu0 0.0
    %1912 = vmatprep.subr.mxu0 0.0
    %1913 = vmatpush1.msra.mxu0 0.0
    %1914 = vmatprep.subr.mxu0 0.0
    %1915 = vmatpush1.msra.mxu0 0.0
    %1916 = vmatprep.subr.mxu0 0.0
    %1917 = vmatpush1.msra.mxu0 0.0
    %1918 = vmatprep.subr.mxu0 0.0
    %1919 = vmatpush1.msra.mxu0 0.0
    %1920 = vmatprep.subr.mxu0 0.0
    %1921 = vmatpush1.msra.mxu0 0.0
    %1922 = vmatprep.subr.mxu0 0.0
    %1923 = vmatpush1.msra.mxu0 0.0
    %1924 = vmatprep.subr.mxu0 0.0
    %1925 = vmatpush1.msra.mxu0 0.0
    %1926 = vmatprep.subr.mxu0 0.0
    %1927 = vmatpush1.msra.mxu0 0.0
    %1928 = vmatprep.subr.mxu0 0.0
    %1929 = vmatpush1.msra.mxu0 0.0
    %1930 = vmatprep.subr.mxu0 0.0
    %1931 = vmatpush1.msra.mxu0 0.0
    %1932 = vmatprep.subr.mxu0 0.0
    %1933 = vmatpush1.msra.mxu0 0.0
    %1934 = vmatprep.subr.mxu0 0.0
    %1935 = vmatpush1.msra.mxu0 0.0
    %1936 = vmatprep.subr.mxu0 0.0
    %1937 = vmatpush1.msra.mxu0 0.0
    %1938 = vmatprep.subr.mxu0 0.0
    %1939 = vmatpush1.msra.mxu0 0.0
    %1940 = vmatprep.subr.mxu0 0.0
    %1941 = vmatpush1.msra.mxu0 0.0
    %1942 = vmatprep.subr.mxu0 0.0
    %1943 = vmatpush1.msra.mxu0 0.0
    %1944 = vmatprep.subr.mxu0 0.0
    %1945 = vmatpush1.msra.mxu0 0.0
    %1946 = vmatprep.subr.mxu0 0.0
    %1947 = vmatpush1.msra.mxu0 0.0
    %1948 = vmatprep.subr.mxu0 0.0
    %1949 = vmatpush1.msra.mxu0 0.0
    %1950 = vmatprep.subr.mxu0 0.0
    %1951 = vmatpush1.msra.mxu0 0.0
    %1952 = vmatprep.subr.mxu0 0.0
    %1953 = vmatpush1.msra.mxu0 0.0
    %1954 = vmatprep.subr.mxu0 0.0
    %1955 = vmatpush1.msra.mxu0 0.0
    %1956 = vmatprep.subr.mxu0 0.0
    %1957 = vmatpush1.msra.mxu0 0.0
    %1958 = vmatprep.subr.mxu0 0.0
    %1959 = vmatpush1.msra.mxu0 0.0
    %1960 = vmatprep.subr.mxu0 0.0
    %1961 = vmatpush1.msra.mxu0 0.0
    %1962 = vmatprep.subr.mxu0 0.0
    %1963 = vmatpush1.msra.mxu0 0.0
    %1964 = vmatprep.subr.mxu0 0.0
    %1965 = vmatpush1.msra.mxu0 0.0
    %1966 = vmatprep.subr.mxu0 0.0
    %1967 = vmatpush1.msra.mxu0 0.0
    %1968 = vmatprep.subr.mxu0 0.0
    %1969 = vmatpush1.msra.mxu0 0.0
    %1970 = vmatprep.subr.mxu0 0.0
    %1971 = vmatpush1.msra.mxu0 0.0
    %1972 = vmatprep.mubr.f32.mxu0 0.0
    %1973 = vmatmul.mubr.f32.gmra.mrb[0].mxu0 %v1903
    %v1974 = vpop.f32.mrb[0].mxu0
    %v1975 = vadd.f32 0.0, %v1974
    %v1976 = vpop.f32.mrb[0].mxu0
    %1977 = vmatprep.mubr.f32.mxu0 0.0
    %1978 = vmatmul.mubr.f32.gmra.mrb[0].mxu0 %v1906
    %v1979 = vpop.f32.mrb[0].mxu0
    %v1980 = vadd.f32 0.0, %v1979
    %v1981 = vpop.f32.mrb[0].mxu0
    %1982 = vdwg.mxu0
    %v1983 = vadd.f32 %v1568, %v1975
    %v1984 = vadd.f32 %v1569, %v1980
    %v1985 = vadd.f32 %v42, %v1983
    %v1986 = vadd.f32 %v43, %v1984
    %v1987 = vld [vmem:[%s8] sm:$0x1]
    %v1988 = vmul.f32 %v1985, %v1985
    %v1989 = vmul.f32 %v1986, %v1986
    %v1990 = vsel %vm53, %v1988, 0.0
    %1991 = vadd.xlane.f32.xlu0 %v1990
    %v1992 = vpop.xlane.xlu0 %1991
    %v1993 = vsel %vm53, %v1989, 0.0
    %1994 = vadd.xlane.f32.xlu0 %v1993
    %v1995 = vpop.xlane.xlu0 %1994
    %v1996 = vmul.f32 %v1992, %v60
    %v1997 = vmul.f32 %v1995, %v60
    %v1998 = vadd.f32 %v1996, 1e-06
    %v1999 = vadd.f32 %v1997, 1e-06
    %v2000 = vrsqrt.pop %v1998
    %v2001 = vrsqrt.pop %v1999
    %v2002 = vmul.f32 %v1985, %v2000
    %v2003 = vmul.f32 %v1986, %v2001
    %v2005 = vlaneseq
    %v2006 = vshrl.u32 %v2005, 7
    %v2007 = vsub.s32 0, %v2006
    %v2008 = vrot.slane %v1987, %v2007
    %v2010 = vmul.f32 %v2002, %v2008
    %v2011 = vmul.f32 %v2003, %v2008
    %v2012 = vld [vmem:[%s9] sm:$0xff]
    %v2013 = vld [vmem:[%s9 + $0x8] sm:$0xff]
    %v2014 = vld [vmem:[%s9 + $0x10] sm:$0xff]
    %v2015 = vld [vmem:[%s9 + $0x18] sm:$0xff]
    %v2017 = vsel %vm53, %v2010, 0
    %v2020 = vsel %vm53, %v2011, 0
    %2022 = vmatprep.subr.mxu0 0.0
    %2023 = vmatpush1.msra.mxu0 %v2012
    %2024 = vmatprep.subr.mxu0 0.0
    %2025 = vmatpush1.msra.mxu0 %v2013
    %2026 = vmatprep.subr.mxu0 0.0
    %2027 = vmatpush1.msra.mxu0 %v2014
    %2028 = vmatprep.subr.mxu0 0.0
    %2029 = vmatpush1.msra.mxu0 %v2015
    %2030 = vmatprep.subr.mxu0 0.0
    %2031 = vmatpush1.msra.mxu0 0.0
    %2032 = vmatprep.subr.mxu0 0.0
    %2033 = vmatpush1.msra.mxu0 0.0
    %2034 = vmatprep.subr.mxu0 0.0
    %2035 = vmatpush1.msra.mxu0 0.0
    %2036 = vmatprep.subr.mxu0 0.0
    %2037 = vmatpush1.msra.mxu0 0.0
    %2038 = vmatprep.subr.mxu0 0.0
    %2039 = vmatpush1.msra.mxu0 0.0
    %2040 = vmatprep.subr.mxu0 0.0
    %2041 = vmatpush1.msra.mxu0 0.0
    %2042 = vmatprep.subr.mxu0 0.0
    %2043 = vmatpush1.msra.mxu0 0.0
    %2044 = vmatprep.subr.mxu0 0.0
    %2045 = vmatpush1.msra.mxu0 0.0
    %2046 = vmatprep.subr.mxu0 0.0
    %2047 = vmatpush1.msra.mxu0 0.0
    %2048 = vmatprep.subr.mxu0 0.0
    %2049 = vmatpush1.msra.mxu0 0.0
    %2050 = vmatprep.subr.mxu0 0.0
    %2051 = vmatpush1.msra.mxu0 0.0
    %2052 = vmatprep.subr.mxu0 0.0
    %2053 = vmatpush1.msra.mxu0 0.0
    %2054 = vmatprep.subr.mxu0 0.0
    %2055 = vmatpush1.msra.mxu0 0.0
    %2056 = vmatprep.subr.mxu0 0.0
    %2057 = vmatpush1.msra.mxu0 0.0
    %2058 = vmatprep.subr.mxu0 0.0
    %2059 = vmatpush1.msra.mxu0 0.0
    %2060 = vmatprep.subr.mxu0 0.0
    %2061 = vmatpush1.msra.mxu0 0.0
    %2062 = vmatprep.subr.mxu0 0.0
    %2063 = vmatpush1.msra.mxu0 0.0
    %2064 = vmatprep.subr.mxu0 0.0
    %2065 = vmatpush1.msra.mxu0 0.0
    %2066 = vmatprep.subr.mxu0 0.0
    %2067 = vmatpush1.msra.mxu0 0.0
    %2068 = vmatprep.subr.mxu0 0.0
    %2069 = vmatpush1.msra.mxu0 0.0
    %2070 = vmatprep.subr.mxu0 0.0
    %2071 = vmatpush1.msra.mxu0 0.0
    %2072 = vmatprep.subr.mxu0 0.0
    %2073 = vmatpush1.msra.mxu0 0.0
    %2074 = vmatprep.subr.mxu0 0.0
    %2075 = vmatpush1.msra.mxu0 0.0
    %2076 = vmatprep.subr.mxu0 0.0
    %2077 = vmatpush1.msra.mxu0 0.0
    %2078 = vmatprep.subr.mxu0 0.0
    %2079 = vmatpush1.msra.mxu0 0.0
    %2080 = vmatprep.subr.mxu0 0.0
    %2081 = vmatpush1.msra.mxu0 0.0
    %2082 = vmatprep.subr.mxu0 0.0
    %2083 = vmatpush1.msra.mxu0 0.0
    %2084 = vmatprep.subr.mxu0 0.0
    %2085 = vmatpush1.msra.mxu0 0.0
    %2086 = vmatprep.mubr.f32.mxu0 0.0
    %2087 = vmatmul.mubr.f32.gmra.mrb[0].mxu0 %v2017
    %v2088 = vpop.f32.mrb[0].mxu0
    %v2089 = vadd.f32 0.0, %v2088
    %v2090 = vpop.f32.mrb[0].mxu0
    %2091 = vmatprep.mubr.f32.mxu0 0.0
    %2092 = vmatmul.mubr.f32.gmra.mrb[0].mxu0 %v2020
    %v2093 = vpop.f32.mrb[0].mxu0
    %v2094 = vadd.f32 0.0, %v2093
    %v2095 = vpop.f32.mrb[0].mxu0
    %2096 = vdwg.mxu0
    %v2097 = vmax.f32 %v2089, 0.0
    %v2098 = vmax.f32 %v2094, 0.0
    %v2099 = vld [vmem:[%s10] sm:$0xff]
    %v2100 = vld [vmem:[%s10 + $0x8] sm:$0xff]
    %v2101 = vld [vmem:[%s10 + $0x10] sm:$0xff]
    %v2102 = vld [vmem:[%s10 + $0x18] sm:$0xff]
    %v2103 = vld [vmem:[%s10 + $0x20] sm:$0xff]
    %v2104 = vld [vmem:[%s10 + $0x28] sm:$0xff]
    %v2105 = vld [vmem:[%s10 + $0x30] sm:$0xff]
    %v2106 = vld [vmem:[%s10 + $0x38] sm:$0xff]
    %vm2107 = vcmask 523264
    %v2109 = vsel %vm2107, %v2097, 0
    %v2112 = vsel %vm2107, %v2098, 0
    %2114 = vmatprep.subr.mxu0 0.0
    %2115 = vmatpush1.msra.mxu0 %v2099
    %2116 = vmatprep.subr.mxu0 0.0
    %2117 = vmatpush1.msra.mxu0 %v2100
    %2118 = vmatprep.subr.mxu0 0.0
    %2119 = vmatpush1.msra.mxu0 %v2101
    %2120 = vmatprep.subr.mxu0 0.0
    %2121 = vmatpush1.msra.mxu0 %v2102
    %2122 = vmatprep.subr.mxu0 0.0
    %2123 = vmatpush1.msra.mxu0 %v2103
    %2124 = vmatprep.subr.mxu0 0.0
    %2125 = vmatpush1.msra.mxu0 %v2104
    %2126 = vmatprep.subr.mxu0 0.0
    %2127 = vmatpush1.msra.mxu0 %v2105
    %2128 = vmatprep.subr.mxu0 0.0
    %2129 = vmatpush1.msra.mxu0 %v2106
    %2130 = vmatprep.subr.mxu0 0.0
    %2131 = vmatpush1.msra.mxu0 0.0
    %2132 = vmatprep.subr.mxu0 0.0
    %2133 = vmatpush1.msra.mxu0 0.0
    %2134 = vmatprep.subr.mxu0 0.0
    %2135 = vmatpush1.msra.mxu0 0.0
    %2136 = vmatprep.subr.mxu0 0.0
    %2137 = vmatpush1.msra.mxu0 0.0
    %2138 = vmatprep.subr.mxu0 0.0
    %2139 = vmatpush1.msra.mxu0 0.0
    %2140 = vmatprep.subr.mxu0 0.0
    %2141 = vmatpush1.msra.mxu0 0.0
    %2142 = vmatprep.subr.mxu0 0.0
    %2143 = vmatpush1.msra.mxu0 0.0
    %2144 = vmatprep.subr.mxu0 0.0
    %2145 = vmatpush1.msra.mxu0 0.0
    %2146 = vmatprep.subr.mxu0 0.0
    %2147 = vmatpush1.msra.mxu0 0.0
    %2148 = vmatprep.subr.mxu0 0.0
    %2149 = vmatpush1.msra.mxu0 0.0
    %2150 = vmatprep.subr.mxu0 0.0
    %2151 = vmatpush1.msra.mxu0 0.0
    %2152 = vmatprep.subr.mxu0 0.0
    %2153 = vmatpush1.msra.mxu0 0.0
    %2154 = vmatprep.subr.mxu0 0.0
    %2155 = vmatpush1.msra.mxu0 0.0
    %2156 = vmatprep.subr.mxu0 0.0
    %2157 = vmatpush1.msra.mxu0 0.0
    %2158 = vmatprep.subr.mxu0 0.0
    %2159 = vmatpush1.msra.mxu0 0.0
    %2160 = vmatprep.subr.mxu0 0.0
    %2161 = vmatpush1.msra.mxu0 0.0
    %2162 = vmatprep.subr.mxu0 0.0
    %2163 = vmatpush1.msra.mxu0 0.0
    %2164 = vmatprep.subr.mxu0 0.0
    %2165 = vmatpush1.msra.mxu0 0.0
    %2166 = vmatprep.subr.mxu0 0.0
    %2167 = vmatpush1.msra.mxu0 0.0
    %2168 = vmatprep.subr.mxu0 0.0
    %2169 = vmatpush1.msra.mxu0 0.0
    %2170 = vmatprep.subr.mxu0 0.0
    %2171 = vmatpush1.msra.mxu0 0.0
    %2172 = vmatprep.subr.mxu0 0.0
    %2173 = vmatpush1.msra.mxu0 0.0
    %2174 = vmatprep.subr.mxu0 0.0
    %2175 = vmatpush1.msra.mxu0 0.0
    %2176 = vmatprep.subr.mxu0 0.0
    %2177 = vmatpush1.msra.mxu0 0.0
    %2178 = vmatprep.mubr.f32.mxu0 0.0
    %2179 = vmatmul.mubr.f32.gmra.mrb[0].mxu0 %v2109
    %v2180 = vpop.f32.mrb[0].mxu0
    %v2181 = vadd.f32 0.0, %v2180
    %v2182 = vpop.f32.mrb[0].mxu0
    %2183 = vmatprep.mubr.f32.mxu0 0.0
    %2184 = vmatmul.mubr.f32.gmra.mrb[0].mxu0 %v2112
    %v2185 = vpop.f32.mrb[0].mxu0
    %v2186 = vadd.f32 0.0, %v2185
    %v2187 = vpop.f32.mrb[0].mxu0
    %2188 = vdwg.mxu0
    %v2189 = vadd.f32 %v1985, %v2181
    %v2190 = vadd.f32 %v1986, %v2186
    %s2191 = scalar_lea.vmem %s3, 1
    %v2192 = vld [vmem:[%s2191] sm:$0x1]
    %v2193 = vmul.f32 %v2189, %v2189
    %v2194 = vmul.f32 %v2190, %v2190
    %v2195 = vsel %vm53, %v2193, 0.0
    %2196 = vadd.xlane.f32.xlu0 %v2195
    %v2197 = vpop.xlane.xlu0 %2196
    %v2198 = vsel %vm53, %v2194, 0.0
    %2199 = vadd.xlane.f32.xlu0 %v2198
    %v2200 = vpop.xlane.xlu0 %2199
    %v2201 = vmul.f32 %v2197, %v60
    %v2202 = vmul.f32 %v2200, %v60
    %v2203 = vadd.f32 %v2201, 1e-06
    %v2204 = vadd.f32 %v2202, 1e-06
    %v2205 = vrsqrt.pop %v2203
    %v2206 = vrsqrt.pop %v2204
    %v2207 = vmul.f32 %v2189, %v2205
    %v2208 = vmul.f32 %v2190, %v2206
    %v2210 = vlaneseq
    %v2211 = vshrl.u32 %v2210, 7
    %v2212 = vsub.s32 0, %v2211
    %v2213 = vrot.slane %v2192, %v2212
    %v2215 = vmul.f32 %v2207, %v2213
    %v2216 = vmul.f32 %v2208, %v2213
    %s2217 = scalar_lea.vmem %s4, 32
    %v2218 = vld [vmem:[%s2217] sm:$0xff]
    %v2219 = vld [vmem:[%s2217 + $0x8] sm:$0xff]
    %v2220 = vld [vmem:[%s2217 + $0x10] sm:$0xff]
    %v2221 = vld [vmem:[%s2217 + $0x18] sm:$0xff]
    %v2223 = vsel %vm53, %v2215, 0
    %v2226 = vsel %vm53, %v2216, 0
    %2228 = vmatprep.subr.mxu0 0.0
    %2229 = vmatpush1.msra.mxu0 %v2218
    %2230 = vmatprep.subr.mxu0 0.0
    %2231 = vmatpush1.msra.mxu0 %v2219
    %2232 = vmatprep.subr.mxu0 0.0
    %2233 = vmatpush1.msra.mxu0 %v2220
    %2234 = vmatprep.subr.mxu0 0.0
    %2235 = vmatpush1.msra.mxu0 %v2221
    %2236 = vmatprep.subr.mxu0 0.0
    %2237 = vmatpush1.msra.mxu0 0.0
    %2238 = vmatprep.subr.mxu0 0.0
    %2239 = vmatpush1.msra.mxu0 0.0
    %2240 = vmatprep.subr.mxu0 0.0
    %2241 = vmatpush1.msra.mxu0 0.0
    %2242 = vmatprep.subr.mxu0 0.0
    %2243 = vmatpush1.msra.mxu0 0.0
    %2244 = vmatprep.subr.mxu0 0.0
    %2245 = vmatpush1.msra.mxu0 0.0
    %2246 = vmatprep.subr.mxu0 0.0
    %2247 = vmatpush1.msra.mxu0 0.0
    %2248 = vmatprep.subr.mxu0 0.0
    %2249 = vmatpush1.msra.mxu0 0.0
    %2250 = vmatprep.subr.mxu0 0.0
    %2251 = vmatpush1.msra.mxu0 0.0
    %2252 = vmatprep.subr.mxu0 0.0
    %2253 = vmatpush1.msra.mxu0 0.0
    %2254 = vmatprep.subr.mxu0 0.0
    %2255 = vmatpush1.msra.mxu0 0.0
    %2256 = vmatprep.subr.mxu0 0.0
    %2257 = vmatpush1.msra.mxu0 0.0
    %2258 = vmatprep.subr.mxu0 0.0
    %2259 = vmatpush1.msra.mxu0 0.0
    %2260 = vmatprep.subr.mxu0 0.0
    %2261 = vmatpush1.msra.mxu0 0.0
    %2262 = vmatprep.subr.mxu0 0.0
    %2263 = vmatpush1.msra.mxu0 0.0
    %2264 = vmatprep.subr.mxu0 0.0
    %2265 = vmatpush1.msra.mxu0 0.0
    %2266 = vmatprep.subr.mxu0 0.0
    %2267 = vmatpush1.msra.mxu0 0.0
    %2268 = vmatprep.subr.mxu0 0.0
    %2269 = vmatpush1.msra.mxu0 0.0
    %2270 = vmatprep.subr.mxu0 0.0
    %2271 = vmatpush1.msra.mxu0 0.0
    %2272 = vmatprep.subr.mxu0 0.0
    %2273 = vmatpush1.msra.mxu0 0.0
    %2274 = vmatprep.subr.mxu0 0.0
    %2275 = vmatpush1.msra.mxu0 0.0
    %2276 = vmatprep.subr.mxu0 0.0
    %2277 = vmatpush1.msra.mxu0 0.0
    %2278 = vmatprep.subr.mxu0 0.0
    %2279 = vmatpush1.msra.mxu0 0.0
    %2280 = vmatprep.subr.mxu0 0.0
    %2281 = vmatpush1.msra.mxu0 0.0
    %2282 = vmatprep.subr.mxu0 0.0
    %2283 = vmatpush1.msra.mxu0 0.0
    %2284 = vmatprep.subr.mxu0 0.0
    %2285 = vmatpush1.msra.mxu0 0.0
    %2286 = vmatprep.subr.mxu0 0.0
    %2287 = vmatpush1.msra.mxu0 0.0
    %2288 = vmatprep.subr.mxu0 0.0
    %2289 = vmatpush1.msra.mxu0 0.0
    %2290 = vmatprep.subr.mxu0 0.0
    %2291 = vmatpush1.msra.mxu0 0.0
    %2292 = vmatprep.mubr.f32.mxu0 0.0
    %2293 = vmatmul.mubr.f32.gmra.mrb[0].mxu0 %v2223
    %v2294 = vpop.f32.mrb[0].mxu0
    %v2295 = vadd.f32 0.0, %v2294
    %v2296 = vpop.f32.mrb[0].mxu0
    %2297 = vmatprep.mubr.f32.mxu0 0.0
    %2298 = vmatmul.mubr.f32.gmra.mrb[0].mxu0 %v2226
    %v2299 = vpop.f32.mrb[0].mxu0
    %v2300 = vadd.f32 0.0, %v2299
    %v2301 = vpop.f32.mrb[0].mxu0
    %2302 = vdwg.mxu0
    %s2303 = scalar_lea.vmem %s5, 32
    %v2304 = vld [vmem:[%s2303] sm:$0xff]
    %v2305 = vld [vmem:[%s2303 + $0x8] sm:$0xff]
    %v2306 = vld [vmem:[%s2303 + $0x10] sm:$0xff]
    %v2307 = vld [vmem:[%s2303 + $0x18] sm:$0xff]
    %2308 = vmatprep.subr.mxu0 0.0
    %2309 = vmatpush1.msra.mxu0 %v2304
    %2310 = vmatprep.subr.mxu0 0.0
    %2311 = vmatpush1.msra.mxu0 %v2305
    %2312 = vmatprep.subr.mxu0 0.0
    %2313 = vmatpush1.msra.mxu0 %v2306
    %2314 = vmatprep.subr.mxu0 0.0
    %2315 = vmatpush1.msra.mxu0 %v2307
    %2316 = vmatprep.subr.mxu0 0.0
    %2317 = vmatpush1.msra.mxu0 0.0
    %2318 = vmatprep.subr.mxu0 0.0
    %2319 = vmatpush1.msra.mxu0 0.0
    %2320 = vmatprep.subr.mxu0 0.0
    %2321 = vmatpush1.msra.mxu0 0.0
    %2322 = vmatprep.subr.mxu0 0.0
    %2323 = vmatpush1.msra.mxu0 0.0
    %2324 = vmatprep.subr.mxu0 0.0
    %2325 = vmatpush1.msra.mxu0 0.0
    %2326 = vmatprep.subr.mxu0 0.0
    %2327 = vmatpush1.msra.mxu0 0.0
    %2328 = vmatprep.subr.mxu0 0.0
    %2329 = vmatpush1.msra.mxu0 0.0
    %2330 = vmatprep.subr.mxu0 0.0
    %2331 = vmatpush1.msra.mxu0 0.0
    %2332 = vmatprep.subr.mxu0 0.0
    %2333 = vmatpush1.msra.mxu0 0.0
    %2334 = vmatprep.subr.mxu0 0.0
    %2335 = vmatpush1.msra.mxu0 0.0
    %2336 = vmatprep.subr.mxu0 0.0
    %2337 = vmatpush1.msra.mxu0 0.0
    %2338 = vmatprep.subr.mxu0 0.0
    %2339 = vmatpush1.msra.mxu0 0.0
    %2340 = vmatprep.subr.mxu0 0.0
    %2341 = vmatpush1.msra.mxu0 0.0
    %2342 = vmatprep.subr.mxu0 0.0
    %2343 = vmatpush1.msra.mxu0 0.0
    %2344 = vmatprep.subr.mxu0 0.0
    %2345 = vmatpush1.msra.mxu0 0.0
    %2346 = vmatprep.subr.mxu0 0.0
    %2347 = vmatpush1.msra.mxu0 0.0
    %2348 = vmatprep.subr.mxu0 0.0
    %2349 = vmatpush1.msra.mxu0 0.0
    %2350 = vmatprep.subr.mxu0 0.0
    %2351 = vmatpush1.msra.mxu0 0.0
    %2352 = vmatprep.subr.mxu0 0.0
    %2353 = vmatpush1.msra.mxu0 0.0
    %2354 = vmatprep.subr.mxu0 0.0
    %2355 = vmatpush1.msra.mxu0 0.0
    %2356 = vmatprep.subr.mxu0 0.0
    %2357 = vmatpush1.msra.mxu0 0.0
    %2358 = vmatprep.subr.mxu0 0.0
    %2359 = vmatpush1.msra.mxu0 0.0
    %2360 = vmatprep.subr.mxu0 0.0
    %2361 = vmatpush1.msra.mxu0 0.0
    %2362 = vmatprep.subr.mxu0 0.0
    %2363 = vmatpush1.msra.mxu0 0.0
    %2364 = vmatprep.subr.mxu0 0.0
    %2365 = vmatpush1.msra.mxu0 0.0
    %2366 = vmatprep.subr.mxu0 0.0
    %2367 = vmatpush1.msra.mxu0 0.0
    %2368 = vmatprep.subr.mxu0 0.0
    %2369 = vmatpush1.msra.mxu0 0.0
    %2370 = vmatprep.subr.mxu0 0.0
    %2371 = vmatpush1.msra.mxu0 0.0
    %2372 = vmatprep.mubr.f32.mxu0 0.0
    %2373 = vmatmul.mubr.f32.gmra.mrb[0].mxu0 %v2223
    %v2374 = vpop.f32.mrb[0].mxu0
    %v2375 = vadd.f32 0.0, %v2374
    %v2376 = vpop.f32.mrb[0].mxu0
    %2377 = vmatprep.mubr.f32.mxu0 0.0
    %2378 = vmatmul.mubr.f32.gmra.mrb[0].mxu0 %v2226
    %v2379 = vpop.f32.mrb[0].mxu0
    %v2380 = vadd.f32 0.0, %v2379
    %v2381 = vpop.f32.mrb[0].mxu0
    %2382 = vdwg.mxu0
    %s2383 = scalar_lea.vmem %s6, 32
    %v2384 = vld [vmem:[%s2383] sm:$0xff]
    %v2385 = vld [vmem:[%s2383 + $0x8] sm:$0xff]
    %v2386 = vld [vmem:[%s2383 + $0x10] sm:$0xff]
    %v2387 = vld [vmem:[%s2383 + $0x18] sm:$0xff]
    %2388 = vmatprep.subr.mxu0 0.0
    %2389 = vmatpush1.msra.mxu0 %v2384
    %2390 = vmatprep.subr.mxu0 0.0
    %2391 = vmatpush1.msra.mxu0 %v2385
    %2392 = vmatprep.subr.mxu0 0.0
    %2393 = vmatpush1.msra.mxu0 %v2386
    %2394 = vmatprep.subr.mxu0 0.0
    %2395 = vmatpush1.msra.mxu0 %v2387
    %2396 = vmatprep.subr.mxu0 0.0
    %2397 = vmatpush1.msra.mxu0 0.0
    %2398 = vmatprep.subr.mxu0 0.0
    %2399 = vmatpush1.msra.mxu0 0.0
    %2400 = vmatprep.subr.mxu0 0.0
    %2401 = vmatpush1.msra.mxu0 0.0
    %2402 = vmatprep.subr.mxu0 0.0
    %2403 = vmatpush1.msra.mxu0 0.0
    %2404 = vmatprep.subr.mxu0 0.0
    %2405 = vmatpush1.msra.mxu0 0.0
    %2406 = vmatprep.subr.mxu0 0.0
    %2407 = vmatpush1.msra.mxu0 0.0
    %2408 = vmatprep.subr.mxu0 0.0
    %2409 = vmatpush1.msra.mxu0 0.0
    %2410 = vmatprep.subr.mxu0 0.0
    %2411 = vmatpush1.msra.mxu0 0.0
    %2412 = vmatprep.subr.mxu0 0.0
    %2413 = vmatpush1.msra.mxu0 0.0
    %2414 = vmatprep.subr.mxu0 0.0
    %2415 = vmatpush1.msra.mxu0 0.0
    %2416 = vmatprep.subr.mxu0 0.0
    %2417 = vmatpush1.msra.mxu0 0.0
    %2418 = vmatprep.subr.mxu0 0.0
    %2419 = vmatpush1.msra.mxu0 0.0
    %2420 = vmatprep.subr.mxu0 0.0
    %2421 = vmatpush1.msra.mxu0 0.0
    %2422 = vmatprep.subr.mxu0 0.0
    %2423 = vmatpush1.msra.mxu0 0.0
    %2424 = vmatprep.subr.mxu0 0.0
    %2425 = vmatpush1.msra.mxu0 0.0
    %2426 = vmatprep.subr.mxu0 0.0
    %2427 = vmatpush1.msra.mxu0 0.0
    %2428 = vmatprep.subr.mxu0 0.0
    %2429 = vmatpush1.msra.mxu0 0.0
    %2430 = vmatprep.subr.mxu0 0.0
    %2431 = vmatpush1.msra.mxu0 0.0
    %2432 = vmatprep.subr.mxu0 0.0
    %2433 = vmatpush1.msra.mxu0 0.0
    %2434 = vmatprep.subr.mxu0 0.0
    %2435 = vmatpush1.msra.mxu0 0.0
    %2436 = vmatprep.subr.mxu0 0.0
    %2437 = vmatpush1.msra.mxu0 0.0
    %2438 = vmatprep.subr.mxu0 0.0
    %2439 = vmatpush1.msra.mxu0 0.0
    %2440 = vmatprep.subr.mxu0 0.0
    %2441 = vmatpush1.msra.mxu0 0.0
    %2442 = vmatprep.subr.mxu0 0.0
    %2443 = vmatpush1.msra.mxu0 0.0
    %2444 = vmatprep.subr.mxu0 0.0
    %2445 = vmatpush1.msra.mxu0 0.0
    %2446 = vmatprep.subr.mxu0 0.0
    %2447 = vmatpush1.msra.mxu0 0.0
    %2448 = vmatprep.subr.mxu0 0.0
    %2449 = vmatpush1.msra.mxu0 0.0
    %2450 = vmatprep.subr.mxu0 0.0
    %2451 = vmatpush1.msra.mxu0 0.0
    %2452 = vmatprep.mubr.f32.mxu0 0.0
    %2453 = vmatmul.mubr.f32.gmra.mrb[0].mxu0 %v2223
    %v2454 = vpop.f32.mrb[0].mxu0
    %v2455 = vadd.f32 0.0, %v2454
    %v2456 = vpop.f32.mrb[0].mxu0
    %2457 = vmatprep.mubr.f32.mxu0 0.0
    %2458 = vmatmul.mubr.f32.gmra.mrb[0].mxu0 %v2226
    %v2459 = vpop.f32.mrb[0].mxu0
    %v2460 = vadd.f32 0.0, %v2459
    %v2461 = vpop.f32.mrb[0].mxu0
    %2462 = vdwg.mxu0
    %s2463 = scalar_lea.vmem %s7, 32
    %v2464 = vld [vmem:[%s2463] sm:$0xff]
    %v2465 = vld [vmem:[%s2463 + $0x8] sm:$0xff]
    %v2466 = vld [vmem:[%s2463 + $0x10] sm:$0xff]
    %v2467 = vld [vmem:[%s2463 + $0x18] sm:$0xff]
    %v2469 = vsel %vm324, %v2295, 0
    %v2472 = vsel %vm324, %v2375, 0
    %2474 = vmatprep.subr.mxu0 0.0
    %2475 = vmatpush1.xpose.msra.mxu0 %v2472
    %2476 = vmatprep.subr.mxu0 0.0
    %2477 = vmatpush1.xpose.msra.mxu0 0.0
    %2478 = vmatprep.subr.mxu0 0.0
    %2479 = vmatpush1.xpose.msra.mxu0 0.0
    %2480 = vmatprep.subr.mxu0 0.0
    %2481 = vmatpush1.xpose.msra.mxu0 0.0
    %2482 = vmatprep.subr.mxu0 0.0
    %2483 = vmatpush1.xpose.msra.mxu0 0.0
    %2484 = vmatprep.subr.mxu0 0.0
    %2485 = vmatpush1.xpose.msra.mxu0 0.0
    %2486 = vmatprep.subr.mxu0 0.0
    %2487 = vmatpush1.xpose.msra.mxu0 0.0
    %2488 = vmatprep.subr.mxu0 0.0
    %2489 = vmatpush1.xpose.msra.mxu0 0.0
    %2490 = vmatprep.subr.mxu0 0.0
    %2491 = vmatpush1.xpose.msra.mxu0 0.0
    %2492 = vmatprep.subr.mxu0 0.0
    %2493 = vmatpush1.xpose.msra.mxu0 0.0
    %2494 = vmatprep.subr.mxu0 0.0
    %2495 = vmatpush1.xpose.msra.mxu0 0.0
    %2496 = vmatprep.subr.mxu0 0.0
    %2497 = vmatpush1.xpose.msra.mxu0 0.0
    %2498 = vmatprep.subr.mxu0 0.0
    %2499 = vmatpush1.xpose.msra.mxu0 0.0
    %2500 = vmatprep.subr.mxu0 0.0
    %2501 = vmatpush1.xpose.msra.mxu0 0.0
    %2502 = vmatprep.subr.mxu0 0.0
    %2503 = vmatpush1.xpose.msra.mxu0 0.0
    %2504 = vmatprep.subr.mxu0 0.0
    %2505 = vmatpush1.xpose.msra.mxu0 0.0
    %2506 = vmatprep.subr.mxu0 0.0
    %2507 = vmatpush1.xpose.msra.mxu0 0.0
    %2508 = vmatprep.subr.mxu0 0.0
    %2509 = vmatpush1.xpose.msra.mxu0 0.0
    %2510 = vmatprep.subr.mxu0 0.0
    %2511 = vmatpush1.xpose.msra.mxu0 0.0
    %2512 = vmatprep.subr.mxu0 0.0
    %2513 = vmatpush1.xpose.msra.mxu0 0.0
    %2514 = vmatprep.subr.mxu0 0.0
    %2515 = vmatpush1.xpose.msra.mxu0 0.0
    %2516 = vmatprep.subr.mxu0 0.0
    %2517 = vmatpush1.xpose.msra.mxu0 0.0
    %2518 = vmatprep.subr.mxu0 0.0
    %2519 = vmatpush1.xpose.msra.mxu0 0.0
    %2520 = vmatprep.subr.mxu0 0.0
    %2521 = vmatpush1.xpose.msra.mxu0 0.0
    %2522 = vmatprep.subr.mxu0 0.0
    %2523 = vmatpush1.xpose.msra.mxu0 0.0
    %2524 = vmatprep.subr.mxu0 0.0
    %2525 = vmatpush1.xpose.msra.mxu0 0.0
    %2526 = vmatprep.subr.mxu0 0.0
    %2527 = vmatpush1.xpose.msra.mxu0 0.0
    %2528 = vmatprep.subr.mxu0 0.0
    %2529 = vmatpush1.xpose.msra.mxu0 0.0
    %2530 = vmatprep.subr.mxu0 0.0
    %2531 = vmatpush1.xpose.msra.mxu0 0.0
    %2532 = vmatprep.subr.mxu0 0.0
    %2533 = vmatpush1.xpose.msra.mxu0 0.0
    %2534 = vmatprep.subr.mxu0 0.0
    %2535 = vmatpush1.xpose.msra.mxu0 0.0
    %2536 = vmatprep.subr.mxu0 0.0
    %2537 = vmatpush1.xpose.msra.mxu0 0.0
    %2538 = vmatprep.mubr.f32.mxu0 0.0
    %2539 = vmatmul.mubr.f32.gmra.mrb[0].mxu0 %v2469
    %v2540 = vpop.f32.mrb[0].mxu0
    %v2541 = vadd.f32 %v46, %v2540
    %v2542 = vpop.f32.mrb[0].mxu0
    %2543 = vdwg.mxu0
    %v2545 = vsel %vm324, %v2300, 0
    %v2548 = vsel %vm324, %v2380, 0
    %2550 = vmatprep.subr.mxu0 0.0
    %2551 = vmatpush1.xpose.msra.mxu0 %v2548
    %2552 = vmatprep.subr.mxu0 0.0
    %2553 = vmatpush1.xpose.msra.mxu0 0.0
    %2554 = vmatprep.subr.mxu0 0.0
    %2555 = vmatpush1.xpose.msra.mxu0 0.0
    %2556 = vmatprep.subr.mxu0 0.0
    %2557 = vmatpush1.xpose.msra.mxu0 0.0
    %2558 = vmatprep.subr.mxu0 0.0
    %2559 = vmatpush1.xpose.msra.mxu0 0.0
    %2560 = vmatprep.subr.mxu0 0.0
    %2561 = vmatpush1.xpose.msra.mxu0 0.0
    %2562 = vmatprep.subr.mxu0 0.0
    %2563 = vmatpush1.xpose.msra.mxu0 0.0
    %2564 = vmatprep.subr.mxu0 0.0
    %2565 = vmatpush1.xpose.msra.mxu0 0.0
    %2566 = vmatprep.subr.mxu0 0.0
    %2567 = vmatpush1.xpose.msra.mxu0 0.0
    %2568 = vmatprep.subr.mxu0 0.0
    %2569 = vmatpush1.xpose.msra.mxu0 0.0
    %2570 = vmatprep.subr.mxu0 0.0
    %2571 = vmatpush1.xpose.msra.mxu0 0.0
    %2572 = vmatprep.subr.mxu0 0.0
    %2573 = vmatpush1.xpose.msra.mxu0 0.0
    %2574 = vmatprep.subr.mxu0 0.0
    %2575 = vmatpush1.xpose.msra.mxu0 0.0
    %2576 = vmatprep.subr.mxu0 0.0
    %2577 = vmatpush1.xpose.msra.mxu0 0.0
    %2578 = vmatprep.subr.mxu0 0.0
    %2579 = vmatpush1.xpose.msra.mxu0 0.0
    %2580 = vmatprep.subr.mxu0 0.0
    %2581 = vmatpush1.xpose.msra.mxu0 0.0
    %2582 = vmatprep.subr.mxu0 0.0
    %2583 = vmatpush1.xpose.msra.mxu0 0.0
    %2584 = vmatprep.subr.mxu0 0.0
    %2585 = vmatpush1.xpose.msra.mxu0 0.0
    %2586 = vmatprep.subr.mxu0 0.0
    %2587 = vmatpush1.xpose.msra.mxu0 0.0
    %2588 = vmatprep.subr.mxu0 0.0
    %2589 = vmatpush1.xpose.msra.mxu0 0.0
    %2590 = vmatprep.subr.mxu0 0.0
    %2591 = vmatpush1.xpose.msra.mxu0 0.0
    %2592 = vmatprep.subr.mxu0 0.0
    %2593 = vmatpush1.xpose.msra.mxu0 0.0
    %2594 = vmatprep.subr.mxu0 0.0
    %2595 = vmatpush1.xpose.msra.mxu0 0.0
    %2596 = vmatprep.subr.mxu0 0.0
    %2597 = vmatpush1.xpose.msra.mxu0 0.0
    %2598 = vmatprep.subr.mxu0 0.0
    %2599 = vmatpush1.xpose.msra.mxu0 0.0
    %2600 = vmatprep.subr.mxu0 0.0
    %2601 = vmatpush1.xpose.msra.mxu0 0.0
    %2602 = vmatprep.subr.mxu0 0.0
    %2603 = vmatpush1.xpose.msra.mxu0 0.0
    %2604 = vmatprep.subr.mxu0 0.0
    %2605 = vmatpush1.xpose.msra.mxu0 0.0
    %2606 = vmatprep.subr.mxu0 0.0
    %2607 = vmatpush1.xpose.msra.mxu0 0.0
    %2608 = vmatprep.subr.mxu0 0.0
    %2609 = vmatpush1.xpose.msra.mxu0 0.0
    %2610 = vmatprep.subr.mxu0 0.0
    %2611 = vmatpush1.xpose.msra.mxu0 0.0
    %2612 = vmatprep.subr.mxu0 0.0
    %2613 = vmatpush1.xpose.msra.mxu0 0.0
    %2614 = vmatprep.mubr.f32.mxu0 0.0
    %2615 = vmatmul.mubr.f32.gmra.mrb[0].mxu0 %v2545
    %v2616 = vpop.f32.mrb[0].mxu0
    %v2617 = vadd.f32 %v46, %v2616
    %v2618 = vpop.f32.mrb[0].mxu0
    %2619 = vdwg.mxu0
    %v2620 = vadd.f32 %v2541, %v482
    %v2621 = vadd.f32 %v2617, %v486
    %v2622 = vsel %vm324, %v2620, -inf
    %2623 = vmax.xlane.f32.xlu0 %v2622
    %v2624 = vpop.xlane.xlu0 %2623
    %v2625 = vsel %vm324, %v2621, -inf
    %2626 = vmax.xlane.f32.xlu0 %v2625
    %v2627 = vpop.xlane.xlu0 %2626
    %v2628 = vsub.f32 %v2620, %v2624
    %v2629 = vsub.f32 %v2621, %v2627
    %v2630 = vmul.f32 %v2628, 1.442695
    %v2631 = vpow.pop %v2630
    %v2632 = vmul.f32 %v2629, 1.442695
    %v2633 = vpow.pop %v2632
    %v2634 = vsel %vm324, %v2631, 0.0
    %2635 = vadd.xlane.f32.xlu0 %v2634
    %v2636 = vpop.xlane.xlu0 %2635
    %v2637 = vsel %vm324, %v2633, 0.0
    %2638 = vadd.xlane.f32.xlu0 %v2637
    %v2639 = vpop.xlane.xlu0 %2638
    %v2640 = vrcp.pop %v2636
    %v2641 = vrcp.pop %v2639
    %v2642 = vmul.f32 %v2631, %v2640
    %v2643 = vmul.f32 %v2633, %v2641
    %v2645 = vsel %vm324, %v2642, 0
    %2647 = vmatprep.subr.mxu0 0.0
    %2648 = vmatpush1.msra.mxu0 %v2455
    %2649 = vmatprep.subr.mxu0 0.0
    %2650 = vmatpush1.msra.mxu0 0.0
    %2651 = vmatprep.subr.mxu0 0.0
    %2652 = vmatpush1.msra.mxu0 0.0
    %2653 = vmatprep.subr.mxu0 0.0
    %2654 = vmatpush1.msra.mxu0 0.0
    %2655 = vmatprep.subr.mxu0 0.0
    %2656 = vmatpush1.msra.mxu0 0.0
    %2657 = vmatprep.subr.mxu0 0.0
    %2658 = vmatpush1.msra.mxu0 0.0
    %2659 = vmatprep.subr.mxu0 0.0
    %2660 = vmatpush1.msra.mxu0 0.0
    %2661 = vmatprep.subr.mxu0 0.0
    %2662 = vmatpush1.msra.mxu0 0.0
    %2663 = vmatprep.subr.mxu0 0.0
    %2664 = vmatpush1.msra.mxu0 0.0
    %2665 = vmatprep.subr.mxu0 0.0
    %2666 = vmatpush1.msra.mxu0 0.0
    %2667 = vmatprep.subr.mxu0 0.0
    %2668 = vmatpush1.msra.mxu0 0.0
    %2669 = vmatprep.subr.mxu0 0.0
    %2670 = vmatpush1.msra.mxu0 0.0
    %2671 = vmatprep.subr.mxu0 0.0
    %2672 = vmatpush1.msra.mxu0 0.0
    %2673 = vmatprep.subr.mxu0 0.0
    %2674 = vmatpush1.msra.mxu0 0.0
    %2675 = vmatprep.subr.mxu0 0.0
    %2676 = vmatpush1.msra.mxu0 0.0
    %2677 = vmatprep.subr.mxu0 0.0
    %2678 = vmatpush1.msra.mxu0 0.0
    %2679 = vmatprep.subr.mxu0 0.0
    %2680 = vmatpush1.msra.mxu0 0.0
    %2681 = vmatprep.subr.mxu0 0.0
    %2682 = vmatpush1.msra.mxu0 0.0
    %2683 = vmatprep.subr.mxu0 0.0
    %2684 = vmatpush1.msra.mxu0 0.0
    %2685 = vmatprep.subr.mxu0 0.0
    %2686 = vmatpush1.msra.mxu0 0.0
    %2687 = vmatprep.subr.mxu0 0.0
    %2688 = vmatpush1.msra.mxu0 0.0
    %2689 = vmatprep.subr.mxu0 0.0
    %2690 = vmatpush1.msra.mxu0 0.0
    %2691 = vmatprep.subr.mxu0 0.0
    %2692 = vmatpush1.msra.mxu0 0.0
    %2693 = vmatprep.subr.mxu0 0.0
    %2694 = vmatpush1.msra.mxu0 0.0
    %2695 = vmatprep.subr.mxu0 0.0
    %2696 = vmatpush1.msra.mxu0 0.0
    %2697 = vmatprep.subr.mxu0 0.0
    %2698 = vmatpush1.msra.mxu0 0.0
    %2699 = vmatprep.subr.mxu0 0.0
    %2700 = vmatpush1.msra.mxu0 0.0
    %2701 = vmatprep.subr.mxu0 0.0
    %2702 = vmatpush1.msra.mxu0 0.0
    %2703 = vmatprep.subr.mxu0 0.0
    %2704 = vmatpush1.msra.mxu0 0.0
    %2705 = vmatprep.subr.mxu0 0.0
    %2706 = vmatpush1.msra.mxu0 0.0
    %2707 = vmatprep.subr.mxu0 0.0
    %2708 = vmatpush1.msra.mxu0 0.0
    %2709 = vmatprep.subr.mxu0 0.0
    %2710 = vmatpush1.msra.mxu0 0.0
    %2711 = vmatprep.mubr.f32.mxu0 0.0
    %2712 = vmatmul.mubr.f32.gmra.mrb[0].mxu0 %v2645
    %v2713 = vpop.f32.mrb[0].mxu0
    %v2714 = vadd.f32 0.0, %v2713
    %v2715 = vpop.f32.mrb[0].mxu0
    %2716 = vdwg.mxu0
    %v2718 = vsel %vm324, %v2643, 0
    %2720 = vmatprep.subr.mxu0 0.0
    %2721 = vmatpush1.msra.mxu0 %v2460
    %2722 = vmatprep.subr.mxu0 0.0
    %2723 = vmatpush1.msra.mxu0 0.0
    %2724 = vmatprep.subr.mxu0 0.0
    %2725 = vmatpush1.msra.mxu0 0.0
    %2726 = vmatprep.subr.mxu0 0.0
    %2727 = vmatpush1.msra.mxu0 0.0
    %2728 = vmatprep.subr.mxu0 0.0
    %2729 = vmatpush1.msra.mxu0 0.0
    %2730 = vmatprep.subr.mxu0 0.0
    %2731 = vmatpush1.msra.mxu0 0.0
    %2732 = vmatprep.subr.mxu0 0.0
    %2733 = vmatpush1.msra.mxu0 0.0
    %2734 = vmatprep.subr.mxu0 0.0
    %2735 = vmatpush1.msra.mxu0 0.0
    %2736 = vmatprep.subr.mxu0 0.0
    %2737 = vmatpush1.msra.mxu0 0.0
    %2738 = vmatprep.subr.mxu0 0.0
    %2739 = vmatpush1.msra.mxu0 0.0
    %2740 = vmatprep.subr.mxu0 0.0
    %2741 = vmatpush1.msra.mxu0 0.0
    %2742 = vmatprep.subr.mxu0 0.0
    %2743 = vmatpush1.msra.mxu0 0.0
    %2744 = vmatprep.subr.mxu0 0.0
    %2745 = vmatpush1.msra.mxu0 0.0
    %2746 = vmatprep.subr.mxu0 0.0
    %2747 = vmatpush1.msra.mxu0 0.0
    %2748 = vmatprep.subr.mxu0 0.0
    %2749 = vmatpush1.msra.mxu0 0.0
    %2750 = vmatprep.subr.mxu0 0.0
    %2751 = vmatpush1.msra.mxu0 0.0
    %2752 = vmatprep.subr.mxu0 0.0
    %2753 = vmatpush1.msra.mxu0 0.0
    %2754 = vmatprep.subr.mxu0 0.0
    %2755 = vmatpush1.msra.mxu0 0.0
    %2756 = vmatprep.subr.mxu0 0.0
    %2757 = vmatpush1.msra.mxu0 0.0
    %2758 = vmatprep.subr.mxu0 0.0
    %2759 = vmatpush1.msra.mxu0 0.0
    %2760 = vmatprep.subr.mxu0 0.0
    %2761 = vmatpush1.msra.mxu0 0.0
    %2762 = vmatprep.subr.mxu0 0.0
    %2763 = vmatpush1.msra.mxu0 0.0
    %2764 = vmatprep.subr.mxu0 0.0
    %2765 = vmatpush1.msra.mxu0 0.0
    %2766 = vmatprep.subr.mxu0 0.0
    %2767 = vmatpush1.msra.mxu0 0.0
    %2768 = vmatprep.subr.mxu0 0.0
    %2769 = vmatpush1.msra.mxu0 0.0
    %2770 = vmatprep.subr.mxu0 0.0
    %2771 = vmatpush1.msra.mxu0 0.0
    %2772 = vmatprep.subr.mxu0 0.0
    %2773 = vmatpush1.msra.mxu0 0.0
    %2774 = vmatprep.subr.mxu0 0.0
    %2775 = vmatpush1.msra.mxu0 0.0
    %2776 = vmatprep.subr.mxu0 0.0
    %2777 = vmatpush1.msra.mxu0 0.0
    %2778 = vmatprep.subr.mxu0 0.0
    %2779 = vmatpush1.msra.mxu0 0.0
    %2780 = vmatprep.subr.mxu0 0.0
    %2781 = vmatpush1.msra.mxu0 0.0
    %2782 = vmatprep.subr.mxu0 0.0
    %2783 = vmatpush1.msra.mxu0 0.0
    %2784 = vmatprep.mubr.f32.mxu0 0.0
    %2785 = vmatmul.mubr.f32.gmra.mrb[0].mxu0 %v2718
    %v2786 = vpop.f32.mrb[0].mxu0
    %v2787 = vadd.f32 0.0, %v2786
    %v2788 = vpop.f32.mrb[0].mxu0
    %2789 = vdwg.mxu0
    %2790 = vrot.lane.b32.xlu0 %v2295, 120
    %v2791 = vpop.permute.xlu0 %2790
    %2792 = vrot.lane.b32.xlu0 %v2375, 120
    %v2793 = vpop.permute.xlu0 %2792
    %v2794 = vsel %vm324, %v2791, 0
    %v2796 = vsel %vm324, %v2793, 0
    %2798 = vmatprep.subr.mxu0 0.0
    %2799 = vmatpush1.xpose.msra.mxu0 %v2796
    %2800 = vmatprep.subr.mxu0 0.0
    %2801 = vmatpush1.xpose.msra.mxu0 0.0
    %2802 = vmatprep.subr.mxu0 0.0
    %2803 = vmatpush1.xpose.msra.mxu0 0.0
    %2804 = vmatprep.subr.mxu0 0.0
    %2805 = vmatpush1.xpose.msra.mxu0 0.0
    %2806 = vmatprep.subr.mxu0 0.0
    %2807 = vmatpush1.xpose.msra.mxu0 0.0
    %2808 = vmatprep.subr.mxu0 0.0
    %2809 = vmatpush1.xpose.msra.mxu0 0.0
    %2810 = vmatprep.subr.mxu0 0.0
    %2811 = vmatpush1.xpose.msra.mxu0 0.0
    %2812 = vmatprep.subr.mxu0 0.0
    %2813 = vmatpush1.xpose.msra.mxu0 0.0
    %2814 = vmatprep.subr.mxu0 0.0
    %2815 = vmatpush1.xpose.msra.mxu0 0.0
    %2816 = vmatprep.subr.mxu0 0.0
    %2817 = vmatpush1.xpose.msra.mxu0 0.0
    %2818 = vmatprep.subr.mxu0 0.0
    %2819 = vmatpush1.xpose.msra.mxu0 0.0
    %2820 = vmatprep.subr.mxu0 0.0
    %2821 = vmatpush1.xpose.msra.mxu0 0.0
    %2822 = vmatprep.subr.mxu0 0.0
    %2823 = vmatpush1.xpose.msra.mxu0 0.0
    %2824 = vmatprep.subr.mxu0 0.0
    %2825 = vmatpush1.xpose.msra.mxu0 0.0
    %2826 = vmatprep.subr.mxu0 0.0
    %2827 = vmatpush1.xpose.msra.mxu0 0.0
    %2828 = vmatprep.subr.mxu0 0.0
    %2829 = vmatpush1.xpose.msra.mxu0 0.0
    %2830 = vmatprep.subr.mxu0 0.0
    %2831 = vmatpush1.xpose.msra.mxu0 0.0
    %2832 = vmatprep.subr.mxu0 0.0
    %2833 = vmatpush1.xpose.msra.mxu0 0.0
    %2834 = vmatprep.subr.mxu0 0.0
    %2835 = vmatpush1.xpose.msra.mxu0 0.0
    %2836 = vmatprep.subr.mxu0 0.0
    %2837 = vmatpush1.xpose.msra.mxu0 0.0
    %2838 = vmatprep.subr.mxu0 0.0
    %2839 = vmatpush1.xpose.msra.mxu0 0.0
    %2840 = vmatprep.subr.mxu0 0.0
    %2841 = vmatpush1.xpose.msra.mxu0 0.0
    %2842 = vmatprep.subr.mxu0 0.0
    %2843 = vmatpush1.xpose.msra.mxu0 0.0
    %2844 = vmatprep.subr.mxu0 0.0
    %2845 = vmatpush1.xpose.msra.mxu0 0.0
    %2846 = vmatprep.subr.mxu0 0.0
    %2847 = vmatpush1.xpose.msra.mxu0 0.0
    %2848 = vmatprep.subr.mxu0 0.0
    %2849 = vmatpush1.xpose.msra.mxu0 0.0
    %2850 = vmatprep.subr.mxu0 0.0
    %2851 = vmatpush1.xpose.msra.mxu0 0.0
    %2852 = vmatprep.subr.mxu0 0.0
    %2853 = vmatpush1.xpose.msra.mxu0 0.0
    %2854 = vmatprep.subr.mxu0 0.0
    %2855 = vmatpush1.xpose.msra.mxu0 0.0
    %2856 = vmatprep.subr.mxu0 0.0
    %2857 = vmatpush1.xpose.msra.mxu0 0.0
    %2858 = vmatprep.subr.mxu0 0.0
    %2859 = vmatpush1.xpose.msra.mxu0 0.0
    %2860 = vmatprep.subr.mxu0 0.0
    %2861 = vmatpush1.xpose.msra.mxu0 0.0
    %2862 = vmatprep.mubr.f32.mxu0 0.0
    %2863 = vmatmul.mubr.f32.gmra.mrb[0].mxu0 %v2794
    %v2864 = vpop.f32.mrb[0].mxu0
    %v2865 = vadd.f32 %v47, %v2864
    %v2866 = vpop.f32.mrb[0].mxu0
    %2867 = vdwg.mxu0
    %2868 = vrot.lane.b32.xlu0 %v2300, 120
    %v2869 = vpop.permute.xlu0 %2868
    %2870 = vrot.lane.b32.xlu0 %v2380, 120
    %v2871 = vpop.permute.xlu0 %2870
    %v2872 = vsel %vm324, %v2869, 0
    %v2874 = vsel %vm324, %v2871, 0
    %2876 = vmatprep.subr.mxu0 0.0
    %2877 = vmatpush1.xpose.msra.mxu0 %v2874
    %2878 = vmatprep.subr.mxu0 0.0
    %2879 = vmatpush1.xpose.msra.mxu0 0.0
    %2880 = vmatprep.subr.mxu0 0.0
    %2881 = vmatpush1.xpose.msra.mxu0 0.0
    %2882 = vmatprep.subr.mxu0 0.0
    %2883 = vmatpush1.xpose.msra.mxu0 0.0
    %2884 = vmatprep.subr.mxu0 0.0
    %2885 = vmatpush1.xpose.msra.mxu0 0.0
    %2886 = vmatprep.subr.mxu0 0.0
    %2887 = vmatpush1.xpose.msra.mxu0 0.0
    %2888 = vmatprep.subr.mxu0 0.0
    %2889 = vmatpush1.xpose.msra.mxu0 0.0
    %2890 = vmatprep.subr.mxu0 0.0
    %2891 = vmatpush1.xpose.msra.mxu0 0.0
    %2892 = vmatprep.subr.mxu0 0.0
    %2893 = vmatpush1.xpose.msra.mxu0 0.0
    %2894 = vmatprep.subr.mxu0 0.0
    %2895 = vmatpush1.xpose.msra.mxu0 0.0
    %2896 = vmatprep.subr.mxu0 0.0
    %2897 = vmatpush1.xpose.msra.mxu0 0.0
    %2898 = vmatprep.subr.mxu0 0.0
    %2899 = vmatpush1.xpose.msra.mxu0 0.0
    %2900 = vmatprep.subr.mxu0 0.0
    %2901 = vmatpush1.xpose.msra.mxu0 0.0
    %2902 = vmatprep.subr.mxu0 0.0
    %2903 = vmatpush1.xpose.msra.mxu0 0.0
    %2904 = vmatprep.subr.mxu0 0.0
    %2905 = vmatpush1.xpose.msra.mxu0 0.0
    %2906 = vmatprep.subr.mxu0 0.0
    %2907 = vmatpush1.xpose.msra.mxu0 0.0
    %2908 = vmatprep.subr.mxu0 0.0
    %2909 = vmatpush1.xpose.msra.mxu0 0.0
    %2910 = vmatprep.subr.mxu0 0.0
    %2911 = vmatpush1.xpose.msra.mxu0 0.0
    %2912 = vmatprep.subr.mxu0 0.0
    %2913 = vmatpush1.xpose.msra.mxu0 0.0
    %2914 = vmatprep.subr.mxu0 0.0
    %2915 = vmatpush1.xpose.msra.mxu0 0.0
    %2916 = vmatprep.subr.mxu0 0.0
    %2917 = vmatpush1.xpose.msra.mxu0 0.0
    %2918 = vmatprep.subr.mxu0 0.0
    %2919 = vmatpush1.xpose.msra.mxu0 0.0
    %2920 = vmatprep.subr.mxu0 0.0
    %2921 = vmatpush1.xpose.msra.mxu0 0.0
    %2922 = vmatprep.subr.mxu0 0.0
    %2923 = vmatpush1.xpose.msra.mxu0 0.0
    %2924 = vmatprep.subr.mxu0 0.0
    %2925 = vmatpush1.xpose.msra.mxu0 0.0
    %2926 = vmatprep.subr.mxu0 0.0
    %2927 = vmatpush1.xpose.msra.mxu0 0.0
    %2928 = vmatprep.subr.mxu0 0.0
    %2929 = vmatpush1.xpose.msra.mxu0 0.0
    %2930 = vmatprep.subr.mxu0 0.0
    %2931 = vmatpush1.xpose.msra.mxu0 0.0
    %2932 = vmatprep.subr.mxu0 0.0
    %2933 = vmatpush1.xpose.msra.mxu0 0.0
    %2934 = vmatprep.subr.mxu0 0.0
    %2935 = vmatpush1.xpose.msra.mxu0 0.0
    %2936 = vmatprep.subr.mxu0 0.0
    %2937 = vmatpush1.xpose.msra.mxu0 0.0
    %2938 = vmatprep.subr.mxu0 0.0
    %2939 = vmatpush1.xpose.msra.mxu0 0.0
    %2940 = vmatprep.mubr.f32.mxu0 0.0
    %2941 = vmatmul.mubr.f32.gmra.mrb[0].mxu0 %v2872
    %v2942 = vpop.f32.mrb[0].mxu0
    %v2943 = vadd.f32 %v47, %v2942
    %v2944 = vpop.f32.mrb[0].mxu0
    %2945 = vdwg.mxu0
    %v2946 = vadd.f32 %v2865, %v482
    %v2947 = vadd.f32 %v2943, %v486
    %v2948 = vsel %vm324, %v2946, -inf
    %2949 = vmax.xlane.f32.xlu0 %v2948
    %v2950 = vpop.xlane.xlu0 %2949
    %v2951 = vsel %vm324, %v2947, -inf
    %2952 = vmax.xlane.f32.xlu0 %v2951
    %v2953 = vpop.xlane.xlu0 %2952
    %v2954 = vsub.f32 %v2946, %v2950
    %v2955 = vsub.f32 %v2947, %v2953
    %v2956 = vmul.f32 %v2954, 1.442695
    %v2957 = vpow.pop %v2956
    %v2958 = vmul.f32 %v2955, 1.442695
    %v2959 = vpow.pop %v2958
    %v2960 = vsel %vm324, %v2957, 0.0
    %2961 = vadd.xlane.f32.xlu0 %v2960
    %v2962 = vpop.xlane.xlu0 %2961
    %v2963 = vsel %vm324, %v2959, 0.0
    %2964 = vadd.xlane.f32.xlu0 %v2963
    %v2965 = vpop.xlane.xlu0 %2964
    %v2966 = vrcp.pop %v2962
    %v2967 = vrcp.pop %v2965
    %v2968 = vmul.f32 %v2957, %v2966
    %v2969 = vmul.f32 %v2959, %v2967
    %2971 = vrot.lane.b32.xlu0 %v2455, 120
    %v2972 = vpop.permute.xlu0 %2971
    %v2975 = vsel %vm324, %v2968, 0
    %2977 = vmatprep.subr.mxu0 0.0
    %2978 = vmatpush1.msra.mxu0 %v2972
    %2979 = vmatprep.subr.mxu0 0.0
    %2980 = vmatpush1.msra.mxu0 0.0
    %2981 = vmatprep.subr.mxu0 0.0
    %2982 = vmatpush1.msra.mxu0 0.0
    %2983 = vmatprep.subr.mxu0 0.0
    %2984 = vmatpush1.msra.mxu0 0.0
    %2985 = vmatprep.subr.mxu0 0.0
    %2986 = vmatpush1.msra.mxu0 0.0
    %2987 = vmatprep.subr.mxu0 0.0
    %2988 = vmatpush1.msra.mxu0 0.0
    %2989 = vmatprep.subr.mxu0 0.0
    %2990 = vmatpush1.msra.mxu0 0.0
    %2991 = vmatprep.subr.mxu0 0.0
    %2992 = vmatpush1.msra.mxu0 0.0
    %2993 = vmatprep.subr.mxu0 0.0
    %2994 = vmatpush1.msra.mxu0 0.0
    %2995 = vmatprep.subr.mxu0 0.0
    %2996 = vmatpush1.msra.mxu0 0.0
    %2997 = vmatprep.subr.mxu0 0.0
    %2998 = vmatpush1.msra.mxu0 0.0
    %2999 = vmatprep.subr.mxu0 0.0
    %3000 = vmatpush1.msra.mxu0 0.0
    %3001 = vmatprep.subr.mxu0 0.0
    %3002 = vmatpush1.msra.mxu0 0.0
    %3003 = vmatprep.subr.mxu0 0.0
    %3004 = vmatpush1.msra.mxu0 0.0
    %3005 = vmatprep.subr.mxu0 0.0
    %3006 = vmatpush1.msra.mxu0 0.0
    %3007 = vmatprep.subr.mxu0 0.0
    %3008 = vmatpush1.msra.mxu0 0.0
    %3009 = vmatprep.subr.mxu0 0.0
    %3010 = vmatpush1.msra.mxu0 0.0
    %3011 = vmatprep.subr.mxu0 0.0
    %3012 = vmatpush1.msra.mxu0 0.0
    %3013 = vmatprep.subr.mxu0 0.0
    %3014 = vmatpush1.msra.mxu0 0.0
    %3015 = vmatprep.subr.mxu0 0.0
    %3016 = vmatpush1.msra.mxu0 0.0
    %3017 = vmatprep.subr.mxu0 0.0
    %3018 = vmatpush1.msra.mxu0 0.0
    %3019 = vmatprep.subr.mxu0 0.0
    %3020 = vmatpush1.msra.mxu0 0.0
    %3021 = vmatprep.subr.mxu0 0.0
    %3022 = vmatpush1.msra.mxu0 0.0
    %3023 = vmatprep.subr.mxu0 0.0
    %3024 = vmatpush1.msra.mxu0 0.0
    %3025 = vmatprep.subr.mxu0 0.0
    %3026 = vmatpush1.msra.mxu0 0.0
    %3027 = vmatprep.subr.mxu0 0.0
    %3028 = vmatpush1.msra.mxu0 0.0
    %3029 = vmatprep.subr.mxu0 0.0
    %3030 = vmatpush1.msra.mxu0 0.0
    %3031 = vmatprep.subr.mxu0 0.0
    %3032 = vmatpush1.msra.mxu0 0.0
    %3033 = vmatprep.subr.mxu0 0.0
    %3034 = vmatpush1.msra.mxu0 0.0
    %3035 = vmatprep.subr.mxu0 0.0
    %3036 = vmatpush1.msra.mxu0 0.0
    %3037 = vmatprep.subr.mxu0 0.0
    %3038 = vmatpush1.msra.mxu0 0.0
    %3039 = vmatprep.subr.mxu0 0.0
    %3040 = vmatpush1.msra.mxu0 0.0
    %3041 = vmatprep.mubr.f32.mxu0 0.0
    %3042 = vmatmul.mubr.f32.gmra.mrb[0].mxu0 %v2975
    %v3043 = vpop.f32.mrb[0].mxu0
    %v3044 = vadd.f32 0.0, %v3043
    %v3045 = vpop.f32.mrb[0].mxu0
    %3046 = vdwg.mxu0
    %3048 = vrot.lane.b32.xlu0 %v2460, 120
    %v3049 = vpop.permute.xlu0 %3048
    %v3052 = vsel %vm324, %v2969, 0
    %3054 = vmatprep.subr.mxu0 0.0
    %3055 = vmatpush1.msra.mxu0 %v3049
    %3056 = vmatprep.subr.mxu0 0.0
    %3057 = vmatpush1.msra.mxu0 0.0
    %3058 = vmatprep.subr.mxu0 0.0
    %3059 = vmatpush1.msra.mxu0 0.0
    %3060 = vmatprep.subr.mxu0 0.0
    %3061 = vmatpush1.msra.mxu0 0.0
    %3062 = vmatprep.subr.mxu0 0.0
    %3063 = vmatpush1.msra.mxu0 0.0
    %3064 = vmatprep.subr.mxu0 0.0
    %3065 = vmatpush1.msra.mxu0 0.0
    %3066 = vmatprep.subr.mxu0 0.0
    %3067 = vmatpush1.msra.mxu0 0.0
    %3068 = vmatprep.subr.mxu0 0.0
    %3069 = vmatpush1.msra.mxu0 0.0
    %3070 = vmatprep.subr.mxu0 0.0
    %3071 = vmatpush1.msra.mxu0 0.0
    %3072 = vmatprep.subr.mxu0 0.0
    %3073 = vmatpush1.msra.mxu0 0.0
    %3074 = vmatprep.subr.mxu0 0.0
    %3075 = vmatpush1.msra.mxu0 0.0
    %3076 = vmatprep.subr.mxu0 0.0
    %3077 = vmatpush1.msra.mxu0 0.0
    %3078 = vmatprep.subr.mxu0 0.0
    %3079 = vmatpush1.msra.mxu0 0.0
    %3080 = vmatprep.subr.mxu0 0.0
    %3081 = vmatpush1.msra.mxu0 0.0
    %3082 = vmatprep.subr.mxu0 0.0
    %3083 = vmatpush1.msra.mxu0 0.0
    %3084 = vmatprep.subr.mxu0 0.0
    %3085 = vmatpush1.msra.mxu0 0.0
    %3086 = vmatprep.subr.mxu0 0.0
    %3087 = vmatpush1.msra.mxu0 0.0
    %3088 = vmatprep.subr.mxu0 0.0
    %3089 = vmatpush1.msra.mxu0 0.0
    %3090 = vmatprep.subr.mxu0 0.0
    %3091 = vmatpush1.msra.mxu0 0.0
    %3092 = vmatprep.subr.mxu0 0.0
    %3093 = vmatpush1.msra.mxu0 0.0
    %3094 = vmatprep.subr.mxu0 0.0
    %3095 = vmatpush1.msra.mxu0 0.0
    %3096 = vmatprep.subr.mxu0 0.0
    %3097 = vmatpush1.msra.mxu0 0.0
    %3098 = vmatprep.subr.mxu0 0.0
    %3099 = vmatpush1.msra.mxu0 0.0
    %3100 = vmatprep.subr.mxu0 0.0
    %3101 = vmatpush1.msra.mxu0 0.0
    %3102 = vmatprep.subr.mxu0 0.0
    %3103 = vmatpush1.msra.mxu0 0.0
    %3104 = vmatprep.subr.mxu0 0.0
    %3105 = vmatpush1.msra.mxu0 0.0
    %3106 = vmatprep.subr.mxu0 0.0
    %3107 = vmatpush1.msra.mxu0 0.0
    %3108 = vmatprep.subr.mxu0 0.0
    %3109 = vmatpush1.msra.mxu0 0.0
    %3110 = vmatprep.subr.mxu0 0.0
    %3111 = vmatpush1.msra.mxu0 0.0
    %3112 = vmatprep.subr.mxu0 0.0
    %3113 = vmatpush1.msra.mxu0 0.0
    %3114 = vmatprep.subr.mxu0 0.0
    %3115 = vmatpush1.msra.mxu0 0.0
    %3116 = vmatprep.subr.mxu0 0.0
    %3117 = vmatpush1.msra.mxu0 0.0
    %3118 = vmatprep.mubr.f32.mxu0 0.0
    %3119 = vmatmul.mubr.f32.gmra.mrb[0].mxu0 %v3052
    %v3120 = vpop.f32.mrb[0].mxu0
    %v3121 = vadd.f32 0.0, %v3120
    %v3122 = vpop.f32.mrb[0].mxu0
    %3123 = vdwg.mxu0
    %v3125 = vsel %vm324, %v3044, 0
    %v3128 = vsel %vm324, %v3121, 0
    %3130 = vmatprep.subr.mxu0 0.0
    %3131 = vmatpush1.msra.mxu0 %v2465
    %3132 = vmatprep.subr.mxu0 0.0
    %3133 = vmatpush1.msra.mxu0 0.0
    %3134 = vmatprep.subr.mxu0 0.0
    %3135 = vmatpush1.msra.mxu0 0.0
    %3136 = vmatprep.subr.mxu0 0.0
    %3137 = vmatpush1.msra.mxu0 0.0
    %3138 = vmatprep.subr.mxu0 0.0
    %3139 = vmatpush1.msra.mxu0 0.0
    %3140 = vmatprep.subr.mxu0 0.0
    %3141 = vmatpush1.msra.mxu0 0.0
    %3142 = vmatprep.subr.mxu0 0.0
    %3143 = vmatpush1.msra.mxu0 0.0
    %3144 = vmatprep.subr.mxu0 0.0
    %3145 = vmatpush1.msra.mxu0 0.0
    %3146 = vmatprep.subr.mxu0 0.0
    %3147 = vmatpush1.msra.mxu0 0.0
    %3148 = vmatprep.subr.mxu0 0.0
    %3149 = vmatpush1.msra.mxu0 0.0
    %3150 = vmatprep.subr.mxu0 0.0
    %3151 = vmatpush1.msra.mxu0 0.0
    %3152 = vmatprep.subr.mxu0 0.0
    %3153 = vmatpush1.msra.mxu0 0.0
    %3154 = vmatprep.subr.mxu0 0.0
    %3155 = vmatpush1.msra.mxu0 0.0
    %3156 = vmatprep.subr.mxu0 0.0
    %3157 = vmatpush1.msra.mxu0 0.0
    %3158 = vmatprep.subr.mxu0 0.0
    %3159 = vmatpush1.msra.mxu0 0.0
    %3160 = vmatprep.subr.mxu0 0.0
    %3161 = vmatpush1.msra.mxu0 0.0
    %3162 = vmatprep.subr.mxu0 0.0
    %3163 = vmatpush1.msra.mxu0 0.0
    %3164 = vmatprep.subr.mxu0 0.0
    %3165 = vmatpush1.msra.mxu0 0.0
    %3166 = vmatprep.subr.mxu0 0.0
    %3167 = vmatpush1.msra.mxu0 0.0
    %3168 = vmatprep.subr.mxu0 0.0
    %3169 = vmatpush1.msra.mxu0 0.0
    %3170 = vmatprep.subr.mxu0 0.0
    %3171 = vmatpush1.msra.mxu0 0.0
    %3172 = vmatprep.subr.mxu0 0.0
    %3173 = vmatpush1.msra.mxu0 0.0
    %3174 = vmatprep.subr.mxu0 0.0
    %3175 = vmatpush1.msra.mxu0 0.0
    %3176 = vmatprep.subr.mxu0 0.0
    %3177 = vmatpush1.msra.mxu0 0.0
    %3178 = vmatprep.subr.mxu0 0.0
    %3179 = vmatpush1.msra.mxu0 0.0
    %3180 = vmatprep.subr.mxu0 0.0
    %3181 = vmatpush1.msra.mxu0 0.0
    %3182 = vmatprep.subr.mxu0 0.0
    %3183 = vmatpush1.msra.mxu0 0.0
    %3184 = vmatprep.subr.mxu0 0.0
    %3185 = vmatpush1.msra.mxu0 0.0
    %3186 = vmatprep.subr.mxu0 0.0
    %3187 = vmatpush1.msra.mxu0 0.0
    %3188 = vmatprep.subr.mxu0 0.0
    %3189 = vmatpush1.msra.mxu0 0.0
    %3190 = vmatprep.subr.mxu0 0.0
    %3191 = vmatpush1.msra.mxu0 0.0
    %3192 = vmatprep.subr.mxu0 0.0
    %3193 = vmatpush1.msra.mxu0 0.0
    %3194 = vmatprep.mubr.f32.mxu0 0.0
    %3195 = vmatmul.mubr.f32.gmra.mrb[0].mxu0 %v3125
    %v3196 = vpop.f32.mrb[0].mxu0
    %v3197 = vadd.f32 0.0, %v3196
    %v3198 = vpop.f32.mrb[0].mxu0
    %3199 = vmatprep.mubr.f32.mxu0 0.0
    %3200 = vmatmul.mubr.f32.gmra.mrb[0].mxu0 %v3128
    %v3201 = vpop.f32.mrb[0].mxu0
    %v3202 = vadd.f32 0.0, %v3201
    %v3203 = vpop.f32.mrb[0].mxu0
    %3204 = vdwg.mxu0
    %v3206 = vsel %vm324, %v2714, 0
    %v3209 = vsel %vm324, %v2787, 0
    %3211 = vmatprep.subr.mxu0 0.0
    %3212 = vmatpush1.msra.mxu0 %v2464
    %3213 = vmatprep.subr.mxu0 0.0
    %3214 = vmatpush1.msra.mxu0 0.0
    %3215 = vmatprep.subr.mxu0 0.0
    %3216 = vmatpush1.msra.mxu0 0.0
    %3217 = vmatprep.subr.mxu0 0.0
    %3218 = vmatpush1.msra.mxu0 0.0
    %3219 = vmatprep.subr.mxu0 0.0
    %3220 = vmatpush1.msra.mxu0 0.0
    %3221 = vmatprep.subr.mxu0 0.0
    %3222 = vmatpush1.msra.mxu0 0.0
    %3223 = vmatprep.subr.mxu0 0.0
    %3224 = vmatpush1.msra.mxu0 0.0
    %3225 = vmatprep.subr.mxu0 0.0
    %3226 = vmatpush1.msra.mxu0 0.0
    %3227 = vmatprep.subr.mxu0 0.0
    %3228 = vmatpush1.msra.mxu0 0.0
    %3229 = vmatprep.subr.mxu0 0.0
    %3230 = vmatpush1.msra.mxu0 0.0
    %3231 = vmatprep.subr.mxu0 0.0
    %3232 = vmatpush1.msra.mxu0 0.0
    %3233 = vmatprep.subr.mxu0 0.0
    %3234 = vmatpush1.msra.mxu0 0.0
    %3235 = vmatprep.subr.mxu0 0.0
    %3236 = vmatpush1.msra.mxu0 0.0
    %3237 = vmatprep.subr.mxu0 0.0
    %3238 = vmatpush1.msra.mxu0 0.0
    %3239 = vmatprep.subr.mxu0 0.0
    %3240 = vmatpush1.msra.mxu0 0.0
    %3241 = vmatprep.subr.mxu0 0.0
    %3242 = vmatpush1.msra.mxu0 0.0
    %3243 = vmatprep.subr.mxu0 0.0
    %3244 = vmatpush1.msra.mxu0 0.0
    %3245 = vmatprep.subr.mxu0 0.0
    %3246 = vmatpush1.msra.mxu0 0.0
    %3247 = vmatprep.subr.mxu0 0.0
    %3248 = vmatpush1.msra.mxu0 0.0
    %3249 = vmatprep.subr.mxu0 0.0
    %3250 = vmatpush1.msra.mxu0 0.0
    %3251 = vmatprep.subr.mxu0 0.0
    %3252 = vmatpush1.msra.mxu0 0.0
    %3253 = vmatprep.subr.mxu0 0.0
    %3254 = vmatpush1.msra.mxu0 0.0
    %3255 = vmatprep.subr.mxu0 0.0
    %3256 = vmatpush1.msra.mxu0 0.0
    %3257 = vmatprep.subr.mxu0 0.0
    %3258 = vmatpush1.msra.mxu0 0.0
    %3259 = vmatprep.subr.mxu0 0.0
    %3260 = vmatpush1.msra.mxu0 0.0
    %3261 = vmatprep.subr.mxu0 0.0
    %3262 = vmatpush1.msra.mxu0 0.0
    %3263 = vmatprep.subr.mxu0 0.0
    %3264 = vmatpush1.msra.mxu0 0.0
    %3265 = vmatprep.subr.mxu0 0.0
    %3266 = vmatpush1.msra.mxu0 0.0
    %3267 = vmatprep.subr.mxu0 0.0
    %3268 = vmatpush1.msra.mxu0 0.0
    %3269 = vmatprep.subr.mxu0 0.0
    %3270 = vmatpush1.msra.mxu0 0.0
    %3271 = vmatprep.subr.mxu0 0.0
    %3272 = vmatpush1.msra.mxu0 0.0
    %3273 = vmatprep.subr.mxu0 0.0
    %3274 = vmatpush1.msra.mxu0 0.0
    %3275 = vmatprep.mubr.f32.mxu0 0.0
    %3276 = vmatmul.mubr.f32.gmra.mrb[0].mxu0 %v3206
    %v3277 = vpop.f32.mrb[0].mxu0
    %v3278 = vadd.f32 %v3197, %v3277
    %v3279 = vpop.f32.mrb[0].mxu0
    %3280 = vmatprep.mubr.f32.mxu0 0.0
    %3281 = vmatmul.mubr.f32.gmra.mrb[0].mxu0 %v3209
    %v3282 = vpop.f32.mrb[0].mxu0
    %v3283 = vadd.f32 %v3202, %v3282
    %v3284 = vpop.f32.mrb[0].mxu0
    %3285 = vdwg.mxu0
    %3286 = vrot.lane.b32.xlu0 %v2295, 112
    %v3287 = vpop.permute.xlu0 %3286
    %3288 = vrot.lane.b32.xlu0 %v2375, 112
    %v3289 = vpop.permute.xlu0 %3288
    %v3290 = vsel %vm324, %v3287, 0
    %v3292 = vsel %vm324, %v3289, 0
    %3294 = vmatprep.subr.mxu0 0.0
    %3295 = vmatpush1.xpose.msra.mxu0 %v3292
    %3296 = vmatprep.subr.mxu0 0.0
    %3297 = vmatpush1.xpose.msra.mxu0 0.0
    %3298 = vmatprep.subr.mxu0 0.0
    %3299 = vmatpush1.xpose.msra.mxu0 0.0
    %3300 = vmatprep.subr.mxu0 0.0
    %3301 = vmatpush1.xpose.msra.mxu0 0.0
    %3302 = vmatprep.subr.mxu0 0.0
    %3303 = vmatpush1.xpose.msra.mxu0 0.0
    %3304 = vmatprep.subr.mxu0 0.0
    %3305 = vmatpush1.xpose.msra.mxu0 0.0
    %3306 = vmatprep.subr.mxu0 0.0
    %3307 = vmatpush1.xpose.msra.mxu0 0.0
    %3308 = vmatprep.subr.mxu0 0.0
    %3309 = vmatpush1.xpose.msra.mxu0 0.0
    %3310 = vmatprep.subr.mxu0 0.0
    %3311 = vmatpush1.xpose.msra.mxu0 0.0
    %3312 = vmatprep.subr.mxu0 0.0
    %3313 = vmatpush1.xpose.msra.mxu0 0.0
    %3314 = vmatprep.subr.mxu0 0.0
    %3315 = vmatpush1.xpose.msra.mxu0 0.0
    %3316 = vmatprep.subr.mxu0 0.0
    %3317 = vmatpush1.xpose.msra.mxu0 0.0
    %3318 = vmatprep.subr.mxu0 0.0
    %3319 = vmatpush1.xpose.msra.mxu0 0.0
    %3320 = vmatprep.subr.mxu0 0.0
    %3321 = vmatpush1.xpose.msra.mxu0 0.0
    %3322 = vmatprep.subr.mxu0 0.0
    %3323 = vmatpush1.xpose.msra.mxu0 0.0
    %3324 = vmatprep.subr.mxu0 0.0
    %3325 = vmatpush1.xpose.msra.mxu0 0.0
    %3326 = vmatprep.subr.mxu0 0.0
    %3327 = vmatpush1.xpose.msra.mxu0 0.0
    %3328 = vmatprep.subr.mxu0 0.0
    %3329 = vmatpush1.xpose.msra.mxu0 0.0
    %3330 = vmatprep.subr.mxu0 0.0
    %3331 = vmatpush1.xpose.msra.mxu0 0.0
    %3332 = vmatprep.subr.mxu0 0.0
    %3333 = vmatpush1.xpose.msra.mxu0 0.0
    %3334 = vmatprep.subr.mxu0 0.0
    %3335 = vmatpush1.xpose.msra.mxu0 0.0
    %3336 = vmatprep.subr.mxu0 0.0
    %3337 = vmatpush1.xpose.msra.mxu0 0.0
    %3338 = vmatprep.subr.mxu0 0.0
    %3339 = vmatpush1.xpose.msra.mxu0 0.0
    %3340 = vmatprep.subr.mxu0 0.0
    %3341 = vmatpush1.xpose.msra.mxu0 0.0
    %3342 = vmatprep.subr.mxu0 0.0
    %3343 = vmatpush1.xpose.msra.mxu0 0.0
    %3344 = vmatprep.subr.mxu0 0.0
    %3345 = vmatpush1.xpose.msra.mxu0 0.0
    %3346 = vmatprep.subr.mxu0 0.0
    %3347 = vmatpush1.xpose.msra.mxu0 0.0
    %3348 = vmatprep.subr.mxu0 0.0
    %3349 = vmatpush1.xpose.msra.mxu0 0.0
    %3350 = vmatprep.subr.mxu0 0.0
    %3351 = vmatpush1.xpose.msra.mxu0 0.0
    %3352 = vmatprep.subr.mxu0 0.0
    %3353 = vmatpush1.xpose.msra.mxu0 0.0
    %3354 = vmatprep.subr.mxu0 0.0
    %3355 = vmatpush1.xpose.msra.mxu0 0.0
    %3356 = vmatprep.subr.mxu0 0.0
    %3357 = vmatpush1.xpose.msra.mxu0 0.0
    %3358 = vmatprep.mubr.f32.mxu0 0.0
    %3359 = vmatmul.mubr.f32.gmra.mrb[0].mxu0 %v3290
    %v3360 = vpop.f32.mrb[0].mxu0
    %v3361 = vadd.f32 %v48, %v3360
    %v3362 = vpop.f32.mrb[0].mxu0
    %3363 = vdwg.mxu0
    %3364 = vrot.lane.b32.xlu0 %v2300, 112
    %v3365 = vpop.permute.xlu0 %3364
    %3366 = vrot.lane.b32.xlu0 %v2380, 112
    %v3367 = vpop.permute.xlu0 %3366
    %v3368 = vsel %vm324, %v3365, 0
    %v3370 = vsel %vm324, %v3367, 0
    %3372 = vmatprep.subr.mxu0 0.0
    %3373 = vmatpush1.xpose.msra.mxu0 %v3370
    %3374 = vmatprep.subr.mxu0 0.0
    %3375 = vmatpush1.xpose.msra.mxu0 0.0
    %3376 = vmatprep.subr.mxu0 0.0
    %3377 = vmatpush1.xpose.msra.mxu0 0.0
    %3378 = vmatprep.subr.mxu0 0.0
    %3379 = vmatpush1.xpose.msra.mxu0 0.0
    %3380 = vmatprep.subr.mxu0 0.0
    %3381 = vmatpush1.xpose.msra.mxu0 0.0
    %3382 = vmatprep.subr.mxu0 0.0
    %3383 = vmatpush1.xpose.msra.mxu0 0.0
    %3384 = vmatprep.subr.mxu0 0.0
    %3385 = vmatpush1.xpose.msra.mxu0 0.0
    %3386 = vmatprep.subr.mxu0 0.0
    %3387 = vmatpush1.xpose.msra.mxu0 0.0
    %3388 = vmatprep.subr.mxu0 0.0
    %3389 = vmatpush1.xpose.msra.mxu0 0.0
    %3390 = vmatprep.subr.mxu0 0.0
    %3391 = vmatpush1.xpose.msra.mxu0 0.0
    %3392 = vmatprep.subr.mxu0 0.0
    %3393 = vmatpush1.xpose.msra.mxu0 0.0
    %3394 = vmatprep.subr.mxu0 0.0
    %3395 = vmatpush1.xpose.msra.mxu0 0.0
    %3396 = vmatprep.subr.mxu0 0.0
    %3397 = vmatpush1.xpose.msra.mxu0 0.0
    %3398 = vmatprep.subr.mxu0 0.0
    %3399 = vmatpush1.xpose.msra.mxu0 0.0
    %3400 = vmatprep.subr.mxu0 0.0
    %3401 = vmatpush1.xpose.msra.mxu0 0.0
    %3402 = vmatprep.subr.mxu0 0.0
    %3403 = vmatpush1.xpose.msra.mxu0 0.0
    %3404 = vmatprep.subr.mxu0 0.0
    %3405 = vmatpush1.xpose.msra.mxu0 0.0
    %3406 = vmatprep.subr.mxu0 0.0
    %3407 = vmatpush1.xpose.msra.mxu0 0.0
    %3408 = vmatprep.subr.mxu0 0.0
    %3409 = vmatpush1.xpose.msra.mxu0 0.0
    %3410 = vmatprep.subr.mxu0 0.0
    %3411 = vmatpush1.xpose.msra.mxu0 0.0
    %3412 = vmatprep.subr.mxu0 0.0
    %3413 = vmatpush1.xpose.msra.mxu0 0.0
    %3414 = vmatprep.subr.mxu0 0.0
    %3415 = vmatpush1.xpose.msra.mxu0 0.0
    %3416 = vmatprep.subr.mxu0 0.0
    %3417 = vmatpush1.xpose.msra.mxu0 0.0
    %3418 = vmatprep.subr.mxu0 0.0
    %3419 = vmatpush1.xpose.msra.mxu0 0.0
    %3420 = vmatprep.subr.mxu0 0.0
    %3421 = vmatpush1.xpose.msra.mxu0 0.0
    %3422 = vmatprep.subr.mxu0 0.0
    %3423 = vmatpush1.xpose.msra.mxu0 0.0
    %3424 = vmatprep.subr.mxu0 0.0
    %3425 = vmatpush1.xpose.msra.mxu0 0.0
    %3426 = vmatprep.subr.mxu0 0.0
    %3427 = vmatpush1.xpose.msra.mxu0 0.0
    %3428 = vmatprep.subr.mxu0 0.0
    %3429 = vmatpush1.xpose.msra.mxu0 0.0
    %3430 = vmatprep.subr.mxu0 0.0
    %3431 = vmatpush1.xpose.msra.mxu0 0.0
    %3432 = vmatprep.subr.mxu0 0.0
    %3433 = vmatpush1.xpose.msra.mxu0 0.0
    %3434 = vmatprep.subr.mxu0 0.0
    %3435 = vmatpush1.xpose.msra.mxu0 0.0
    %3436 = vmatprep.mubr.f32.mxu0 0.0
    %3437 = vmatmul.mubr.f32.gmra.mrb[0].mxu0 %v3368
    %v3438 = vpop.f32.mrb[0].mxu0
    %v3439 = vadd.f32 %v48, %v3438
    %v3440 = vpop.f32.mrb[0].mxu0
    %3441 = vdwg.mxu0
    %v3442 = vadd.f32 %v3361, %v482
    %v3443 = vadd.f32 %v3439, %v486
    %v3444 = vsel %vm324, %v3442, -inf
    %3445 = vmax.xlane.f32.xlu0 %v3444
    %v3446 = vpop.xlane.xlu0 %3445
    %v3447 = vsel %vm324, %v3443, -inf
    %3448 = vmax.xlane.f32.xlu0 %v3447
    %v3449 = vpop.xlane.xlu0 %3448
    %v3450 = vsub.f32 %v3442, %v3446
    %v3451 = vsub.f32 %v3443, %v3449
    %v3452 = vmul.f32 %v3450, 1.442695
    %v3453 = vpow.pop %v3452
    %v3454 = vmul.f32 %v3451, 1.442695
    %v3455 = vpow.pop %v3454
    %v3456 = vsel %vm324, %v3453, 0.0
    %3457 = vadd.xlane.f32.xlu0 %v3456
    %v3458 = vpop.xlane.xlu0 %3457
    %v3459 = vsel %vm324, %v3455, 0.0
    %3460 = vadd.xlane.f32.xlu0 %v3459
    %v3461 = vpop.xlane.xlu0 %3460
    %v3462 = vrcp.pop %v3458
    %v3463 = vrcp.pop %v3461
    %v3464 = vmul.f32 %v3453, %v3462
    %v3465 = vmul.f32 %v3455, %v3463
    %3466 = vrot.lane.b32.xlu0 %v2455, 112
    %v3467 = vpop.permute.xlu0 %3466
    %v3470 = vsel %vm324, %v3464, 0
    %3472 = vmatprep.subr.mxu0 0.0
    %3473 = vmatpush1.msra.mxu0 %v3467
    %3474 = vmatprep.subr.mxu0 0.0
    %3475 = vmatpush1.msra.mxu0 0.0
    %3476 = vmatprep.subr.mxu0 0.0
    %3477 = vmatpush1.msra.mxu0 0.0
    %3478 = vmatprep.subr.mxu0 0.0
    %3479 = vmatpush1.msra.mxu0 0.0
    %3480 = vmatprep.subr.mxu0 0.0
    %3481 = vmatpush1.msra.mxu0 0.0
    %3482 = vmatprep.subr.mxu0 0.0
    %3483 = vmatpush1.msra.mxu0 0.0
    %3484 = vmatprep.subr.mxu0 0.0
    %3485 = vmatpush1.msra.mxu0 0.0
    %3486 = vmatprep.subr.mxu0 0.0
    %3487 = vmatpush1.msra.mxu0 0.0
    %3488 = vmatprep.subr.mxu0 0.0
    %3489 = vmatpush1.msra.mxu0 0.0
    %3490 = vmatprep.subr.mxu0 0.0
    %3491 = vmatpush1.msra.mxu0 0.0
    %3492 = vmatprep.subr.mxu0 0.0
    %3493 = vmatpush1.msra.mxu0 0.0
    %3494 = vmatprep.subr.mxu0 0.0
    %3495 = vmatpush1.msra.mxu0 0.0
    %3496 = vmatprep.subr.mxu0 0.0
    %3497 = vmatpush1.msra.mxu0 0.0
    %3498 = vmatprep.subr.mxu0 0.0
    %3499 = vmatpush1.msra.mxu0 0.0
    %3500 = vmatprep.subr.mxu0 0.0
    %3501 = vmatpush1.msra.mxu0 0.0
    %3502 = vmatprep.subr.mxu0 0.0
    %3503 = vmatpush1.msra.mxu0 0.0
    %3504 = vmatprep.subr.mxu0 0.0
    %3505 = vmatpush1.msra.mxu0 0.0
    %3506 = vmatprep.subr.mxu0 0.0
    %3507 = vmatpush1.msra.mxu0 0.0
    %3508 = vmatprep.subr.mxu0 0.0
    %3509 = vmatpush1.msra.mxu0 0.0
    %3510 = vmatprep.subr.mxu0 0.0
    %3511 = vmatpush1.msra.mxu0 0.0
    %3512 = vmatprep.subr.mxu0 0.0
    %3513 = vmatpush1.msra.mxu0 0.0
    %3514 = vmatprep.subr.mxu0 0.0
    %3515 = vmatpush1.msra.mxu0 0.0
    %3516 = vmatprep.subr.mxu0 0.0
    %3517 = vmatpush1.msra.mxu0 0.0
    %3518 = vmatprep.subr.mxu0 0.0
    %3519 = vmatpush1.msra.mxu0 0.0
    %3520 = vmatprep.subr.mxu0 0.0
    %3521 = vmatpush1.msra.mxu0 0.0
    %3522 = vmatprep.subr.mxu0 0.0
    %3523 = vmatpush1.msra.mxu0 0.0
    %3524 = vmatprep.subr.mxu0 0.0
    %3525 = vmatpush1.msra.mxu0 0.0
    %3526 = vmatprep.subr.mxu0 0.0
    %3527 = vmatpush1.msra.mxu0 0.0
    %3528 = vmatprep.subr.mxu0 0.0
    %3529 = vmatpush1.msra.mxu0 0.0
    %3530 = vmatprep.subr.mxu0 0.0
    %3531 = vmatpush1.msra.mxu0 0.0
    %3532 = vmatprep.subr.mxu0 0.0
    %3533 = vmatpush1.msra.mxu0 0.0
    %3534 = vmatprep.subr.mxu0 0.0
    %3535 = vmatpush1.msra.mxu0 0.0
    %3536 = vmatprep.mubr.f32.mxu0 0.0
    %3537 = vmatmul.mubr.f32.gmra.mrb[0].mxu0 %v3470
    %v3538 = vpop.f32.mrb[0].mxu0
    %v3539 = vadd.f32 0.0, %v3538
    %v3540 = vpop.f32.mrb[0].mxu0
    %3541 = vdwg.mxu0
    %3542 = vrot.lane.b32.xlu0 %v2460, 112
    %v3543 = vpop.permute.xlu0 %3542
    %v3546 = vsel %vm324, %v3465, 0
    %3548 = vmatprep.subr.mxu0 0.0
    %3549 = vmatpush1.msra.mxu0 %v3543
    %3550 = vmatprep.subr.mxu0 0.0
    %3551 = vmatpush1.msra.mxu0 0.0
    %3552 = vmatprep.subr.mxu0 0.0
    %3553 = vmatpush1.msra.mxu0 0.0
    %3554 = vmatprep.subr.mxu0 0.0
    %3555 = vmatpush1.msra.mxu0 0.0
    %3556 = vmatprep.subr.mxu0 0.0
    %3557 = vmatpush1.msra.mxu0 0.0
    %3558 = vmatprep.subr.mxu0 0.0
    %3559 = vmatpush1.msra.mxu0 0.0
    %3560 = vmatprep.subr.mxu0 0.0
    %3561 = vmatpush1.msra.mxu0 0.0
    %3562 = vmatprep.subr.mxu0 0.0
    %3563 = vmatpush1.msra.mxu0 0.0
    %3564 = vmatprep.subr.mxu0 0.0
    %3565 = vmatpush1.msra.mxu0 0.0
    %3566 = vmatprep.subr.mxu0 0.0
    %3567 = vmatpush1.msra.mxu0 0.0
    %3568 = vmatprep.subr.mxu0 0.0
    %3569 = vmatpush1.msra.mxu0 0.0
    %3570 = vmatprep.subr.mxu0 0.0
    %3571 = vmatpush1.msra.mxu0 0.0
    %3572 = vmatprep.subr.mxu0 0.0
    %3573 = vmatpush1.msra.mxu0 0.0
    %3574 = vmatprep.subr.mxu0 0.0
    %3575 = vmatpush1.msra.mxu0 0.0
    %3576 = vmatprep.subr.mxu0 0.0
    %3577 = vmatpush1.msra.mxu0 0.0
    %3578 = vmatprep.subr.mxu0 0.0
    %3579 = vmatpush1.msra.mxu0 0.0
    %3580 = vmatprep.subr.mxu0 0.0
    %3581 = vmatpush1.msra.mxu0 0.0
    %3582 = vmatprep.subr.mxu0 0.0
    %3583 = vmatpush1.msra.mxu0 0.0
    %3584 = vmatprep.subr.mxu0 0.0
    %3585 = vmatpush1.msra.mxu0 0.0
    %3586 = vmatprep.subr.mxu0 0.0
    %3587 = vmatpush1.msra.mxu0 0.0
    %3588 = vmatprep.subr.mxu0 0.0
    %3589 = vmatpush1.msra.mxu0 0.0
    %3590 = vmatprep.subr.mxu0 0.0
    %3591 = vmatpush1.msra.mxu0 0.0
    %3592 = vmatprep.subr.mxu0 0.0
    %3593 = vmatpush1.msra.mxu0 0.0
    %3594 = vmatprep.subr.mxu0 0.0
    %3595 = vmatpush1.msra.mxu0 0.0
    %3596 = vmatprep.subr.mxu0 0.0
    %3597 = vmatpush1.msra.mxu0 0.0
    %3598 = vmatprep.subr.mxu0 0.0
    %3599 = vmatpush1.msra.mxu0 0.0
    %3600 = vmatprep.subr.mxu0 0.0
    %3601 = vmatpush1.msra.mxu0 0.0
    %3602 = vmatprep.subr.mxu0 0.0
    %3603 = vmatpush1.msra.mxu0 0.0
    %3604 = vmatprep.subr.mxu0 0.0
    %3605 = vmatpush1.msra.mxu0 0.0
    %3606 = vmatprep.subr.mxu0 0.0
    %3607 = vmatpush1.msra.mxu0 0.0
    %3608 = vmatprep.subr.mxu0 0.0
    %3609 = vmatpush1.msra.mxu0 0.0
    %3610 = vmatprep.subr.mxu0 0.0
    %3611 = vmatpush1.msra.mxu0 0.0
    %3612 = vmatprep.mubr.f32.mxu0 0.0
    %3613 = vmatmul.mubr.f32.gmra.mrb[0].mxu0 %v3546
    %v3614 = vpop.f32.mrb[0].mxu0
    %v3615 = vadd.f32 0.0, %v3614
    %v3616 = vpop.f32.mrb[0].mxu0
    %3617 = vdwg.mxu0
    %v3619 = vsel %vm324, %v3539, 0
    %v3622 = vsel %vm324, %v3615, 0
    %3624 = vmatprep.subr.mxu0 0.0
    %3625 = vmatpush1.msra.mxu0 %v2466
    %3626 = vmatprep.subr.mxu0 0.0
    %3627 = vmatpush1.msra.mxu0 0.0
    %3628 = vmatprep.subr.mxu0 0.0
    %3629 = vmatpush1.msra.mxu0 0.0
    %3630 = vmatprep.subr.mxu0 0.0
    %3631 = vmatpush1.msra.mxu0 0.0
    %3632 = vmatprep.subr.mxu0 0.0
    %3633 = vmatpush1.msra.mxu0 0.0
    %3634 = vmatprep.subr.mxu0 0.0
    %3635 = vmatpush1.msra.mxu0 0.0
    %3636 = vmatprep.subr.mxu0 0.0
    %3637 = vmatpush1.msra.mxu0 0.0
    %3638 = vmatprep.subr.mxu0 0.0
    %3639 = vmatpush1.msra.mxu0 0.0
    %3640 = vmatprep.subr.mxu0 0.0
    %3641 = vmatpush1.msra.mxu0 0.0
    %3642 = vmatprep.subr.mxu0 0.0
    %3643 = vmatpush1.msra.mxu0 0.0
    %3644 = vmatprep.subr.mxu0 0.0
    %3645 = vmatpush1.msra.mxu0 0.0
    %3646 = vmatprep.subr.mxu0 0.0
    %3647 = vmatpush1.msra.mxu0 0.0
    %3648 = vmatprep.subr.mxu0 0.0
    %3649 = vmatpush1.msra.mxu0 0.0
    %3650 = vmatprep.subr.mxu0 0.0
    %3651 = vmatpush1.msra.mxu0 0.0
    %3652 = vmatprep.subr.mxu0 0.0
    %3653 = vmatpush1.msra.mxu0 0.0
    %3654 = vmatprep.subr.mxu0 0.0
    %3655 = vmatpush1.msra.mxu0 0.0
    %3656 = vmatprep.subr.mxu0 0.0
    %3657 = vmatpush1.msra.mxu0 0.0
    %3658 = vmatprep.subr.mxu0 0.0
    %3659 = vmatpush1.msra.mxu0 0.0
    %3660 = vmatprep.subr.mxu0 0.0
    %3661 = vmatpush1.msra.mxu0 0.0
    %3662 = vmatprep.subr.mxu0 0.0
    %3663 = vmatpush1.msra.mxu0 0.0
    %3664 = vmatprep.subr.mxu0 0.0
    %3665 = vmatpush1.msra.mxu0 0.0
    %3666 = vmatprep.subr.mxu0 0.0
    %3667 = vmatpush1.msra.mxu0 0.0
    %3668 = vmatprep.subr.mxu0 0.0
    %3669 = vmatpush1.msra.mxu0 0.0
    %3670 = vmatprep.subr.mxu0 0.0
    %3671 = vmatpush1.msra.mxu0 0.0
    %3672 = vmatprep.subr.mxu0 0.0
    %3673 = vmatpush1.msra.mxu0 0.0
    %3674 = vmatprep.subr.mxu0 0.0
    %3675 = vmatpush1.msra.mxu0 0.0
    %3676 = vmatprep.subr.mxu0 0.0
    %3677 = vmatpush1.msra.mxu0 0.0
    %3678 = vmatprep.subr.mxu0 0.0
    %3679 = vmatpush1.msra.mxu0 0.0
    %3680 = vmatprep.subr.mxu0 0.0
    %3681 = vmatpush1.msra.mxu0 0.0
    %3682 = vmatprep.subr.mxu0 0.0
    %3683 = vmatpush1.msra.mxu0 0.0
    %3684 = vmatprep.subr.mxu0 0.0
    %3685 = vmatpush1.msra.mxu0 0.0
    %3686 = vmatprep.subr.mxu0 0.0
    %3687 = vmatpush1.msra.mxu0 0.0
    %3688 = vmatprep.mubr.f32.mxu0 0.0
    %3689 = vmatmul.mubr.f32.gmra.mrb[0].mxu0 %v3619
    %v3690 = vpop.f32.mrb[0].mxu0
    %v3691 = vadd.f32 0.0, %v3690
    %v3692 = vpop.f32.mrb[0].mxu0
    %3693 = vmatprep.mubr.f32.mxu0 0.0
    %3694 = vmatmul.mubr.f32.gmra.mrb[0].mxu0 %v3622
    %v3695 = vpop.f32.mrb[0].mxu0
    %v3696 = vadd.f32 0.0, %v3695
    %v3697 = vpop.f32.mrb[0].mxu0
    %3698 = vdwg.mxu0
    %v3699 = vadd.f32 %v3278, %v3691
    %v3700 = vadd.f32 %v3283, %v3696
    %3701 = vrot.lane.b32.xlu0 %v2295, 104
    %v3702 = vpop.permute.xlu0 %3701
    %3703 = vrot.lane.b32.xlu0 %v2375, 104
    %v3704 = vpop.permute.xlu0 %3703
    %v3705 = vsel %vm324, %v3702, 0
    %v3707 = vsel %vm324, %v3704, 0
    %3709 = vmatprep.subr.mxu0 0.0
    %3710 = vmatpush1.xpose.msra.mxu0 %v3707
    %3711 = vmatprep.subr.mxu0 0.0
    %3712 = vmatpush1.xpose.msra.mxu0 0.0
    %3713 = vmatprep.subr.mxu0 0.0
    %3714 = vmatpush1.xpose.msra.mxu0 0.0
    %3715 = vmatprep.subr.mxu0 0.0
    %3716 = vmatpush1.xpose.msra.mxu0 0.0
    %3717 = vmatprep.subr.mxu0 0.0
    %3718 = vmatpush1.xpose.msra.mxu0 0.0
    %3719 = vmatprep.subr.mxu0 0.0
    %3720 = vmatpush1.xpose.msra.mxu0 0.0
    %3721 = vmatprep.subr.mxu0 0.0
    %3722 = vmatpush1.xpose.msra.mxu0 0.0
    %3723 = vmatprep.subr.mxu0 0.0
    %3724 = vmatpush1.xpose.msra.mxu0 0.0
    %3725 = vmatprep.subr.mxu0 0.0
    %3726 = vmatpush1.xpose.msra.mxu0 0.0
    %3727 = vmatprep.subr.mxu0 0.0
    %3728 = vmatpush1.xpose.msra.mxu0 0.0
    %3729 = vmatprep.subr.mxu0 0.0
    %3730 = vmatpush1.xpose.msra.mxu0 0.0
    %3731 = vmatprep.subr.mxu0 0.0
    %3732 = vmatpush1.xpose.msra.mxu0 0.0
    %3733 = vmatprep.subr.mxu0 0.0
    %3734 = vmatpush1.xpose.msra.mxu0 0.0
    %3735 = vmatprep.subr.mxu0 0.0
    %3736 = vmatpush1.xpose.msra.mxu0 0.0
    %3737 = vmatprep.subr.mxu0 0.0
    %3738 = vmatpush1.xpose.msra.mxu0 0.0
    %3739 = vmatprep.subr.mxu0 0.0
    %3740 = vmatpush1.xpose.msra.mxu0 0.0
    %3741 = vmatprep.subr.mxu0 0.0
    %3742 = vmatpush1.xpose.msra.mxu0 0.0
    %3743 = vmatprep.subr.mxu0 0.0
    %3744 = vmatpush1.xpose.msra.mxu0 0.0
    %3745 = vmatprep.subr.mxu0 0.0
    %3746 = vmatpush1.xpose.msra.mxu0 0.0
    %3747 = vmatprep.subr.mxu0 0.0
    %3748 = vmatpush1.xpose.msra.mxu0 0.0
    %3749 = vmatprep.subr.mxu0 0.0
    %3750 = vmatpush1.xpose.msra.mxu0 0.0
    %3751 = vmatprep.subr.mxu0 0.0
    %3752 = vmatpush1.xpose.msra.mxu0 0.0
    %3753 = vmatprep.subr.mxu0 0.0
    %3754 = vmatpush1.xpose.msra.mxu0 0.0
    %3755 = vmatprep.subr.mxu0 0.0
    %3756 = vmatpush1.xpose.msra.mxu0 0.0
    %3757 = vmatprep.subr.mxu0 0.0
    %3758 = vmatpush1.xpose.msra.mxu0 0.0
    %3759 = vmatprep.subr.mxu0 0.0
    %3760 = vmatpush1.xpose.msra.mxu0 0.0
    %3761 = vmatprep.subr.mxu0 0.0
    %3762 = vmatpush1.xpose.msra.mxu0 0.0
    %3763 = vmatprep.subr.mxu0 0.0
    %3764 = vmatpush1.xpose.msra.mxu0 0.0
    %3765 = vmatprep.subr.mxu0 0.0
    %3766 = vmatpush1.xpose.msra.mxu0 0.0
    %3767 = vmatprep.subr.mxu0 0.0
    %3768 = vmatpush1.xpose.msra.mxu0 0.0
    %3769 = vmatprep.subr.mxu0 0.0
    %3770 = vmatpush1.xpose.msra.mxu0 0.0
    %3771 = vmatprep.subr.mxu0 0.0
    %3772 = vmatpush1.xpose.msra.mxu0 0.0
    %3773 = vmatprep.mubr.f32.mxu0 0.0
    %3774 = vmatmul.mubr.f32.gmra.mrb[0].mxu0 %v3705
    %v3775 = vpop.f32.mrb[0].mxu0
    %v3776 = vadd.f32 %v49, %v3775
    %v3777 = vpop.f32.mrb[0].mxu0
    %3778 = vdwg.mxu0
    %3779 = vrot.lane.b32.xlu0 %v2300, 104
    %v3780 = vpop.permute.xlu0 %3779
    %3781 = vrot.lane.b32.xlu0 %v2380, 104
    %v3782 = vpop.permute.xlu0 %3781
    %v3783 = vsel %vm324, %v3780, 0
    %v3785 = vsel %vm324, %v3782, 0
    %3787 = vmatprep.subr.mxu0 0.0
    %3788 = vmatpush1.xpose.msra.mxu0 %v3785
    %3789 = vmatprep.subr.mxu0 0.0
    %3790 = vmatpush1.xpose.msra.mxu0 0.0
    %3791 = vmatprep.subr.mxu0 0.0
    %3792 = vmatpush1.xpose.msra.mxu0 0.0
    %3793 = vmatprep.subr.mxu0 0.0
    %3794 = vmatpush1.xpose.msra.mxu0 0.0
    %3795 = vmatprep.subr.mxu0 0.0
    %3796 = vmatpush1.xpose.msra.mxu0 0.0
    %3797 = vmatprep.subr.mxu0 0.0
    %3798 = vmatpush1.xpose.msra.mxu0 0.0
    %3799 = vmatprep.subr.mxu0 0.0
    %3800 = vmatpush1.xpose.msra.mxu0 0.0
    %3801 = vmatprep.subr.mxu0 0.0
    %3802 = vmatpush1.xpose.msra.mxu0 0.0
    %3803 = vmatprep.subr.mxu0 0.0
    %3804 = vmatpush1.xpose.msra.mxu0 0.0
    %3805 = vmatprep.subr.mxu0 0.0
    %3806 = vmatpush1.xpose.msra.mxu0 0.0
    %3807 = vmatprep.subr.mxu0 0.0
    %3808 = vmatpush1.xpose.msra.mxu0 0.0
    %3809 = vmatprep.subr.mxu0 0.0
    %3810 = vmatpush1.xpose.msra.mxu0 0.0
    %3811 = vmatprep.subr.mxu0 0.0
    %3812 = vmatpush1.xpose.msra.mxu0 0.0
    %3813 = vmatprep.subr.mxu0 0.0
    %3814 = vmatpush1.xpose.msra.mxu0 0.0
    %3815 = vmatprep.subr.mxu0 0.0
    %3816 = vmatpush1.xpose.msra.mxu0 0.0
    %3817 = vmatprep.subr.mxu0 0.0
    %3818 = vmatpush1.xpose.msra.mxu0 0.0
    %3819 = vmatprep.subr.mxu0 0.0
    %3820 = vmatpush1.xpose.msra.mxu0 0.0
    %3821 = vmatprep.subr.mxu0 0.0
    %3822 = vmatpush1.xpose.msra.mxu0 0.0
    %3823 = vmatprep.subr.mxu0 0.0
    %3824 = vmatpush1.xpose.msra.mxu0 0.0
    %3825 = vmatprep.subr.mxu0 0.0
    %3826 = vmatpush1.xpose.msra.mxu0 0.0
    %3827 = vmatprep.subr.mxu0 0.0
    %3828 = vmatpush1.xpose.msra.mxu0 0.0
    %3829 = vmatprep.subr.mxu0 0.0
    %3830 = vmatpush1.xpose.msra.mxu0 0.0
    %3831 = vmatprep.subr.mxu0 0.0
    %3832 = vmatpush1.xpose.msra.mxu0 0.0
    %3833 = vmatprep.subr.mxu0 0.0
    %3834 = vmatpush1.xpose.msra.mxu0 0.0
    %3835 = vmatprep.subr.mxu0 0.0
    %3836 = vmatpush1.xpose.msra.mxu0 0.0
    %3837 = vmatprep.subr.mxu0 0.0
    %3838 = vmatpush1.xpose.msra.mxu0 0.0
    %3839 = vmatprep.subr.mxu0 0.0
    %3840 = vmatpush1.xpose.msra.mxu0 0.0
    %3841 = vmatprep.subr.mxu0 0.0
    %3842 = vmatpush1.xpose.msra.mxu0 0.0
    %3843 = vmatprep.subr.mxu0 0.0
    %3844 = vmatpush1.xpose.msra.mxu0 0.0
    %3845 = vmatprep.subr.mxu0 0.0
    %3846 = vmatpush1.xpose.msra.mxu0 0.0
    %3847 = vmatprep.subr.mxu0 0.0
    %3848 = vmatpush1.xpose.msra.mxu0 0.0
    %3849 = vmatprep.subr.mxu0 0.0
    %3850 = vmatpush1.xpose.msra.mxu0 0.0
    %3851 = vmatprep.mubr.f32.mxu0 0.0
    %3852 = vmatmul.mubr.f32.gmra.mrb[0].mxu0 %v3783
    %v3853 = vpop.f32.mrb[0].mxu0
    %v3854 = vadd.f32 %v49, %v3853
    %v3855 = vpop.f32.mrb[0].mxu0
    %3856 = vdwg.mxu0
    %v3857 = vadd.f32 %v3776, %v482
    %v3858 = vadd.f32 %v3854, %v486
    %v3859 = vsel %vm324, %v3857, -inf
    %3860 = vmax.xlane.f32.xlu0 %v3859
    %v3861 = vpop.xlane.xlu0 %3860
    %v3862 = vsel %vm324, %v3858, -inf
    %3863 = vmax.xlane.f32.xlu0 %v3862
    %v3864 = vpop.xlane.xlu0 %3863
    %v3865 = vsub.f32 %v3857, %v3861
    %v3866 = vsub.f32 %v3858, %v3864
    %v3867 = vmul.f32 %v3865, 1.442695
    %v3868 = vpow.pop %v3867
    %v3869 = vmul.f32 %v3866, 1.442695
    %v3870 = vpow.pop %v3869
    %v3871 = vsel %vm324, %v3868, 0.0
    %3872 = vadd.xlane.f32.xlu0 %v3871
    %v3873 = vpop.xlane.xlu0 %3872
    %v3874 = vsel %vm324, %v3870, 0.0
    %3875 = vadd.xlane.f32.xlu0 %v3874
    %v3876 = vpop.xlane.xlu0 %3875
    %v3877 = vrcp.pop %v3873
    %v3878 = vrcp.pop %v3876
    %v3879 = vmul.f32 %v3868, %v3877
    %v3880 = vmul.f32 %v3870, %v3878
    %3881 = vrot.lane.b32.xlu0 %v2455, 104
    %v3882 = vpop.permute.xlu0 %3881
    %v3885 = vsel %vm324, %v3879, 0
    %3887 = vmatprep.subr.mxu0 0.0
    %3888 = vmatpush1.msra.mxu0 %v3882
    %3889 = vmatprep.subr.mxu0 0.0
    %3890 = vmatpush1.msra.mxu0 0.0
    %3891 = vmatprep.subr.mxu0 0.0
    %3892 = vmatpush1.msra.mxu0 0.0
    %3893 = vmatprep.subr.mxu0 0.0
    %3894 = vmatpush1.msra.mxu0 0.0
    %3895 = vmatprep.subr.mxu0 0.0
    %3896 = vmatpush1.msra.mxu0 0.0
    %3897 = vmatprep.subr.mxu0 0.0
    %3898 = vmatpush1.msra.mxu0 0.0
    %3899 = vmatprep.subr.mxu0 0.0
    %3900 = vmatpush1.msra.mxu0 0.0
    %3901 = vmatprep.subr.mxu0 0.0
    %3902 = vmatpush1.msra.mxu0 0.0
    %3903 = vmatprep.subr.mxu0 0.0
    %3904 = vmatpush1.msra.mxu0 0.0
    %3905 = vmatprep.subr.mxu0 0.0
    %3906 = vmatpush1.msra.mxu0 0.0
    %3907 = vmatprep.subr.mxu0 0.0
    %3908 = vmatpush1.msra.mxu0 0.0
    %3909 = vmatprep.subr.mxu0 0.0
    %3910 = vmatpush1.msra.mxu0 0.0
    %3911 = vmatprep.subr.mxu0 0.0
    %3912 = vmatpush1.msra.mxu0 0.0
    %3913 = vmatprep.subr.mxu0 0.0
    %3914 = vmatpush1.msra.mxu0 0.0
    %3915 = vmatprep.subr.mxu0 0.0
    %3916 = vmatpush1.msra.mxu0 0.0
    %3917 = vmatprep.subr.mxu0 0.0
    %3918 = vmatpush1.msra.mxu0 0.0
    %3919 = vmatprep.subr.mxu0 0.0
    %3920 = vmatpush1.msra.mxu0 0.0
    %3921 = vmatprep.subr.mxu0 0.0
    %3922 = vmatpush1.msra.mxu0 0.0
    %3923 = vmatprep.subr.mxu0 0.0
    %3924 = vmatpush1.msra.mxu0 0.0
    %3925 = vmatprep.subr.mxu0 0.0
    %3926 = vmatpush1.msra.mxu0 0.0
    %3927 = vmatprep.subr.mxu0 0.0
    %3928 = vmatpush1.msra.mxu0 0.0
    %3929 = vmatprep.subr.mxu0 0.0
    %3930 = vmatpush1.msra.mxu0 0.0
    %3931 = vmatprep.subr.mxu0 0.0
    %3932 = vmatpush1.msra.mxu0 0.0
    %3933 = vmatprep.subr.mxu0 0.0
    %3934 = vmatpush1.msra.mxu0 0.0
    %3935 = vmatprep.subr.mxu0 0.0
    %3936 = vmatpush1.msra.mxu0 0.0
    %3937 = vmatprep.subr.mxu0 0.0
    %3938 = vmatpush1.msra.mxu0 0.0
    %3939 = vmatprep.subr.mxu0 0.0
    %3940 = vmatpush1.msra.mxu0 0.0
    %3941 = vmatprep.subr.mxu0 0.0
    %3942 = vmatpush1.msra.mxu0 0.0
    %3943 = vmatprep.subr.mxu0 0.0
    %3944 = vmatpush1.msra.mxu0 0.0
    %3945 = vmatprep.subr.mxu0 0.0
    %3946 = vmatpush1.msra.mxu0 0.0
    %3947 = vmatprep.subr.mxu0 0.0
    %3948 = vmatpush1.msra.mxu0 0.0
    %3949 = vmatprep.subr.mxu0 0.0
    %3950 = vmatpush1.msra.mxu0 0.0
    %3951 = vmatprep.mubr.f32.mxu0 0.0
    %3952 = vmatmul.mubr.f32.gmra.mrb[0].mxu0 %v3885
    %v3953 = vpop.f32.mrb[0].mxu0
    %v3954 = vadd.f32 0.0, %v3953
    %v3955 = vpop.f32.mrb[0].mxu0
    %3956 = vdwg.mxu0
    %3957 = vrot.lane.b32.xlu0 %v2460, 104
    %v3958 = vpop.permute.xlu0 %3957
    %v3961 = vsel %vm324, %v3880, 0
    %3963 = vmatprep.subr.mxu0 0.0
    %3964 = vmatpush1.msra.mxu0 %v3958
    %3965 = vmatprep.subr.mxu0 0.0
    %3966 = vmatpush1.msra.mxu0 0.0
    %3967 = vmatprep.subr.mxu0 0.0
    %3968 = vmatpush1.msra.mxu0 0.0
    %3969 = vmatprep.subr.mxu0 0.0
    %3970 = vmatpush1.msra.mxu0 0.0
    %3971 = vmatprep.subr.mxu0 0.0
    %3972 = vmatpush1.msra.mxu0 0.0
    %3973 = vmatprep.subr.mxu0 0.0
    %3974 = vmatpush1.msra.mxu0 0.0
    %3975 = vmatprep.subr.mxu0 0.0
    %3976 = vmatpush1.msra.mxu0 0.0
    %3977 = vmatprep.subr.mxu0 0.0
    %3978 = vmatpush1.msra.mxu0 0.0
    %3979 = vmatprep.subr.mxu0 0.0
    %3980 = vmatpush1.msra.mxu0 0.0
    %3981 = vmatprep.subr.mxu0 0.0
    %3982 = vmatpush1.msra.mxu0 0.0
    %3983 = vmatprep.subr.mxu0 0.0
    %3984 = vmatpush1.msra.mxu0 0.0
    %3985 = vmatprep.subr.mxu0 0.0
    %3986 = vmatpush1.msra.mxu0 0.0
    %3987 = vmatprep.subr.mxu0 0.0
    %3988 = vmatpush1.msra.mxu0 0.0
    %3989 = vmatprep.subr.mxu0 0.0
    %3990 = vmatpush1.msra.mxu0 0.0
    %3991 = vmatprep.subr.mxu0 0.0
    %3992 = vmatpush1.msra.mxu0 0.0
    %3993 = vmatprep.subr.mxu0 0.0
    %3994 = vmatpush1.msra.mxu0 0.0
    %3995 = vmatprep.subr.mxu0 0.0
    %3996 = vmatpush1.msra.mxu0 0.0
    %3997 = vmatprep.subr.mxu0 0.0
    %3998 = vmatpush1.msra.mxu0 0.0
    %3999 = vmatprep.subr.mxu0 0.0
    %4000 = vmatpush1.msra.mxu0 0.0
    %4001 = vmatprep.subr.mxu0 0.0
    %4002 = vmatpush1.msra.mxu0 0.0
    %4003 = vmatprep.subr.mxu0 0.0
    %4004 = vmatpush1.msra.mxu0 0.0
    %4005 = vmatprep.subr.mxu0 0.0
    %4006 = vmatpush1.msra.mxu0 0.0
    %4007 = vmatprep.subr.mxu0 0.0
    %4008 = vmatpush1.msra.mxu0 0.0
    %4009 = vmatprep.subr.mxu0 0.0
    %4010 = vmatpush1.msra.mxu0 0.0
    %4011 = vmatprep.subr.mxu0 0.0
    %4012 = vmatpush1.msra.mxu0 0.0
    %4013 = vmatprep.subr.mxu0 0.0
    %4014 = vmatpush1.msra.mxu0 0.0
    %4015 = vmatprep.subr.mxu0 0.0
    %4016 = vmatpush1.msra.mxu0 0.0
    %4017 = vmatprep.subr.mxu0 0.0
    %4018 = vmatpush1.msra.mxu0 0.0
    %4019 = vmatprep.subr.mxu0 0.0
    %4020 = vmatpush1.msra.mxu0 0.0
    %4021 = vmatprep.subr.mxu0 0.0
    %4022 = vmatpush1.msra.mxu0 0.0
    %4023 = vmatprep.subr.mxu0 0.0
    %4024 = vmatpush1.msra.mxu0 0.0
    %4025 = vmatprep.subr.mxu0 0.0
    %4026 = vmatpush1.msra.mxu0 0.0
    %4027 = vmatprep.mubr.f32.mxu0 0.0
    %4028 = vmatmul.mubr.f32.gmra.mrb[0].mxu0 %v3961
    %v4029 = vpop.f32.mrb[0].mxu0
    %v4030 = vadd.f32 0.0, %v4029
    %v4031 = vpop.f32.mrb[0].mxu0
    %4032 = vdwg.mxu0
    %v4034 = vsel %vm324, %v3954, 0
    %v4037 = vsel %vm324, %v4030, 0
    %4039 = vmatprep.subr.mxu0 0.0
    %4040 = vmatpush1.msra.mxu0 %v2467
    %4041 = vmatprep.subr.mxu0 0.0
    %4042 = vmatpush1.msra.mxu0 0.0
    %4043 = vmatprep.subr.mxu0 0.0
    %4044 = vmatpush1.msra.mxu0 0.0
    %4045 = vmatprep.subr.mxu0 0.0
    %4046 = vmatpush1.msra.mxu0 0.0
    %4047 = vmatprep.subr.mxu0 0.0
    %4048 = vmatpush1.msra.mxu0 0.0
    %4049 = vmatprep.subr.mxu0 0.0
    %4050 = vmatpush1.msra.mxu0 0.0
    %4051 = vmatprep.subr.mxu0 0.0
    %4052 = vmatpush1.msra.mxu0 0.0
    %4053 = vmatprep.subr.mxu0 0.0
    %4054 = vmatpush1.msra.mxu0 0.0
    %4055 = vmatprep.subr.mxu0 0.0
    %4056 = vmatpush1.msra.mxu0 0.0
    %4057 = vmatprep.subr.mxu0 0.0
    %4058 = vmatpush1.msra.mxu0 0.0
    %4059 = vmatprep.subr.mxu0 0.0
    %4060 = vmatpush1.msra.mxu0 0.0
    %4061 = vmatprep.subr.mxu0 0.0
    %4062 = vmatpush1.msra.mxu0 0.0
    %4063 = vmatprep.subr.mxu0 0.0
    %4064 = vmatpush1.msra.mxu0 0.0
    %4065 = vmatprep.subr.mxu0 0.0
    %4066 = vmatpush1.msra.mxu0 0.0
    %4067 = vmatprep.subr.mxu0 0.0
    %4068 = vmatpush1.msra.mxu0 0.0
    %4069 = vmatprep.subr.mxu0 0.0
    %4070 = vmatpush1.msra.mxu0 0.0
    %4071 = vmatprep.subr.mxu0 0.0
    %4072 = vmatpush1.msra.mxu0 0.0
    %4073 = vmatprep.subr.mxu0 0.0
    %4074 = vmatpush1.msra.mxu0 0.0
    %4075 = vmatprep.subr.mxu0 0.0
    %4076 = vmatpush1.msra.mxu0 0.0
    %4077 = vmatprep.subr.mxu0 0.0
    %4078 = vmatpush1.msra.mxu0 0.0
    %4079 = vmatprep.subr.mxu0 0.0
    %4080 = vmatpush1.msra.mxu0 0.0
    %4081 = vmatprep.subr.mxu0 0.0
    %4082 = vmatpush1.msra.mxu0 0.0
    %4083 = vmatprep.subr.mxu0 0.0
    %4084 = vmatpush1.msra.mxu0 0.0
    %4085 = vmatprep.subr.mxu0 0.0
    %4086 = vmatpush1.msra.mxu0 0.0
    %4087 = vmatprep.subr.mxu0 0.0
    %4088 = vmatpush1.msra.mxu0 0.0
    %4089 = vmatprep.subr.mxu0 0.0
    %4090 = vmatpush1.msra.mxu0 0.0
    %4091 = vmatprep.subr.mxu0 0.0
    %4092 = vmatpush1.msra.mxu0 0.0
    %4093 = vmatprep.subr.mxu0 0.0
    %4094 = vmatpush1.msra.mxu0 0.0
    %4095 = vmatprep.subr.mxu0 0.0
    %4096 = vmatpush1.msra.mxu0 0.0
    %4097 = vmatprep.subr.mxu0 0.0
    %4098 = vmatpush1.msra.mxu0 0.0
    %4099 = vmatprep.subr.mxu0 0.0
    %4100 = vmatpush1.msra.mxu0 0.0
    %4101 = vmatprep.subr.mxu0 0.0
    %4102 = vmatpush1.msra.mxu0 0.0
    %4103 = vmatprep.mubr.f32.mxu0 0.0
    %4104 = vmatmul.mubr.f32.gmra.mrb[0].mxu0 %v4034
    %v4105 = vpop.f32.mrb[0].mxu0
    %v4106 = vadd.f32 0.0, %v4105
    %v4107 = vpop.f32.mrb[0].mxu0
    %4108 = vmatprep.mubr.f32.mxu0 0.0
    %4109 = vmatmul.mubr.f32.gmra.mrb[0].mxu0 %v4037
    %v4110 = vpop.f32.mrb[0].mxu0
    %v4111 = vadd.f32 0.0, %v4110
    %v4112 = vpop.f32.mrb[0].mxu0
    %4113 = vdwg.mxu0
    %v4114 = vadd.f32 %v3699, %v4106
    %v4115 = vadd.f32 %v3700, %v4111
    %v4116 = vadd.f32 %v2189, %v4114
    %v4117 = vadd.f32 %v2190, %v4115
    %s4118 = scalar_lea.vmem %s8, 1
    %v4119 = vld [vmem:[%s4118] sm:$0x1]
    %v4120 = vmul.f32 %v4116, %v4116
    %v4121 = vmul.f32 %v4117, %v4117
    %v4122 = vsel %vm53, %v4120, 0.0
    %4123 = vadd.xlane.f32.xlu0 %v4122
    %v4124 = vpop.xlane.xlu0 %4123
    %v4125 = vsel %vm53, %v4121, 0.0
    %4126 = vadd.xlane.f32.xlu0 %v4125
    %v4127 = vpop.xlane.xlu0 %4126
    %v4128 = vmul.f32 %v4124, %v60
    %v4129 = vmul.f32 %v4127, %v60
    %v4130 = vadd.f32 %v4128, 1e-06
    %v4131 = vadd.f32 %v4129, 1e-06
    %v4132 = vrsqrt.pop %v4130
    %v4133 = vrsqrt.pop %v4131
    %v4134 = vmul.f32 %v4116, %v4132
    %v4135 = vmul.f32 %v4117, %v4133
    %v4137 = vlaneseq
    %v4138 = vshrl.u32 %v4137, 7
    %v4139 = vsub.s32 0, %v4138
    %v4140 = vrot.slane %v4119, %v4139
    %v4142 = vmul.f32 %v4134, %v4140
    %v4143 = vmul.f32 %v4135, %v4140
    %s4144 = scalar_lea.vmem %s9, 32
    %v4145 = vld [vmem:[%s4144] sm:$0xff]
    %v4146 = vld [vmem:[%s4144 + $0x8] sm:$0xff]
    %v4147 = vld [vmem:[%s4144 + $0x10] sm:$0xff]
    %v4148 = vld [vmem:[%s4144 + $0x18] sm:$0xff]
    %v4150 = vsel %vm53, %v4142, 0
    %v4153 = vsel %vm53, %v4143, 0
    %4155 = vmatprep.subr.mxu0 0.0
    %4156 = vmatpush1.msra.mxu0 %v4145
    %4157 = vmatprep.subr.mxu0 0.0
    %4158 = vmatpush1.msra.mxu0 %v4146
    %4159 = vmatprep.subr.mxu0 0.0
    %4160 = vmatpush1.msra.mxu0 %v4147
    %4161 = vmatprep.subr.mxu0 0.0
    %4162 = vmatpush1.msra.mxu0 %v4148
    %4163 = vmatprep.subr.mxu0 0.0
    %4164 = vmatpush1.msra.mxu0 0.0
    %4165 = vmatprep.subr.mxu0 0.0
    %4166 = vmatpush1.msra.mxu0 0.0
    %4167 = vmatprep.subr.mxu0 0.0
    %4168 = vmatpush1.msra.mxu0 0.0
    %4169 = vmatprep.subr.mxu0 0.0
    %4170 = vmatpush1.msra.mxu0 0.0
    %4171 = vmatprep.subr.mxu0 0.0
    %4172 = vmatpush1.msra.mxu0 0.0
    %4173 = vmatprep.subr.mxu0 0.0
    %4174 = vmatpush1.msra.mxu0 0.0
    %4175 = vmatprep.subr.mxu0 0.0
    %4176 = vmatpush1.msra.mxu0 0.0
    %4177 = vmatprep.subr.mxu0 0.0
    %4178 = vmatpush1.msra.mxu0 0.0
    %4179 = vmatprep.subr.mxu0 0.0
    %4180 = vmatpush1.msra.mxu0 0.0
    %4181 = vmatprep.subr.mxu0 0.0
    %4182 = vmatpush1.msra.mxu0 0.0
    %4183 = vmatprep.subr.mxu0 0.0
    %4184 = vmatpush1.msra.mxu0 0.0
    %4185 = vmatprep.subr.mxu0 0.0
    %4186 = vmatpush1.msra.mxu0 0.0
    %4187 = vmatprep.subr.mxu0 0.0
    %4188 = vmatpush1.msra.mxu0 0.0
    %4189 = vmatprep.subr.mxu0 0.0
    %4190 = vmatpush1.msra.mxu0 0.0
    %4191 = vmatprep.subr.mxu0 0.0
    %4192 = vmatpush1.msra.mxu0 0.0
    %4193 = vmatprep.subr.mxu0 0.0
    %4194 = vmatpush1.msra.mxu0 0.0
    %4195 = vmatprep.subr.mxu0 0.0
    %4196 = vmatpush1.msra.mxu0 0.0
    %4197 = vmatprep.subr.mxu0 0.0
    %4198 = vmatpush1.msra.mxu0 0.0
    %4199 = vmatprep.subr.mxu0 0.0
    %4200 = vmatpush1.msra.mxu0 0.0
    %4201 = vmatprep.subr.mxu0 0.0
    %4202 = vmatpush1.msra.mxu0 0.0
    %4203 = vmatprep.subr.mxu0 0.0
    %4204 = vmatpush1.msra.mxu0 0.0
    %4205 = vmatprep.subr.mxu0 0.0
    %4206 = vmatpush1.msra.mxu0 0.0
    %4207 = vmatprep.subr.mxu0 0.0
    %4208 = vmatpush1.msra.mxu0 0.0
    %4209 = vmatprep.subr.mxu0 0.0
    %4210 = vmatpush1.msra.mxu0 0.0
    %4211 = vmatprep.subr.mxu0 0.0
    %4212 = vmatpush1.msra.mxu0 0.0
    %4213 = vmatprep.subr.mxu0 0.0
    %4214 = vmatpush1.msra.mxu0 0.0
    %4215 = vmatprep.subr.mxu0 0.0
    %4216 = vmatpush1.msra.mxu0 0.0
    %4217 = vmatprep.subr.mxu0 0.0
    %4218 = vmatpush1.msra.mxu0 0.0
    %4219 = vmatprep.mubr.f32.mxu0 0.0
    %4220 = vmatmul.mubr.f32.gmra.mrb[0].mxu0 %v4150
    %v4221 = vpop.f32.mrb[0].mxu0
    %v4222 = vadd.f32 0.0, %v4221
    %v4223 = vpop.f32.mrb[0].mxu0
    %4224 = vmatprep.mubr.f32.mxu0 0.0
    %4225 = vmatmul.mubr.f32.gmra.mrb[0].mxu0 %v4153
    %v4226 = vpop.f32.mrb[0].mxu0
    %v4227 = vadd.f32 0.0, %v4226
    %v4228 = vpop.f32.mrb[0].mxu0
    %4229 = vdwg.mxu0
    %v4230 = vmax.f32 %v4222, 0.0
    %v4231 = vmax.f32 %v4227, 0.0
    %s4232 = scalar_lea.vmem %s10, 64
    %v4233 = vld [vmem:[%s4232] sm:$0xff]
    %v4234 = vld [vmem:[%s4232 + $0x8] sm:$0xff]
    %v4235 = vld [vmem:[%s4232 + $0x10] sm:$0xff]
    %v4236 = vld [vmem:[%s4232 + $0x18] sm:$0xff]
    %v4237 = vld [vmem:[%s4232 + $0x20] sm:$0xff]
    %v4238 = vld [vmem:[%s4232 + $0x28] sm:$0xff]
    %v4239 = vld [vmem:[%s4232 + $0x30] sm:$0xff]
    %v4240 = vld [vmem:[%s4232 + $0x38] sm:$0xff]
    %v4242 = vsel %vm2107, %v4230, 0
    %v4245 = vsel %vm2107, %v4231, 0
    %4247 = vmatprep.subr.mxu0 0.0
    %4248 = vmatpush1.msra.mxu0 %v4233
    %4249 = vmatprep.subr.mxu0 0.0
    %4250 = vmatpush1.msra.mxu0 %v4234
    %4251 = vmatprep.subr.mxu0 0.0
    %4252 = vmatpush1.msra.mxu0 %v4235
    %4253 = vmatprep.subr.mxu0 0.0
    %4254 = vmatpush1.msra.mxu0 %v4236
    %4255 = vmatprep.subr.mxu0 0.0
    %4256 = vmatpush1.msra.mxu0 %v4237
    %4257 = vmatprep.subr.mxu0 0.0
    %4258 = vmatpush1.msra.mxu0 %v4238
    %4259 = vmatprep.subr.mxu0 0.0
    %4260 = vmatpush1.msra.mxu0 %v4239
    %4261 = vmatprep.subr.mxu0 0.0
    %4262 = vmatpush1.msra.mxu0 %v4240
    %4263 = vmatprep.subr.mxu0 0.0
    %4264 = vmatpush1.msra.mxu0 0.0
    %4265 = vmatprep.subr.mxu0 0.0
    %4266 = vmatpush1.msra.mxu0 0.0
    %4267 = vmatprep.subr.mxu0 0.0
    %4268 = vmatpush1.msra.mxu0 0.0
    %4269 = vmatprep.subr.mxu0 0.0
    %4270 = vmatpush1.msra.mxu0 0.0
    %4271 = vmatprep.subr.mxu0 0.0
    %4272 = vmatpush1.msra.mxu0 0.0
    %4273 = vmatprep.subr.mxu0 0.0
    %4274 = vmatpush1.msra.mxu0 0.0
    %4275 = vmatprep.subr.mxu0 0.0
    %4276 = vmatpush1.msra.mxu0 0.0
    %4277 = vmatprep.subr.mxu0 0.0
    %4278 = vmatpush1.msra.mxu0 0.0
    %4279 = vmatprep.subr.mxu0 0.0
    %4280 = vmatpush1.msra.mxu0 0.0
    %4281 = vmatprep.subr.mxu0 0.0
    %4282 = vmatpush1.msra.mxu0 0.0
    %4283 = vmatprep.subr.mxu0 0.0
    %4284 = vmatpush1.msra.mxu0 0.0
    %4285 = vmatprep.subr.mxu0 0.0
    %4286 = vmatpush1.msra.mxu0 0.0
    %4287 = vmatprep.subr.mxu0 0.0
    %4288 = vmatpush1.msra.mxu0 0.0
    %4289 = vmatprep.subr.mxu0 0.0
    %4290 = vmatpush1.msra.mxu0 0.0
    %4291 = vmatprep.subr.mxu0 0.0
    %4292 = vmatpush1.msra.mxu0 0.0
    %4293 = vmatprep.subr.mxu0 0.0
    %4294 = vmatpush1.msra.mxu0 0.0
    %4295 = vmatprep.subr.mxu0 0.0
    %4296 = vmatpush1.msra.mxu0 0.0
    %4297 = vmatprep.subr.mxu0 0.0
    %4298 = vmatpush1.msra.mxu0 0.0
    %4299 = vmatprep.subr.mxu0 0.0
    %4300 = vmatpush1.msra.mxu0 0.0
    %4301 = vmatprep.subr.mxu0 0.0
    %4302 = vmatpush1.msra.mxu0 0.0
    %4303 = vmatprep.subr.mxu0 0.0
    %4304 = vmatpush1.msra.mxu0 0.0
    %4305 = vmatprep.subr.mxu0 0.0
    %4306 = vmatpush1.msra.mxu0 0.0
    %4307 = vmatprep.subr.mxu0 0.0
    %4308 = vmatpush1.msra.mxu0 0.0
    %4309 = vmatprep.subr.mxu0 0.0
    %4310 = vmatpush1.msra.mxu0 0.0
    %4311 = vmatprep.mubr.f32.mxu0 0.0
    %4312 = vmatmul.mubr.f32.gmra.mrb[0].mxu0 %v4242
    %v4313 = vpop.f32.mrb[0].mxu0
    %v4314 = vadd.f32 0.0, %v4313
    %v4315 = vpop.f32.mrb[0].mxu0
    %4316 = vmatprep.mubr.f32.mxu0 0.0
    %4317 = vmatmul.mubr.f32.gmra.mrb[0].mxu0 %v4245
    %v4318 = vpop.f32.mrb[0].mxu0
    %v4319 = vadd.f32 0.0, %v4318
    %v4320 = vpop.f32.mrb[0].mxu0
    %4321 = vdwg.mxu0
    %v4322 = vadd.f32 %v4116, %v4314
    %v4323 = vadd.f32 %v4117, %v4319
    %v4324 = vld [vmem:[%s11] sm:$0x1]
    %v4325 = vmul.f32 %v4322, %v4322
    %v4326 = vmul.f32 %v4323, %v4323
    %v4327 = vsel %vm53, %v4325, 0.0
    %4328 = vadd.xlane.f32.xlu0 %v4327
    %v4329 = vpop.xlane.xlu0 %4328
    %v4330 = vsel %vm53, %v4326, 0.0
    %4331 = vadd.xlane.f32.xlu0 %v4330
    %v4332 = vpop.xlane.xlu0 %4331
    %v4333 = vmul.f32 %v4329, %v60
    %v4334 = vmul.f32 %v4332, %v60
    %v4335 = vadd.f32 %v4333, 1e-06
    %v4336 = vadd.f32 %v4334, 1e-06
    %v4337 = vrsqrt.pop %v4335
    %v4338 = vrsqrt.pop %v4336
    %v4339 = vmul.f32 %v4322, %v4337
    %v4340 = vmul.f32 %v4323, %v4338
    %v4342 = vlaneseq
    %v4343 = vshrl.u32 %v4342, 7
    %v4344 = vsub.s32 0, %v4343
    %v4345 = vrot.slane %v4324, %v4344
    %v4347 = vmul.f32 %v4339, %v4345
    %v4348 = vmul.f32 %v4340, %v4345
    %v4349 = vsel %vm53, %v4347, 0.0
    %v4350 = vrot.slane %v4349, 4
    %v4351 = vadd.f32 %v4349, %v4350
    %v4352 = vrot.slane %v4351, 2
    %v4353 = vadd.f32 %v4351, %v4352
    %v4354 = vrot.slane %v4353, 1
    %v4355 = vadd.f32 %v4353, %v4354
    %v4356 = vsel %vm53, %v4348, 0.0
    %v4357 = vrot.slane %v4356, 4
    %v4358 = vadd.f32 %v4356, %v4357
    %v4359 = vrot.slane %v4358, 2
    %v4360 = vadd.f32 %v4358, %v4359
    %v4361 = vrot.slane %v4360, 1
    %v4362 = vadd.f32 %v4360, %v4361
    %v4363 = vrcp.pop 8.0
    %v4364 = vmul.f32 %v4355, %v4363
    %v4365 = vmul.f32 %v4362, %v4363
    %vm4368 = vcmask 1041409
    %v4369 = vsel %vm4368, %v4365, %v4364
    %vm4371 = vcmask 254976
    %4372 = vst.msk [vmem:[#allocation2] sm:$0x3] %vm4371, %v4369
    // Predicated region
    $region50: #{t5_prost_target_encoder.1} parent=1 // pred_check
      _
    $region51: #{t5_prost_target_encoder.1} parent=1 // pred_check_branch
      %4374 = sbr.rel (0) target = $region53
    $region52: #{t5_prost_target_encoder.1} parent=1 // pred_region
      %s4376 = ssub.s32 32, 32
      %4377 = vsyncadd [#allocation3], %s4376
      %s4379 = sshll.u32 [#allocation2], 4
      %s4380 = int_to_ptr.vmem [resolvable:$true] %s4379
      %4382 = dma.vmem_to_hbm [thread:$0]  %s4380, 32, %s12, [#allocation3]
    $region53: #{t5_prost_target_encoder.1} parent=1 // pred_fallthru
      _
    // Predicated region
    $region54: #{t5_prost_target_encoder.1} parent=1 // pred_check
      _
    $region55: #{t5_prost_target_encoder.1} parent=1 // pred_check_branch
      %4384 = sbr.rel (0) target = $region57
    $region56: #{t5_prost_target_encoder.1} parent=1 // pred_region
      %4385 = dma.done [#allocation3], 32
    $region57: #{t5_prost_target_encoder.1} parent=1 // pred_fallthru
      _
    %4386 = vsyncpa [#allocation3], 1

</llo_original>
